<compile_context>
chip_gen: v6e
topology: v6e:2x2x1
jax: 0.10.0
libtpu: 0.0.40
codegen_flags: <defaults>
</compile_context>

<pallas_src>
import functools

import jax
import jax.numpy as jnp
from jax import lax
from jax.experimental import pallas as pl
from jax.experimental.pallas import tpu as pltpu


def _mha_kernel(x_ref, wqkv_ref, bqkv_ref, wo_ref, bo_ref, o_ref,
                qkv_ref, att_ref, *, n_heads, head_dim, tq, mxu_precision):
    D = n_heads * head_dim
    T = x_ref.shape[1]
    qi = pl.program_id(1)

    # ---- Fused QKV projection, computed once per batch element ------------
    @pl.when(qi == 0)
    def _():
        x = x_ref[0]                                                 # (T, D)
        qkv = jnp.dot(x, wqkv_ref[...],
                      preferred_element_type=jnp.float32,
                      precision=mxu_precision) + bqkv_ref[...]
        qkv_ref[...] = qkv.astype(qkv_ref.dtype)                     # (T, 3D)

    row0 = pl.multiple_of(qi * tq, tq)
    scale = jnp.float32(1.0 / (head_dim ** 0.5))

    # Causal mask for this query tile (global query row = row0 + i).
    q_ids = row0 + lax.broadcasted_iota(jnp.int32, (tq, T), 0)
    k_ids = lax.broadcasted_iota(jnp.int32, (tq, T), 1)
    causal = k_ids <= q_ids

    # TODO(synk): for n_heads >= 8 switch to lax.fori_loop(..., unroll=2..4)
    # to bound live ranges; for very long T add an inner key loop with online
    # softmax and causal key-tile skipping (then avoid -inf on fully-masked
    # tiles).
    for h in range(n_heads):
        lo = h * head_dim
        qh = qkv_ref[pl.ds(row0, tq), pl.ds(lo, head_dim)]           # (tq, hd)
        kh = qkv_ref[:, pl.ds(D + lo, head_dim)]                     # (T, hd)
        vh = qkv_ref[:, pl.ds(2 * D + lo, head_dim)]                 # (T, hd)

        # s = qh @ kh^T (contract head_dim of both; no explicit transpose).
        s = lax.dot_general(qh, kh, (((1,), (1,)), ((), ())),
                            preferred_element_type=jnp.float32,
                            precision=mxu_precision) * scale
        s = jnp.where(causal, s, -jnp.inf)

        # Numerically stable, unnormalized softmax; normalization deferred.
        m = jnp.max(s, axis=-1, keepdims=True)
        p = jnp.exp(s - m)
        l = jnp.sum(p, axis=-1, keepdims=True)

        oh = jnp.dot(p.astype(vh.dtype), vh,
                     preferred_element_type=jnp.float32,
                     precision=mxu_precision)                        # (tq, hd)
        oh = oh * pl.reciprocal(l, approx=True)                      # EUP slot
        att_ref[:, pl.ds(lo, head_dim)] = oh.astype(att_ref.dtype)

    # ---- Single full-depth output projection -------------------------------
    out = jnp.dot(att_ref[...], wo_ref[...],
                  preferred_element_type=jnp.float32,
                  precision=mxu_precision) + bo_ref[...]
    o_ref[0] = out.astype(o_ref.dtype)


def prepare_params(wq, bq, wk, bk, wv, bv, wo, bo):
    """One-time prep OUTSIDE the jitted hot path.

    Takes PyTorch nn.Linear layout ((out, in) weights, (out,) biases) and
    returns a pre-transposed, pre-concatenated parameter set:
      wqkv_t (D, 3D), bqkv (1, 3D), wo_t (D, D), bo (1, D).
    """
    wqkv_t = jnp.concatenate([wq.T, wk.T, wv.T], axis=1)
    bqkv = jnp.concatenate([bq, bk, bv]).reshape(1, -1)
    return wqkv_t, bqkv, wo.T, bo.reshape(1, -1)


@functools.partial(jax.jit, static_argnames=("n_heads", "q_tile"))
def mha_pallas(x, wqkv_t, bqkv, wo_t, bo, *, n_heads, q_tile=None):
    """x: (B, T, D). wqkv_t: (D, 3D), bqkv: (1, 3D), wo_t: (D, D), bo: (1, D)."""
    B, T, D = x.shape
    assert D % n_heads == 0
    head_dim = D // n_heads

    tq = q_tile if q_tile is not None else min(T, 256)
    assert T % tq == 0 and (tq % 8 == 0 or tq == T), "query tile must tile T"
    nq = T // tq

    # f32 inputs -> true f32 MXU matmuls; bf16 inputs -> native bf16 operands
    # (the fast path on v5e/v6e/v7x), f32 accumulation either way.
    mxu_precision = (lax.Precision.HIGHEST if x.dtype == jnp.float32
                     else lax.Precision.DEFAULT)

    kernel = functools.partial(_mha_kernel, n_heads=n_heads,
                               head_dim=head_dim, tq=tq,
                               mxu_precision=mxu_precision)

    # Advisory cost estimate for XLA's scheduler (dtype-aware).
    itemsize = jnp.dtype(x.dtype).itemsize
    flops = int(2 * B * T * D * (3 * D)                 # fused QKV projection
                + 2 * 2 * B * n_heads * T * T * head_dim  # QK^T and PV
                + 2 * B * T * D * D)                    # output projection
    transcendentals = int(B * n_heads * T * T)
    bytes_accessed = int(itemsize * (2 * B * T * D + 4 * D * D + 4 * D))

    return pl.pallas_call(
        kernel,
        out_shape=jax.ShapeDtypeStruct((B, T, D), x.dtype),
        grid_spec=pltpu.PrefetchScalarGridSpec(
            num_scalar_prefetch=0,
            grid=(B, nq),
            in_specs=[
                pl.BlockSpec((1, T, D), lambda b, q: (b, 0, 0)),    # x (per batch)
                pl.BlockSpec((D, 3 * D), lambda b, q: (0, 0)),      # Wqkv^T
                pl.BlockSpec((1, 3 * D), lambda b, q: (0, 0)),      # bqkv
                pl.BlockSpec((D, D), lambda b, q: (0, 0)),          # Wo^T
                pl.BlockSpec((1, D), lambda b, q: (0, 0)),          # bo
            ],
            out_specs=pl.BlockSpec((1, tq, D), lambda b, q: (b, q, 0)),
            scratch_shapes=[
                pltpu.VMEM((T, 3 * D), x.dtype),   # fused QKV, reused across q tiles
                pltpu.VMEM((tq, D), x.dtype),      # concatenated head outputs
            ],
        ),
        compiler_params=pltpu.CompilerParams(
            # batch axis shards across TensorCores; q-tile axis carries the
            # QKV scratch so it must stay "arbitrary".
            dimension_semantics=("parallel", "arbitrary"),
            # Above the 16/32 MiB scoped defaults, below v7x's 64 MiB physical
            # VMEM; raise toward ~100 MiB on v5e/v6e for large models.
            vmem_limit_bytes=48 * 1024 * 1024,
        ),
        cost_estimate=pl.CostEstimate(
            flops=flops, transcendentals=transcendentals,
            bytes_accessed=bytes_accessed),
    )(x, wqkv_t, bqkv, wo_t, bo)


def _reference_mha(x, wq, bq, wk, bk, wv, bv, wo, bo, n_heads):
    """Pure-JAX reference matching the PyTorch module (nn.Linear layout)."""
    B, T, D = x.shape
    hd = D // n_heads
    q = x @ wq.T + bq
    k = x @ wk.T + bk
    v = x @ wv.T + bv

    def split(t):
        return t.reshape(B, T, n_heads, hd).transpose(0, 2, 1, 3)

    q, k, v = split(q), split(k), split(v)
    s = jnp.einsum("bhqd,bhkd->bhqk", q, k) / jnp.sqrt(jnp.float32(hd))
    causal = jnp.tril(jnp.ones((T, T), dtype=bool))
    s = jnp.where(causal[None, None], s, -jnp.inf)
    p = jax.nn.softmax(s, axis=-1)
    o = jnp.einsum("bhqk,bhkd->bhqd", p, v)
    o = o.transpose(0, 2, 1, 3).reshape(B, T, D)
    return o @ wo.T + bo


if __name__ == "__main__":
    # Small shapes consistent with the module: dim=32, n_heads=4, batch=2, seq=8.
    batch, seq, dim, n_heads = 2, 8, 32, 4

    key = jax.random.PRNGKey(0)
    keys = jax.random.split(key, 9)

    x = jax.random.normal(keys[0], (batch, seq, dim), dtype=jnp.float32)

    bound = 1.0 / (dim ** 0.5)

    def lin(kw, kb):
        w = jax.random.uniform(kw, (dim, dim), jnp.float32, -bound, bound)
        b = jax.random.uniform(kb, (dim,), jnp.float32, -bound, bound)
        return w, b

    wq, bq = lin(keys[1], keys[2])
    wk, bk = lin(keys[3], keys[4])
    wv, bv = lin(keys[5], keys[6])
    wo, bo = lin(keys[7], keys[8])

    # One-time weight prep outside jit: transpose + concatenate QKV.
    params = prepare_params(wq, bq, wk, bk, wv, bv, wo, bo)

    # Full-precision pure-JAX reference.
    with jax.default_matmul_precision("highest"):
        ref = _reference_mha(x, wq, bq, wk, bk, wv, bv, wo, bo, n_heads)
        ref = jax.block_until_ready(ref)

    # f32 path: full-precision MXU matmuls, approx reciprocal on the EUP.
    out = mha_pallas(x, *params, n_heads=n_heads)
    jax.block_until_ready(out)
    assert out.shape == (batch, seq, dim)
    assert jnp.allclose(out, ref, atol=5e-3, rtol=5e-3), "f32 mismatch vs reference"

    # bf16 path: bf16 MXU operands everywhere (~3x MXU throughput on v6e/v7x),
    # f32 accumulation and f32 softmax math inside the kernel.
    x_bf16 = x.astype(jnp.bfloat16)
    params_bf16 = tuple(p.astype(jnp.bfloat16) for p in params)
    out_bf16 = mha_pallas(x_bf16, *params_bf16, n_heads=n_heads)
    jax.block_until_ready(out_bf16)
    assert out_bf16.dtype == jnp.bfloat16
    assert jnp.allclose(out_bf16.astype(jnp.float32), ref,
                        atol=8e-2, rtol=8e-2), "bf16 mismatch vs reference"

    print("KERNEL_OK")
</pallas_src>

<mosaic_0001>
module attributes {stable_mosaic.version = 11 : i64} {
  func.func @_mha_kernel(%arg0: i32, %arg1: i32, %arg2: memref<1x8x32xf32, #tpu.memory_space<vmem>>, %arg3: memref<32x96xf32, #tpu.memory_space<vmem>>, %arg4: memref<1x96xf32, #tpu.memory_space<vmem>>, %arg5: memref<32x32xf32, #tpu.memory_space<vmem>>, %arg6: memref<1x32xf32, #tpu.memory_space<vmem>>, %arg7: memref<1x8x32xf32, #tpu.memory_space<vmem>>, %arg8: memref<8x96xf32, #tpu.memory_space<vmem>>, %arg9: memref<8x32xf32, #tpu.memory_space<vmem>>) attributes {dimension_semantics = [#tpu.dimension_semantics<parallel>, #tpu.dimension_semantics<arbitrary>], iteration_bounds = array<i64: 2, 1>, scalar_prefetch = 0 : i64, scratch_operands = 2 : i64, tpu.core_type = #tpu.core_type<tc>, window_params = [{transform_indices = @transform_0, window_bounds = array<i64: 1, 8, 32>}, {pipeline_mode = #tpu.pipeline_mode<synchronous>, transform_indices = @transform_1, window_bounds = array<i64: 32, 96>}, {pipeline_mode = #tpu.pipeline_mode<synchronous>, transform_indices = @transform_2, window_bounds = array<i64: 1, 96>}, {pipeline_mode = #tpu.pipeline_mode<synchronous>, transform_indices = @transform_3, window_bounds = array<i64: 32, 32>}, {pipeline_mode = #tpu.pipeline_mode<synchronous>, transform_indices = @transform_4, window_bounds = array<i64: 1, 32>}, {transform_indices = @transform_5, window_bounds = array<i64: 1, 8, 32>}]} {
    %c0_i32 = arith.constant 0 : i32
    %0 = arith.cmpi eq, %arg1, %c0_i32 : i32
    %1 = arith.extui %0 : i1 to i32
    %c0_i32_0 = arith.constant 0 : i32
    %2 = arith.cmpi ne, %1, %c0_i32_0 : i32
    scf.if %2 {
      %c0_50 = arith.constant 0 : index
      %c0_51 = arith.constant 0 : index
      %c0_52 = arith.constant 0 : index
      %103 = vector.load %arg2[%c0_50, %c0_51, %c0_52] : memref<1x8x32xf32, #tpu.memory_space<vmem>>, vector<1x8x32xf32>
      %104 = vector.shape_cast %103 : vector<1x8x32xf32> to vector<8x32xf32>
      %c0_53 = arith.constant 0 : index
      %c0_54 = arith.constant 0 : index
      %105 = vector.load %arg3[%c0_53, %c0_54] : memref<32x96xf32, #tpu.memory_space<vmem>>, vector<32x96xf32>
      %cst_55 = arith.constant dense<0.000000e+00> : vector<8x96xf32>
      %106 = tpu.matmul %104, %105, %cst_55 {dimension_numbers = #tpu.dot_dimension_numbers<[1], [0], [0], [1], [0, 0, 1, 1], [], []>, precision = #tpu.contract_precision<fp32>} : vector<8x32xf32>, vector<32x96xf32>, vector<8x96xf32> -> vector<8x96xf32>
      %c0_56 = arith.constant 0 : index
      %c0_57 = arith.constant 0 : index
      %107 = vector.load %arg4[%c0_56, %c0_57] : memref<1x96xf32, #tpu.memory_space<vmem>>, vector<1x96xf32>
      %108 = vector.broadcast %107 : vector<1x96xf32> to vector<8x96xf32>
      %109 = arith.addf %106, %108 : vector<8x96xf32>
      %c0_58 = arith.constant 0 : index
      %c0_59 = arith.constant 0 : index
      %110 = vector.load %arg8[%c0_58, %c0_59] : memref<8x96xf32, #tpu.memory_space<vmem>>, vector<8x96xf32>
      tpu.vector_store %arg8[%c0_58, %c0_59], %109 {strides = array<i32>} : memref<8x96xf32, #tpu.memory_space<vmem>>, vector<8x96xf32>,
    } else {
    }
    %c8_i32 = arith.constant 8 : i32
    %3 = arith.muli %arg1, %c8_i32 : i32
    %4 = tpu.assume_multiple %3, 8 : i32
    %5 = tpu.iota {dimensions = array<i32: 0>} : vector<8x8xi32>
    %6 = vector.broadcast %4 : i32 to vector<8x8xi32>
    %7 = arith.addi %6, %5 : vector<8x8xi32>
    %8 = tpu.iota {dimensions = array<i32: 1>} : vector<8x8xi32>
    %9 = arith.cmpi sle, %8, %7 : vector<8x8xi32>
    %10 = arith.index_cast %4 : i32 to index
    %c0 = arith.constant 0 : index
    %11 = vector.load %arg8[%10, %c0] : memref<8x96xf32, #tpu.memory_space<vmem>>, vector<8x8xf32>
    %c0_1 = arith.constant 0 : index
    %c32 = arith.constant 32 : index
    %12 = vector.load %arg8[%c0_1, %c32] : memref<8x96xf32, #tpu.memory_space<vmem>>, vector<8x8xf32>
    %c0_2 = arith.constant 0 : index
    %c64 = arith.constant 64 : index
    %13 = vector.load %arg8[%c0_2, %c64] : memref<8x96xf32, #tpu.memory_space<vmem>>, vector<8x8xf32>
    %cst = arith.constant dense<0.000000e+00> : vector<8x8xf32>
    %14 = tpu.matmul %11, %12, %cst {dimension_numbers = #tpu.dot_dimension_numbers<[1], [1], [0], [0], [0, 0, 1, 0], [], []>, precision = #tpu.contract_precision<fp32>} : vector<8x8xf32>, vector<8x8xf32>, vector<8x8xf32> -> vector<8x8xf32>
    %cst_3 = arith.constant 0.353553385 : f32
    %15 = vector.broadcast %cst_3 : f32 to vector<8x8xf32>
    %16 = arith.mulf %14, %15 : vector<8x8xf32>
    %cst_4 = arith.constant 0xFF800000 : f32
    %17 = vector.broadcast %cst_4 : f32 to vector<8x8xf32>
    %18 = arith.select %9, %16, %17 : vector<8x8xi1>, vector<8x8xf32>
    %cst_5 = arith.constant dense<0xFF800000> : vector<8xf32>
    %19 = vector.multi_reduction <maximumf>, %18, %cst_5 [1] : vector<8x8xf32> to vector<8xf32>
    %20 = vector.shape_cast %19 : vector<8xf32> to vector<8x1xf32>
    %21 = vector.broadcast %20 : vector<8x1xf32> to vector<8x8xf32>
    %22 = arith.subf %18, %21 : vector<8x8xf32>
    %23 = math.exp %22 : vector<8x8xf32>
    %cst_6 = arith.constant dense<0.000000e+00> : vector<8xf32>
    %24 = vector.multi_reduction <add>, %23, %cst_6 [1] : vector<8x8xf32> to vector<8xf32>
    %25 = vector.shape_cast %24 : vector<8xf32> to vector<8x1xf32>
    %cst_7 = arith.constant dense<0.000000e+00> : vector<8x8xf32>
    %26 = tpu.matmul %23, %13, %cst_7 {dimension_numbers = #tpu.dot_dimension_numbers<[1], [0], [0], [1], [0, 0, 1, 1], [], []>, precision = #tpu.contract_precision<fp32>} : vector<8x8xf32>, vector<8x8xf32>, vector<8x8xf32> -> vector<8x8xf32>
    %27 = tpu.reciprocal %25 {approx = true} : vector<8x1xf32> -> vector<8x1xf32>
    %28 = vector.broadcast %27 : vector<8x1xf32> to vector<8x8xf32>
    %29 = arith.mulf %26, %28 : vector<8x8xf32>
    %c0_8 = arith.constant 0 : index
    %c0_9 = arith.constant 0 : index
    %30 = vector.load %arg9[%c0_8, %c0_9] : memref<8x32xf32, #tpu.memory_space<vmem>>, vector<8x8xf32>
    tpu.vector_store %arg9[%c0_8, %c0_9], %29 {strides = array<i32>} : memref<8x32xf32, #tpu.memory_space<vmem>>, vector<8x8xf32>,
    %31 = arith.index_cast %4 : i32 to index
    %c8 = arith.constant 8 : index
    %32 = vector.load %arg8[%31, %c8] : memref<8x96xf32, #tpu.memory_space<vmem>>, vector<8x8xf32>
    %c0_10 = arith.constant 0 : index
    %c40 = arith.constant 40 : index
    %33 = vector.load %arg8[%c0_10, %c40] : memref<8x96xf32, #tpu.memory_space<vmem>>, vector<8x8xf32>
    %c0_11 = arith.constant 0 : index
    %c72 = arith.constant 72 : index
    %34 = vector.load %arg8[%c0_11, %c72] : memref<8x96xf32, #tpu.memory_space<vmem>>, vector<8x8xf32>
    %cst_12 = arith.constant dense<0.000000e+00> : vector<8x8xf32>
    %35 = tpu.matmul %32, %33, %cst_12 {dimension_numbers = #tpu.dot_dimension_numbers<[1], [1], [0], [0], [0, 0, 1, 0], [], []>, precision = #tpu.contract_precision<fp32>} : vector<8x8xf32>, vector<8x8xf32>, vector<8x8xf32> -> vector<8x8xf32>
    %cst_13 = arith.constant 0.353553385 : f32
    %36 = vector.broadcast %cst_13 : f32 to vector<8x8xf32>
    %37 = arith.mulf %35, %36 : vector<8x8xf32>
    %cst_14 = arith.constant 0xFF800000 : f32
    %38 = vector.broadcast %cst_14 : f32 to vector<8x8xf32>
    %39 = arith.select %9, %37, %38 : vector<8x8xi1>, vector<8x8xf32>
    %cst_15 = arith.constant dense<0xFF800000> : vector<8xf32>
    %40 = vector.multi_reduction <maximumf>, %39, %cst_15 [1] : vector<8x8xf32> to vector<8xf32>
    %41 = vector.shape_cast %40 : vector<8xf32> to vector<8x1xf32>
    %42 = vector.broadcast %41 : vector<8x1xf32> to vector<8x8xf32>
    %43 = arith.subf %39, %42 : vector<8x8xf32>
    %44 = math.exp %43 : vector<8x8xf32>
    %cst_16 = arith.constant dense<0.000000e+00> : vector<8xf32>
    %45 = vector.multi_reduction <add>, %44, %cst_16 [1] : vector<8x8xf32> to vector<8xf32>
    %46 = vector.shape_cast %45 : vector<8xf32> to vector<8x1xf32>
    %cst_17 = arith.constant dense<0.000000e+00> : vector<8x8xf32>
    %47 = tpu.matmul %44, %34, %cst_17 {dimension_numbers = #tpu.dot_dimension_numbers<[1], [0], [0], [1], [0, 0, 1, 1], [], []>, precision = #tpu.contract_precision<fp32>} : vector<8x8xf32>, vector<8x8xf32>, vector<8x8xf32> -> vector<8x8xf32>
    %48 = tpu.reciprocal %46 {approx = true} : vector<8x1xf32> -> vector<8x1xf32>
    %49 = vector.broadcast %48 : vector<8x1xf32> to vector<8x8xf32>
    %50 = arith.mulf %47, %49 : vector<8x8xf32>
    %c0_18 = arith.constant 0 : index
    %c8_19 = arith.constant 8 : index
    %51 = vector.load %arg9[%c0_18, %c8_19] : memref<8x32xf32, #tpu.memory_space<vmem>>, vector<8x8xf32>
    tpu.vector_store %arg9[%c0_18, %c8_19], %50 {strides = array<i32>} : memref<8x32xf32, #tpu.memory_space<vmem>>, vector<8x8xf32>,
    %52 = arith.index_cast %4 : i32 to index
    %c16 = arith.constant 16 : index
    %53 = vector.load %arg8[%52, %c16] : memref<8x96xf32, #tpu.memory_space<vmem>>, vector<8x8xf32>
    %c0_20 = arith.constant 0 : index
    %c48 = arith.constant 48 : index
    %54 = vector.load %arg8[%c0_20, %c48] : memref<8x96xf32, #tpu.memory_space<vmem>>, vector<8x8xf32>
    %c0_21 = arith.constant 0 : index
    %c80 = arith.constant 80 : index
    %55 = vector.load %arg8[%c0_21, %c80] : memref<8x96xf32, #tpu.memory_space<vmem>>, vector<8x8xf32>
    %cst_22 = arith.constant dense<0.000000e+00> : vector<8x8xf32>
    %56 = tpu.matmul %53, %54, %cst_22 {dimension_numbers = #tpu.dot_dimension_numbers<[1], [1], [0], [0], [0, 0, 1, 0], [], []>, precision = #tpu.contract_precision<fp32>} : vector<8x8xf32>, vector<8x8xf32>, vector<8x8xf32> -> vector<8x8xf32>
    %cst_23 = arith.constant 0.353553385 : f32
    %57 = vector.broadcast %cst_23 : f32 to vector<8x8xf32>
    %58 = arith.mulf %56, %57 : vector<8x8xf32>
    %cst_24 = arith.constant 0xFF800000 : f32
    %59 = vector.broadcast %cst_24 : f32 to vector<8x8xf32>
    %60 = arith.select %9, %58, %59 : vector<8x8xi1>, vector<8x8xf32>
    %cst_25 = arith.constant dense<0xFF800000> : vector<8xf32>
    %61 = vector.multi_reduction <maximumf>, %60, %cst_25 [1] : vector<8x8xf32> to vector<8xf32>
    %62 = vector.shape_cast %61 : vector<8xf32> to vector<8x1xf32>
    %63 = vector.broadcast %62 : vector<8x1xf32> to vector<8x8xf32>
    %64 = arith.subf %60, %63 : vector<8x8xf32>
    %65 = math.exp %64 : vector<8x8xf32>
    %cst_26 = arith.constant dense<0.000000e+00> : vector<8xf32>
    %66 = vector.multi_reduction <add>, %65, %cst_26 [1] : vector<8x8xf32> to vector<8xf32>
    %67 = vector.shape_cast %66 : vector<8xf32> to vector<8x1xf32>
    %cst_27 = arith.constant dense<0.000000e+00> : vector<8x8xf32>
    %68 = tpu.matmul %65, %55, %cst_27 {dimension_numbers = #tpu.dot_dimension_numbers<[1], [0], [0], [1], [0, 0, 1, 1], [], []>, precision = #tpu.contract_precision<fp32>} : vector<8x8xf32>, vector<8x8xf32>, vector<8x8xf32> -> vector<8x8xf32>
    %69 = tpu.reciprocal %67 {approx = true} : vector<8x1xf32> -> vector<8x1xf32>
    %70 = vector.broadcast %69 : vector<8x1xf32> to vector<8x8xf32>
    %71 = arith.mulf %68, %70 : vector<8x8xf32>
    %c0_28 = arith.constant 0 : index
    %c16_29 = arith.constant 16 : index
    %72 = vector.load %arg9[%c0_28, %c16_29] : memref<8x32xf32, #tpu.memory_space<vmem>>, vector<8x8xf32>
    tpu.vector_store %arg9[%c0_28, %c16_29], %71 {strides = array<i32>} : memref<8x32xf32, #tpu.memory_space<vmem>>, vector<8x8xf32>,
    %73 = arith.index_cast %4 : i32 to index
    %c24 = arith.constant 24 : index
    %74 = vector.load %arg8[%73, %c24] : memref<8x96xf32, #tpu.memory_space<vmem>>, vector<8x8xf32>
    %c0_30 = arith.constant 0 : index
    %c56 = arith.constant 56 : index
    %75 = vector.load %arg8[%c0_30, %c56] : memref<8x96xf32, #tpu.memory_space<vmem>>, vector<8x8xf32>
    %c0_31 = arith.constant 0 : index
    %c88 = arith.constant 88 : index
    %76 = vector.load %arg8[%c0_31, %c88] : memref<8x96xf32, #tpu.memory_space<vmem>>, vector<8x8xf32>
    %cst_32 = arith.constant dense<0.000000e+00> : vector<8x8xf32>
    %77 = tpu.matmul %74, %75, %cst_32 {dimension_numbers = #tpu.dot_dimension_numbers<[1], [1], [0], [0], [0, 0, 1, 0], [], []>, precision = #tpu.contract_precision<fp32>} : vector<8x8xf32>, vector<8x8xf32>, vector<8x8xf32> -> vector<8x8xf32>
    %cst_33 = arith.constant 0.353553385 : f32
    %78 = vector.broadcast %cst_33 : f32 to vector<8x8xf32>
    %79 = arith.mulf %77, %78 : vector<8x8xf32>
    %cst_34 = arith.constant 0xFF800000 : f32
    %80 = vector.broadcast %cst_34 : f32 to vector<8x8xf32>
    %81 = arith.select %9, %79, %80 : vector<8x8xi1>, vector<8x8xf32>
    %cst_35 = arith.constant dense<0xFF800000> : vector<8xf32>
    %82 = vector.multi_reduction <maximumf>, %81, %cst_35 [1] : vector<8x8xf32> to vector<8xf32>
    %83 = vector.shape_cast %82 : vector<8xf32> to vector<8x1xf32>
    %84 = vector.broadcast %83 : vector<8x1xf32> to vector<8x8xf32>
    %85 = arith.subf %81, %84 : vector<8x8xf32>
    %86 = math.exp %85 : vector<8x8xf32>
    %cst_36 = arith.constant dense<0.000000e+00> : vector<8xf32>
    %87 = vector.multi_reduction <add>, %86, %cst_36 [1] : vector<8x8xf32> to vector<8xf32>
    %88 = vector.shape_cast %87 : vector<8xf32> to vector<8x1xf32>
    %cst_37 = arith.constant dense<0.000000e+00> : vector<8x8xf32>
    %89 = tpu.matmul %86, %76, %cst_37 {dimension_numbers = #tpu.dot_dimension_numbers<[1], [0], [0], [1], [0, 0, 1, 1], [], []>, precision = #tpu.contract_precision<fp32>} : vector<8x8xf32>, vector<8x8xf32>, vector<8x8xf32> -> vector<8x8xf32>
    %90 = tpu.reciprocal %88 {approx = true} : vector<8x1xf32> -> vector<8x1xf32>
    %91 = vector.broadcast %90 : vector<8x1xf32> to vector<8x8xf32>
    %92 = arith.mulf %89, %91 : vector<8x8xf32>
    %c0_38 = arith.constant 0 : index
    %c24_39 = arith.constant 24 : index
    %93 = vector.load %arg9[%c0_38, %c24_39] : memref<8x32xf32, #tpu.memory_space<vmem>>, vector<8x8xf32>
    tpu.vector_store %arg9[%c0_38, %c24_39], %92 {strides = array<i32>} : memref<8x32xf32, #tpu.memory_space<vmem>>, vector<8x8xf32>,
    %c0_40 = arith.constant 0 : index
    %c0_41 = arith.constant 0 : index
    %94 = vector.load %arg9[%c0_40, %c0_41] : memref<8x32xf32, #tpu.memory_space<vmem>>, vector<8x32xf32>
    %c0_42 = arith.constant 0 : index
    %c0_43 = arith.constant 0 : index
    %95 = vector.load %arg5[%c0_42, %c0_43] : memref<32x32xf32, #tpu.memory_space<vmem>>, vector<32x32xf32>
    %cst_44 = arith.constant dense<0.000000e+00> : vector<8x32xf32>
    %96 = tpu.matmul %94, %95, %cst_44 {dimension_numbers = #tpu.dot_dimension_numbers<[1], [0], [0], [1], [0, 0, 1, 1], [], []>, precision = #tpu.contract_precision<fp32>} : vector<8x32xf32>, vector<32x32xf32>, vector<8x32xf32> -> vector<8x32xf32>
    %c0_45 = arith.constant 0 : index
    %c0_46 = arith.constant 0 : index
    %97 = vector.load %arg6[%c0_45, %c0_46] : memref<1x32xf32, #tpu.memory_space<vmem>>, vector<1x32xf32>
    %98 = vector.broadcast %97 : vector<1x32xf32> to vector<8x32xf32>
    %99 = arith.addf %96, %98 : vector<8x32xf32>
    %c0_47 = arith.constant 0 : index
    %c0_48 = arith.constant 0 : index
    %c0_49 = arith.constant 0 : index
    %100 = vector.load %arg7[%c0_47, %c0_48, %c0_49] : memref<1x8x32xf32, #tpu.memory_space<vmem>>, vector<1x8x32xf32>
    %101 = vector.shape_cast %100 : vector<1x8x32xf32> to vector<8x32xf32>
    %102 = vector.shape_cast %99 : vector<8x32xf32> to vector<1x8x32xf32>
    tpu.vector_store %arg7[%c0_47, %c0_48, %c0_49], %102 {strides = array<i32>} : memref<1x8x32xf32, #tpu.memory_space<vmem>>, vector<1x8x32xf32>,
    return
  }
  func.func @transform_0(%arg0: i32, %arg1: i32) -> (i32, i32, i32) {
    %c0_i32 = arith.constant 0 : i32
    %c0_i32_0 = arith.constant 0 : i32
    %c0_i32_1 = arith.constant 0 : i32
    return %arg0, %c0_i32, %c0_i32_0 : i32, i32, i32
  }
  func.func @transform_1(%arg0: i32, %arg1: i32) -> (i32, i32) {
    %c0_i32 = arith.constant 0 : i32
    %c0_i32_0 = arith.constant 0 : i32
    %c0_i32_1 = arith.constant 0 : i32
    return %c0_i32, %c0_i32_0 : i32, i32
  }
  func.func @transform_2(%arg0: i32, %arg1: i32) -> (i32, i32) {
    %c0_i32 = arith.constant 0 : i32
    %c0_i32_0 = arith.constant 0 : i32
    %c0_i32_1 = arith.constant 0 : i32
    return %c0_i32, %c0_i32_0 : i32, i32
  }
  func.func @transform_3(%arg0: i32, %arg1: i32) -> (i32, i32) {
    %c0_i32 = arith.constant 0 : i32
    %c0_i32_0 = arith.constant 0 : i32
    %c0_i32_1 = arith.constant 0 : i32
    return %c0_i32, %c0_i32_0 : i32, i32
  }
  func.func @transform_4(%arg0: i32, %arg1: i32) -> (i32, i32) {
    %c0_i32 = arith.constant 0 : i32
    %c0_i32_0 = arith.constant 0 : i32
    %c0_i32_1 = arith.constant 0 : i32
    return %c0_i32, %c0_i32_0 : i32, i32
  }
  func.func @transform_5(%arg0: i32, %arg1: i32) -> (i32, i32, i32) {
    %c0_i32 = arith.constant 0 : i32
    %c0_i32_0 = arith.constant 0 : i32
    return %arg0, %arg1, %c0_i32 : i32, i32, i32
  }
}

</mosaic_0001>

<llo_original>
// kernel: mha_pallas.1
$region0: #{mha_pallas.1}
  #allocation0 [shape = 'u32[]', space=smem, size = 0x4, offset = 0x4, fixed_abs, tag = 'smem constant byte address 0x4 - core index']
  #allocation1 [shape = 'u32[144,128]{1,0:T(1,128)}', space=vmem, size = 0x12000, scoped, tag = 'internal scratch']
  #allocation2 [shape = 'f32[8,96]{1,0:T(8,128)}', space=vmem, size = 0x1000, scoped, tag = 'scratch operand']
  #allocation3 [shape = 'f32[8,32]{1,0:T(8,128)}', space=vmem, size = 0x1000, scoped, tag = 'scratch operand']
  %s0 = inlined_call_operand.hbm [shape: f32[2,8,32], index: 0, kind: input, shape index: {}]
  %s1 = inlined_call_operand.hbm [shape: f32[32,96], index: 1, kind: input, shape index: {}]
  %s2 = inlined_call_operand.vmem [shape: f32[1,96], index: 2, kind: input, shape index: {}]
  %s3 = inlined_call_operand.hbm [shape: f32[32,32], index: 3, kind: input, shape index: {}]
  %s4 = inlined_call_operand.vmem [shape: f32[1,32], index: 4, kind: input, shape index: {}]
  %s5 = inlined_call_operand.hbm [shape: f32[2,8,32], index: 5, kind: output, shape index: {}]
  %s6 = sld [smem:[#allocation0]]
  $region69: #{mha_pallas.1} parent=0
    _
  %s8 = ssub.s32 1, %s6
  %s9 = scalar_select 0, %s8, %s6
  $region1: #{mha_pallas.1} parent=0
    #allocation4 [shape = 'u8[8192]{0}', space=vmem, size = 0x2000, scoped, tag = 'input window, operand 0']
    #allocation5 [shape = 's32[2]{0}', space=sflag, size = 0x8, scoped, tag = 'scoped memory for mha_pallas.1']
    #allocation6 [shape = 's32[2]{0}', space=sflag, size = 0x8, scoped, tag = 'scoped memory for mha_pallas.1']
    #allocation7 [shape = 'u8[16384]{0}', space=vmem, size = 0x4000, scoped, tag = 'input window, operand 1, single buffered']
    #allocation8 [shape = 's32[1]{0}', space=sflag, size = 0x4, scoped, tag = 'scoped memory for mha_pallas.1']
    #allocation9 [shape = 'u8[16384]{0}', space=vmem, size = 0x4000, scoped, tag = 'input window, operand 3, single buffered']
    #allocation10 [shape = 'u8[8192]{0}', space=vmem, size = 0x2000, scoped, tag = 'output window, operand 0']
    %10 = vsyncpa [#allocation5], 0
    %s11 = scalar_lea.sflag [#allocation5], 1
    %12 = vsyncpa %s11, 0
    %13 = vsyncpa [#allocation8], 0
    %14 = vsyncpa [#allocation6], 0
    %s15 = scalar_lea.sflag [#allocation6], 1
    %16 = vsyncpa %s15, 0
    loop: start=0, step=1, limit=4
    $region2: #{mha_pallas.1} parent=1 // loop_pre_header
      _
    $region3: #{mha_pallas.1} parent=1 // loop_header
      %s18 = sphi 0, %s22
      %p19 = scmp.ge.s32.totalorder %s18, 4
      %s25 = sphi 0, %s37
      %s26 = sphi 0, %s33
      %s27 = sphi 0, %s25
      %s28 = sphi 0, %s26
      %s29 = sphi 0, %s27
      %s30 = sphi 0, %s28
      %s40 = sphi 0, %s42
      %s43 = sphi 0, %s40
      %s44 = sphi 0, %s43
      %s60 = sphi 0, %s44
      %s64 = sphi 0, %s64
      %s66 = sphi 0, %s64
      %s67 = sphi 0, %s66
      %s81 = sphi 0, %s67
      %s85 = sphi 0, %s85
      %s87 = sphi 0, %s85
      %s88 = sphi 0, %s87
      %s102 = sphi 0, %s88
      %s106 = sphi 0, %s106
      %s108 = sphi 0, %s106
      %s109 = sphi 0, %s108
      %s123 = sphi 0, %s109
      %s127 = sphi 0, %s127
      %s129 = sphi 0, %s127
      %s130 = sphi 0, %s129
      %s144 = sphi 0, %s130
      %s152 = sphi 0, %s154
      %s155 = sphi 0, %s152
      %s156 = sphi 0, %s155
      %s172 = sphi 0, %s156
    $region4: #{mha_pallas.1} parent=1 // loop_header_branch
      %21 = sbr.rel (%p19) target = $region8
    $region5: #{mha_pallas.1} parent=1 // loop_body
      %s23 = ssub.s32 %s18, 1
      %s24 = ssub.s32 %s18, 2
      %s31 = sadd.s32 1, %s26
      %p32 = scmp.ge.s32.totalorder %s31, 1
      %s33 = scalar_select %p32, 0, %s31
      %s34 = sadd.s32 1, %s25
      %s35 = scalar_select %p32, %s34, %s25
      %p36 = scmp.ge.s32.totalorder %s35, 2
      %s37 = scalar_select %p36, 0, %s35
      %s38 = ssub.s32 %s25, %s37
      %p39 = scmp.eq.s32.totalorder %s38, 0
      %s41 = sadd.s32 %s40, 1
      %s42 = scalar_select %p39, %s40, %s41
      %p45 = pneg %p39
      %p46 = scmp.eq.s32.totalorder %s18, 1
      %p47 = por %p45, %p46
      %p48 = scmp.ne.s32.totalorder %s40, %s43
      %p49 = scmp.eq.s32.totalorder %s18, 0
      %p50 = por %p48, %p49
      %p51 = scmp.ne.s32.totalorder %s40, %s43
      %p52 = scmp.eq.s32.totalorder %s23, 1
      %p53 = por %p51, %p52
      %p54 = scmp.ne.s32.totalorder %s43, %s44
      %p55 = scmp.eq.s32.totalorder %s23, 0
      %p56 = por %p54, %p55
      %p57 = scmp.ne.s32.totalorder %s43, %s44
      %p58 = scmp.eq.s32.totalorder %s24, 1
      %p59 = por %p57, %p58
      %p61 = scmp.ne.s32.totalorder %s44, %s60
      %p62 = scmp.eq.s32.totalorder %s24, 0
      %p63 = por %p61, %p62
      %s65 = sadd.s32 %s64, 1
      %p68 = scmp.eq.s32.totalorder %s18, 1
      %p69 = scmp.ne.s32.totalorder %s64, %s66
      %p70 = scmp.eq.s32.totalorder %s18, 0
      %p71 = por %p69, %p70
      %p72 = scmp.ne.s32.totalorder %s64, %s66
      %p73 = scmp.eq.s32.totalorder %s23, 1
      %p74 = por %p72, %p73
      %p75 = scmp.ne.s32.totalorder %s66, %s67
      %p76 = scmp.eq.s32.totalorder %s23, 0
      %p77 = por %p75, %p76
      %p78 = scmp.ne.s32.totalorder %s66, %s67
      %p79 = scmp.eq.s32.totalorder %s24, 1
      %p80 = por %p78, %p79
      %p82 = scmp.ne.s32.totalorder %s67, %s81
      %p83 = scmp.eq.s32.totalorder %s24, 0
      %p84 = por %p82, %p83
      %s86 = sadd.s32 %s85, 1
      %p89 = scmp.eq.s32.totalorder %s18, 1
      %p90 = scmp.ne.s32.totalorder %s85, %s87
      %p91 = scmp.eq.s32.totalorder %s18, 0
      %p92 = por %p90, %p91
      %p93 = scmp.ne.s32.totalorder %s85, %s87
      %p94 = scmp.eq.s32.totalorder %s23, 1
      %p95 = por %p93, %p94
      %p96 = scmp.ne.s32.totalorder %s87, %s88
      %p97 = scmp.eq.s32.totalorder %s23, 0
      %p98 = por %p96, %p97
      %p99 = scmp.ne.s32.totalorder %s87, %s88
      %p100 = scmp.eq.s32.totalorder %s24, 1
      %p101 = por %p99, %p100
      %p103 = scmp.ne.s32.totalorder %s88, %s102
      %p104 = scmp.eq.s32.totalorder %s24, 0
      %p105 = por %p103, %p104
      %s107 = sadd.s32 %s106, 1
      %p110 = scmp.eq.s32.totalorder %s18, 1
      %p111 = scmp.ne.s32.totalorder %s106, %s108
      %p112 = scmp.eq.s32.totalorder %s18, 0
      %p113 = por %p111, %p112
      %p114 = scmp.ne.s32.totalorder %s106, %s108
      %p115 = scmp.eq.s32.totalorder %s23, 1
      %p116 = por %p114, %p115
      %p117 = scmp.ne.s32.totalorder %s108, %s109
      %p118 = scmp.eq.s32.totalorder %s23, 0
      %p119 = por %p117, %p118
      %p120 = scmp.ne.s32.totalorder %s108, %s109
      %p121 = scmp.eq.s32.totalorder %s24, 1
      %p122 = por %p120, %p121
      %p124 = scmp.ne.s32.totalorder %s109, %s123
      %p125 = scmp.eq.s32.totalorder %s24, 0
      %p126 = por %p124, %p125
      %s128 = sadd.s32 %s127, 1
      %p131 = scmp.eq.s32.totalorder %s18, 1
      %p132 = scmp.ne.s32.totalorder %s127, %s129
      %p133 = scmp.eq.s32.totalorder %s18, 0
      %p134 = por %p132, %p133
      %p135 = scmp.ne.s32.totalorder %s127, %s129
      %p136 = scmp.eq.s32.totalorder %s23, 1
      %p137 = por %p135, %p136
      %p138 = scmp.ne.s32.totalorder %s129, %s130
      %p139 = scmp.eq.s32.totalorder %s23, 0
      %p140 = por %p138, %p139
      %p141 = scmp.ne.s32.totalorder %s129, %s130
      %p142 = scmp.eq.s32.totalorder %s24, 1
      %p143 = por %p141, %p142
      %p145 = scmp.ne.s32.totalorder %s130, %s144
      %p146 = scmp.eq.s32.totalorder %s24, 0
      %p147 = por %p145, %p146
      %s148 = ssub.s32 %s25, %s37
      %s149 = ssub.s32 %s26, %s33
      %s150 = sor.u32 %s148, %s149
      %p151 = scmp.eq.s32.totalorder %s150, 0
      %s153 = sadd.s32 %s152, 1
      %s154 = scalar_select %p151, %s152, %s153
      %p157 = pneg %p151
      %p158 = scmp.eq.s32.totalorder %s18, 1
      %p159 = por %p157, %p158
      %p160 = scmp.ne.s32.totalorder %s152, %s155
      %p161 = scmp.eq.s32.totalorder %s18, 0
      %p162 = por %p160, %p161
      %p163 = scmp.ne.s32.totalorder %s152, %s155
      %p164 = scmp.eq.s32.totalorder %s23, 1
      %p165 = por %p163, %p164
      %p166 = scmp.ne.s32.totalorder %s155, %s156
      %p167 = scmp.eq.s32.totalorder %s23, 0
      %p168 = por %p166, %p167
      %p169 = scmp.ne.s32.totalorder %s155, %s156
      %p170 = scmp.eq.s32.totalorder %s24, 1
      %p171 = por %p169, %p170
      %p173 = scmp.ne.s32.totalorder %s156, %s172
      %p174 = scmp.eq.s32.totalorder %s24, 0
      %p175 = por %p173, %p174
      %p176 = scmp.le.s32.totalorder 1, %s18
      %p177 = scmp.lt.s32.totalorder %s18, 3
      %p178 = pnand %p176, %p177
      %p179 = pneg %p178
      // Predicated region
      $region9: #{mha_pallas.1} parent=5 // pred_check
        _
      $region10: #{mha_pallas.1} parent=5 // pred_check_branch
        %181 = sbr.rel (%p178) target = $region12
      $region11: #{mha_pallas.1} parent=5 // pred_region
        %s182 = ssub.s32 %s18, 1
        // Predicated region
        $region13: #{mha_pallas.1} parent=11 // pred_check
          %p183 = pneg %p77
        $region14: #{mha_pallas.1} parent=11 // pred_check_branch
          %185 = sbr.rel (%p183) target = $region16
        $region15: #{mha_pallas.1} parent=11 // pred_region
          %s187 = ssub.s32 512, 512
          %188 = vsyncadd [#allocation8], %s187
          %s189 = sshll.u32 [#allocation7], 4
          %s190 = int_to_ptr.vmem [resolvable:$true] %s189
          %195 = dma.hbm_to_vmem [thread:$0]  %s1, 512, %s190, [#allocation8], 128, 128, 8
        $region16: #{mha_pallas.1} parent=11 // pred_fallthru
          _
        // Predicated region
        $region17: #{mha_pallas.1} parent=11 // pred_check
          %p196 = pneg %p98
        $region18: #{mha_pallas.1} parent=11 // pred_check_branch
          %198 = sbr.rel (%p196) target = $region20
        $region19: #{mha_pallas.1} parent=11 // pred_region
          _
        $region20: #{mha_pallas.1} parent=11 // pred_fallthru
          _
        // Predicated region
        $region21: #{mha_pallas.1} parent=11 // pred_check
          %p199 = pneg %p119
        $region22: #{mha_pallas.1} parent=11 // pred_check_branch
          %201 = sbr.rel (%p199) target = $region24
        $region23: #{mha_pallas.1} parent=11 // pred_region
          %s203 = ssub.s32 512, 512
          %204 = vsyncadd [#allocation8], %s203
          %s205 = sshll.u32 [#allocation9], 4
          %s206 = int_to_ptr.vmem [resolvable:$true] %s205
          %211 = dma.hbm_to_vmem [thread:$0]  %s3, 512, %s206, [#allocation8], 128, 128, 8
        $region24: #{mha_pallas.1} parent=11 // pred_fallthru
          _
        // Predicated region
        $region25: #{mha_pallas.1} parent=11 // pred_check
          %p212 = pneg %p140
        $region26: #{mha_pallas.1} parent=11 // pred_check_branch
          %214 = sbr.rel (%p212) target = $region28
        $region27: #{mha_pallas.1} parent=11 // pred_region
          _
        $region28: #{mha_pallas.1} parent=11 // pred_fallthru
          _
      $region12: #{mha_pallas.1} parent=5 // pred_fallthru
        _
      %p215 = scmp.lt.s32.totalorder %s18, 2
      // Predicated region
      $region29: #{mha_pallas.1} parent=5 // pred_check
        %p216 = pneg %p215
      $region30: #{mha_pallas.1} parent=5 // pred_check_branch
        %218 = sbr.rel (%p216) target = $region32
      $region31: #{mha_pallas.1} parent=5 // pred_region
        // Predicated region
        $region33: #{mha_pallas.1} parent=31 // pred_check
          %p219 = pneg %p50
        $region34: #{mha_pallas.1} parent=31 // pred_check_branch
          %221 = sbr.rel (%p219) target = $region36
        $region35: #{mha_pallas.1} parent=31 // pred_region
          %s222 = sand.u32 %s40, 1
          %s223 = scalar_lea.sflag [#allocation5], %s222
          %s224 = sand.u32 %s40, 1
          %s225 = smul.addr %s224, 8
          %s226 = scalar_lea.vmem [#allocation4], %s225
          %s228 = ssub.s32 128, 128
          %229 = vsyncadd %s223, %s228
          %s230 = smul.addr %s25, 128
          %s231 = scalar_lea.hbm %s0, %s230
          %s233 = sshll.u32 %s226, 4
          %s234 = int_to_ptr.vmem [resolvable:$true] %s233
          %236 = dma.hbm_to_vmem [thread:$0]  %s231, 128, %s234, %s223
        $region36: #{mha_pallas.1} parent=31 // pred_fallthru
          _
      $region32: #{mha_pallas.1} parent=5 // pred_fallthru
        _
      %p237 = scmp.le.s32.totalorder 1, %s18
      %p238 = scmp.lt.s32.totalorder %s18, 3
      %p239 = pnand %p237, %p238
      %p240 = pneg %p239
      // Predicated region
      $region37: #{mha_pallas.1} parent=5 // pred_check
        _
      $region38: #{mha_pallas.1} parent=5 // pred_check_branch
        %242 = sbr.rel (%p239) target = $region40
      $region39: #{mha_pallas.1} parent=5 // pred_region
        %s243 = ssub.s32 %s18, 1
        %s244 = sand.u32 %s43, 1
        %s245 = scalar_lea.sflag [#allocation5], %s244
        %s246 = sand.u32 %s43, 1
        %s247 = smul.addr %s246, 8
        %s248 = scalar_lea.vmem [#allocation4], %s247
        // Predicated region
        $region41: #{mha_pallas.1} parent=39 // pred_check
          %p249 = pneg %p56
        $region42: #{mha_pallas.1} parent=39 // pred_check_branch
          %251 = sbr.rel (%p249) target = $region44
        $region43: #{mha_pallas.1} parent=39 // pred_region
          %252 = dma.done %s245, 128
        $region44: #{mha_pallas.1} parent=39 // pred_fallthru
          _
        // Predicated region
        $region45: #{mha_pallas.1} parent=39 // pred_check
          %p253 = pneg %p77
        $region46: #{mha_pallas.1} parent=39 // pred_check_branch
          %255 = sbr.rel (%p253) target = $region48
        $region47: #{mha_pallas.1} parent=39 // pred_region
          %256 = dma.done [#allocation8], 512
        $region48: #{mha_pallas.1} parent=39 // pred_fallthru
          _
        // Predicated region
        $region49: #{mha_pallas.1} parent=39 // pred_check
          %p257 = pneg %p119
        $region50: #{mha_pallas.1} parent=39 // pred_check_branch
          %259 = sbr.rel (%p257) target = $region52
        $region51: #{mha_pallas.1} parent=39 // pred_region
          %260 = dma.done [#allocation8], 512
        $region52: #{mha_pallas.1} parent=39 // pred_fallthru
          _
        %s261 = sand.u32 %s43, 1
        %s262 = scalar_lea.sflag [#allocation5], %s261
        %s263 = sand.u32 %s43, 1
        %s264 = smul.addr %s263, 8
        %s265 = scalar_lea.vmem [#allocation4], %s264
        %p266 = pneg %p56
        %p267 = pneg %p53
        %p268 = pneg %p77
        %p269 = pneg %p74
        %p270 = pneg %p98
        %p271 = pneg %p95
        %p272 = pneg %p119
        %p273 = pneg %p116
        %p274 = pneg %p140
        %p275 = pneg %p137
        %p276 = pneg %p168
        %p277 = pneg %p165
        %s278 = sand.u32 %s155, 1
        %s279 = scalar_lea.sflag [#allocation6], %s278
        %s280 = sand.u32 %s155, 1
        %s281 = smul.addr %s280, 8
        %s282 = scalar_lea.vmem [#allocation10], %s281
        %p283 = scmp.eq.s32.totalorder %s28, 0
        // Predicated region
        $region53: #{mha_pallas.1} parent=39 // pred_check
          %p284 = pneg %p283
        $region54: #{mha_pallas.1} parent=39 // pred_check_branch
          %286 = sbr.rel (%p284) target = $region56
        $region55: #{mha_pallas.1} parent=39 // pred_region
          %v287 = vld [vmem:[%s248] sm:$0xff]
          %v288 = vld [vmem:[#allocation7] sm:$0xff]
          %v289 = vld [vmem:[#allocation7 + $0x8] sm:$0xff]
          %v290 = vld [vmem:[#allocation7 + $0x10] sm:$0xff]
          %v291 = vld [vmem:[#allocation7 + $0x18] sm:$0xff]
          %v292 = vld [vmem:[%s2] sm:$0x1]
          %v294 = vlaneseq
          %v295 = vshrl.u32 %v294, 7
          %v296 = vsub.s32 0, %v295
          %v297 = vrot.slane %v292, %v296
          %vm299 = vcmask 261120
          %v301 = vsel %vm299, %v287, 0
          %303 = vmatprep.subr.mxu0 0.0
          %304 = vmatpush1.msra.mxu0 0.0
          %305 = vmatprep.subr.mxu0 0.0
          %306 = vmatpush1.msra.mxu0 0.0
          %307 = vmatprep.subr.mxu0 0.0
          %308 = vmatpush1.msra.mxu0 0.0
          %309 = vmatprep.subr.mxu0 0.0
          %310 = vmatpush1.msra.mxu0 0.0
          %311 = vmatprep.subr.mxu0 0.0
          %312 = vmatpush1.msra.mxu0 0.0
          %313 = vmatprep.subr.mxu0 0.0
          %314 = vmatpush1.msra.mxu0 0.0
          %315 = vmatprep.subr.mxu0 0.0
          %316 = vmatpush1.msra.mxu0 0.0
          %317 = vmatprep.subr.mxu0 0.0
          %318 = vmatpush1.msra.mxu0 0.0
          %319 = vmatprep.subr.mxu0 0.0
          %320 = vmatpush1.msra.mxu0 0.0
          %321 = vmatprep.subr.mxu0 0.0
          %322 = vmatpush1.msra.mxu0 0.0
          %323 = vmatprep.subr.mxu0 0.0
          %324 = vmatpush1.msra.mxu0 0.0
          %325 = vmatprep.subr.mxu0 0.0
          %326 = vmatpush1.msra.mxu0 0.0
          %327 = vmatprep.subr.mxu0 0.0
          %v328 = vand.u32 %v291, 4294901760
          %329 = vmatpush1.msra.mxu0 %v328
          %330 = vmatprep.subr.mxu0 0.0
          %v331 = vand.u32 %v290, 4294901760
          %332 = vmatpush1.msra.mxu0 %v331
          %333 = vmatprep.subr.mxu0 0.0
          %v334 = vand.u32 %v289, 4294901760
          %335 = vmatpush1.msra.mxu0 %v334
          %336 = vmatprep.subr.mxu0 0.0
          %v337 = vand.u32 %v288, 4294901760
          %338 = vmatpush1.msra.mxu0 %v337
          %339 = vmatprep.subr.mxu0 0.0
          %340 = vmatpush2.msra.mxu0 0.0
          %341 = vmatprep.subr.mxu0 0.0
          %342 = vmatpush2.msra.mxu0 0.0
          %343 = vmatprep.subr.mxu0 0.0
          %344 = vmatpush2.msra.mxu0 0.0
          %345 = vmatprep.subr.mxu0 0.0
          %346 = vmatpush2.msra.mxu0 0.0
          %347 = vmatprep.subr.mxu0 0.0
          %348 = vmatpush2.msra.mxu0 0.0
          %349 = vmatprep.subr.mxu0 0.0
          %350 = vmatpush2.msra.mxu0 0.0
          %351 = vmatprep.subr.mxu0 0.0
          %352 = vmatpush2.msra.mxu0 0.0
          %353 = vmatprep.subr.mxu0 0.0
          %354 = vmatpush2.msra.mxu0 0.0
          %355 = vmatprep.subr.mxu0 0.0
          %356 = vmatpush2.msra.mxu0 0.0
          %357 = vmatprep.subr.mxu0 0.0
          %358 = vmatpush2.msra.mxu0 0.0
          %359 = vmatprep.subr.mxu0 0.0
          %360 = vmatpush2.msra.mxu0 0.0
          %361 = vmatprep.subr.mxu0 0.0
          %362 = vmatpush2.msra.mxu0 0.0
          %363 = vmatprep.subr.mxu0 0.0
          %364 = vmatpush2.msra.mxu0 0.0
          %365 = vmatprep.subr.mxu0 0.0
          %366 = vmatpush2.msra.mxu0 0.0
          %367 = vmatprep.subr.mxu0 0.0
          %368 = vmatpush2.msra.mxu0 0.0
          %369 = vmatprep.subr.mxu0 0.0
          %370 = vmatpush2.msra.mxu0 0.0
          %371 = vmatprep.mubr.f32.mxu0 0.0
          %v372 = vand.u32 %v301, 4294901760
          %v373 = vsub.f32 %v301, %v372
          %v374 = vand.u32 %v373, 4294901760
          %v375 = vsub.f32 %v373, %v374
          %v376 = vand.u32 %v375, 4294901760
          %377 = vmatmul.mubr.f32.gmra.mxu0 %v376
          %v378 = vpop.f32.mrf.mxu0
          %v379 = vadd.f32 %v297, %v378
          %v380 = vpop.f32.mrf.mxu0
          %381 = vdwg.mxu0
          %382 = vmatprep.subr.mxu0 0.0
          %383 = vmatpush1.msra.mxu0 0.0
          %384 = vmatprep.subr.mxu0 0.0
          %385 = vmatpush1.msra.mxu0 0.0
          %386 = vmatprep.subr.mxu0 0.0
          %387 = vmatpush1.msra.mxu0 0.0
          %388 = vmatprep.subr.mxu0 0.0
          %389 = vmatpush1.msra.mxu0 0.0
          %390 = vmatprep.subr.mxu0 0.0
          %391 = vmatpush1.msra.mxu0 0.0
          %392 = vmatprep.subr.mxu0 0.0
          %393 = vmatpush1.msra.mxu0 0.0
          %394 = vmatprep.subr.mxu0 0.0
          %395 = vmatpush1.msra.mxu0 0.0
          %396 = vmatprep.subr.mxu0 0.0
          %397 = vmatpush1.msra.mxu0 0.0
          %398 = vmatprep.subr.mxu0 0.0
          %399 = vmatpush1.msra.mxu0 0.0
          %400 = vmatprep.subr.mxu0 0.0
          %401 = vmatpush1.msra.mxu0 0.0
          %402 = vmatprep.subr.mxu0 0.0
          %403 = vmatpush1.msra.mxu0 0.0
          %404 = vmatprep.subr.mxu0 0.0
          %405 = vmatpush1.msra.mxu0 0.0
          %406 = vmatprep.subr.mxu0 0.0
          %v407 = vand.u32 %v291, 4294901760
          %v408 = vsub.f32 %v291, %v407
          %v409 = vand.u32 %v408, 4294901760
          %v410 = vsub.f32 %v408, %v409
          %v411 = vand.u32 %v410, 4294901760
          %412 = vmatpush1.msra.mxu0 %v411
          %413 = vmatprep.subr.mxu0 0.0
          %v414 = vand.u32 %v290, 4294901760
          %v415 = vsub.f32 %v290, %v414
          %v416 = vand.u32 %v415, 4294901760
          %v417 = vsub.f32 %v415, %v416
          %v418 = vand.u32 %v417, 4294901760
          %419 = vmatpush1.msra.mxu0 %v418
          %420 = vmatprep.subr.mxu0 0.0
          %v421 = vand.u32 %v289, 4294901760
          %v422 = vsub.f32 %v289, %v421
          %v423 = vand.u32 %v422, 4294901760
          %v424 = vsub.f32 %v422, %v423
          %v425 = vand.u32 %v424, 4294901760
          %426 = vmatpush1.msra.mxu0 %v425
          %427 = vmatprep.subr.mxu0 0.0
          %v428 = vand.u32 %v288, 4294901760
          %v429 = vsub.f32 %v288, %v428
          %v430 = vand.u32 %v429, 4294901760
          %v431 = vsub.f32 %v429, %v430
          %v432 = vand.u32 %v431, 4294901760
          %433 = vmatpush1.msra.mxu0 %v432
          %434 = vmatprep.subr.mxu0 0.0
          %435 = vmatpush2.msra.mxu0 0.0
          %436 = vmatprep.subr.mxu0 0.0
          %437 = vmatpush2.msra.mxu0 0.0
          %438 = vmatprep.subr.mxu0 0.0
          %439 = vmatpush2.msra.mxu0 0.0
          %440 = vmatprep.subr.mxu0 0.0
          %441 = vmatpush2.msra.mxu0 0.0
          %442 = vmatprep.subr.mxu0 0.0
          %443 = vmatpush2.msra.mxu0 0.0
          %444 = vmatprep.subr.mxu0 0.0
          %445 = vmatpush2.msra.mxu0 0.0
          %446 = vmatprep.subr.mxu0 0.0
          %447 = vmatpush2.msra.mxu0 0.0
          %448 = vmatprep.subr.mxu0 0.0
          %449 = vmatpush2.msra.mxu0 0.0
          %450 = vmatprep.subr.mxu0 0.0
          %451 = vmatpush2.msra.mxu0 0.0
          %452 = vmatprep.subr.mxu0 0.0
          %453 = vmatpush2.msra.mxu0 0.0
          %454 = vmatprep.subr.mxu0 0.0
          %455 = vmatpush2.msra.mxu0 0.0
          %456 = vmatprep.subr.mxu0 0.0
          %457 = vmatpush2.msra.mxu0 0.0
          %458 = vmatprep.subr.mxu0 0.0
          %459 = vmatpush2.msra.mxu0 0.0
          %460 = vmatprep.subr.mxu0 0.0
          %461 = vmatpush2.msra.mxu0 0.0
          %462 = vmatprep.subr.mxu0 0.0
          %463 = vmatpush2.msra.mxu0 0.0
          %464 = vmatprep.subr.mxu0 0.0
          %465 = vmatpush2.msra.mxu0 0.0
          %466 = vmatprep.mubr.f32.mxu0 0.0
          %v467 = vand.u32 %v301, 4294901760
          %468 = vmatmul.mubr.f32.gmra.mxu0 %v467
          %v469 = vpop.f32.mrf.mxu0
          %v470 = vadd.f32 %v379, %v469
          %v471 = vpop.f32.mrf.mxu0
          %472 = vdwg.mxu0
          %473 = vmatprep.subr.mxu0 0.0
          %474 = vmatpush1.msra.mxu0 0.0
          %475 = vmatprep.subr.mxu0 0.0
          %476 = vmatpush1.msra.mxu0 0.0
          %477 = vmatprep.subr.mxu0 0.0
          %478 = vmatpush1.msra.mxu0 0.0
          %479 = vmatprep.subr.mxu0 0.0
          %480 = vmatpush1.msra.mxu0 0.0
          %481 = vmatprep.subr.mxu0 0.0
          %482 = vmatpush1.msra.mxu0 0.0
          %483 = vmatprep.subr.mxu0 0.0
          %484 = vmatpush1.msra.mxu0 0.0
          %485 = vmatprep.subr.mxu0 0.0
          %486 = vmatpush1.msra.mxu0 0.0
          %487 = vmatprep.subr.mxu0 0.0
          %488 = vmatpush1.msra.mxu0 0.0
          %489 = vmatprep.subr.mxu0 0.0
          %490 = vmatpush1.msra.mxu0 0.0
          %491 = vmatprep.subr.mxu0 0.0
          %492 = vmatpush1.msra.mxu0 0.0
          %493 = vmatprep.subr.mxu0 0.0
          %494 = vmatpush1.msra.mxu0 0.0
          %495 = vmatprep.subr.mxu0 0.0
          %496 = vmatpush1.msra.mxu0 0.0
          %497 = vmatprep.subr.mxu0 0.0
          %v498 = vand.u32 %v291, 4294901760
          %v499 = vsub.f32 %v291, %v498
          %500 = vmatpush1.msra.mxu0 %v499
          %501 = vmatprep.subr.mxu0 0.0
          %v502 = vand.u32 %v290, 4294901760
          %v503 = vsub.f32 %v290, %v502
          %504 = vmatpush1.msra.mxu0 %v503
          %505 = vmatprep.subr.mxu0 0.0
          %v506 = vand.u32 %v289, 4294901760
          %v507 = vsub.f32 %v289, %v506
          %508 = vmatpush1.msra.mxu0 %v507
          %509 = vmatprep.subr.mxu0 0.0
          %v510 = vand.u32 %v288, 4294901760
          %v511 = vsub.f32 %v288, %v510
          %512 = vmatpush1.msra.mxu0 %v511
          %513 = vmatprep.subr.mxu0 0.0
          %514 = vmatpush2.msra.mxu0 0.0
          %515 = vmatprep.subr.mxu0 0.0
          %516 = vmatpush2.msra.mxu0 0.0
          %517 = vmatprep.subr.mxu0 0.0
          %518 = vmatpush2.msra.mxu0 0.0
          %519 = vmatprep.subr.mxu0 0.0
          %520 = vmatpush2.msra.mxu0 0.0
          %521 = vmatprep.subr.mxu0 0.0
          %522 = vmatpush2.msra.mxu0 0.0
          %523 = vmatprep.subr.mxu0 0.0
          %524 = vmatpush2.msra.mxu0 0.0
          %525 = vmatprep.subr.mxu0 0.0
          %526 = vmatpush2.msra.mxu0 0.0
          %527 = vmatprep.subr.mxu0 0.0
          %528 = vmatpush2.msra.mxu0 0.0
          %529 = vmatprep.subr.mxu0 0.0
          %530 = vmatpush2.msra.mxu0 0.0
          %531 = vmatprep.subr.mxu0 0.0
          %532 = vmatpush2.msra.mxu0 0.0
          %533 = vmatprep.subr.mxu0 0.0
          %534 = vmatpush2.msra.mxu0 0.0
          %535 = vmatprep.subr.mxu0 0.0
          %536 = vmatpush2.msra.mxu0 0.0
          %537 = vmatprep.subr.mxu0 0.0
          %538 = vmatpush2.msra.mxu0 0.0
          %539 = vmatprep.subr.mxu0 0.0
          %540 = vmatpush2.msra.mxu0 0.0
          %541 = vmatprep.subr.mxu0 0.0
          %542 = vmatpush2.msra.mxu0 0.0
          %543 = vmatprep.subr.mxu0 0.0
          %544 = vmatpush2.msra.mxu0 0.0
          %545 = vmatprep.mubr.f32.mxu0 0.0
          %v546 = vand.u32 %v301, 4294901760
          %v547 = vsub.f32 %v301, %v546
          %548 = vmatmul.mubr.f32.gmra.mxu0 %v547
          %v549 = vpop.f32.mrf.mxu0
          %v550 = vadd.f32 %v470, %v549
          %v551 = vpop.f32.mrf.mxu0
          %552 = vdwg.mxu0
          %553 = vmatprep.subr.mxu0 0.0
          %554 = vmatpush1.msra.mxu0 0.0
          %555 = vmatprep.subr.mxu0 0.0
          %556 = vmatpush1.msra.mxu0 0.0
          %557 = vmatprep.subr.mxu0 0.0
          %558 = vmatpush1.msra.mxu0 0.0
          %559 = vmatprep.subr.mxu0 0.0
          %560 = vmatpush1.msra.mxu0 0.0
          %561 = vmatprep.subr.mxu0 0.0
          %562 = vmatpush1.msra.mxu0 0.0
          %563 = vmatprep.subr.mxu0 0.0
          %564 = vmatpush1.msra.mxu0 0.0
          %565 = vmatprep.subr.mxu0 0.0
          %566 = vmatpush1.msra.mxu0 0.0
          %567 = vmatprep.subr.mxu0 0.0
          %568 = vmatpush1.msra.mxu0 0.0
          %569 = vmatprep.subr.mxu0 0.0
          %570 = vmatpush1.msra.mxu0 0.0
          %571 = vmatprep.subr.mxu0 0.0
          %572 = vmatpush1.msra.mxu0 0.0
          %573 = vmatprep.subr.mxu0 0.0
          %574 = vmatpush1.msra.mxu0 0.0
          %575 = vmatprep.subr.mxu0 0.0
          %576 = vmatpush1.msra.mxu0 0.0
          %577 = vmatprep.subr.mxu0 0.0
          %v578 = vand.u32 %v291, 4294901760
          %579 = vmatpush1.msra.mxu0 %v578
          %580 = vmatprep.subr.mxu0 0.0
          %v581 = vand.u32 %v290, 4294901760
          %582 = vmatpush1.msra.mxu0 %v581
          %583 = vmatprep.subr.mxu0 0.0
          %v584 = vand.u32 %v289, 4294901760
          %585 = vmatpush1.msra.mxu0 %v584
          %586 = vmatprep.subr.mxu0 0.0
          %v587 = vand.u32 %v288, 4294901760
          %588 = vmatpush1.msra.mxu0 %v587
          %589 = vmatprep.subr.mxu0 0.0
          %590 = vmatpush2.msra.mxu0 0.0
          %591 = vmatprep.subr.mxu0 0.0
          %592 = vmatpush2.msra.mxu0 0.0
          %593 = vmatprep.subr.mxu0 0.0
          %594 = vmatpush2.msra.mxu0 0.0
          %595 = vmatprep.subr.mxu0 0.0
          %596 = vmatpush2.msra.mxu0 0.0
          %597 = vmatprep.subr.mxu0 0.0
          %598 = vmatpush2.msra.mxu0 0.0
          %599 = vmatprep.subr.mxu0 0.0
          %600 = vmatpush2.msra.mxu0 0.0
          %601 = vmatprep.subr.mxu0 0.0
          %602 = vmatpush2.msra.mxu0 0.0
          %603 = vmatprep.subr.mxu0 0.0
          %604 = vmatpush2.msra.mxu0 0.0
          %605 = vmatprep.subr.mxu0 0.0
          %606 = vmatpush2.msra.mxu0 0.0
          %607 = vmatprep.subr.mxu0 0.0
          %608 = vmatpush2.msra.mxu0 0.0
          %609 = vmatprep.subr.mxu0 0.0
          %610 = vmatpush2.msra.mxu0 0.0
          %611 = vmatprep.subr.mxu0 0.0
          %612 = vmatpush2.msra.mxu0 0.0
          %613 = vmatprep.subr.mxu0 0.0
          %614 = vmatpush2.msra.mxu0 0.0
          %615 = vmatprep.subr.mxu0 0.0
          %616 = vmatpush2.msra.mxu0 0.0
          %617 = vmatprep.subr.mxu0 0.0
          %618 = vmatpush2.msra.mxu0 0.0
          %619 = vmatprep.subr.mxu0 0.0
          %620 = vmatpush2.msra.mxu0 0.0
          %621 = vmatprep.mubr.f32.mxu0 0.0
          %v622 = vand.u32 %v301, 4294901760
          %v623 = vsub.f32 %v301, %v622
          %v624 = vand.u32 %v623, 4294901760
          %625 = vmatmul.mubr.f32.gmra.mxu0 %v624
          %v626 = vpop.f32.mrf.mxu0
          %v627 = vadd.f32 %v550, %v626
          %v628 = vpop.f32.mrf.mxu0
          %629 = vdwg.mxu0
          %630 = vmatprep.subr.mxu0 0.0
          %631 = vmatpush1.msra.mxu0 0.0
          %632 = vmatprep.subr.mxu0 0.0
          %633 = vmatpush1.msra.mxu0 0.0
          %634 = vmatprep.subr.mxu0 0.0
          %635 = vmatpush1.msra.mxu0 0.0
          %636 = vmatprep.subr.mxu0 0.0
          %637 = vmatpush1.msra.mxu0 0.0
          %638 = vmatprep.subr.mxu0 0.0
          %639 = vmatpush1.msra.mxu0 0.0
          %640 = vmatprep.subr.mxu0 0.0
          %641 = vmatpush1.msra.mxu0 0.0
          %642 = vmatprep.subr.mxu0 0.0
          %643 = vmatpush1.msra.mxu0 0.0
          %644 = vmatprep.subr.mxu0 0.0
          %645 = vmatpush1.msra.mxu0 0.0
          %646 = vmatprep.subr.mxu0 0.0
          %647 = vmatpush1.msra.mxu0 0.0
          %648 = vmatprep.subr.mxu0 0.0
          %649 = vmatpush1.msra.mxu0 0.0
          %650 = vmatprep.subr.mxu0 0.0
          %651 = vmatpush1.msra.mxu0 0.0
          %652 = vmatprep.subr.mxu0 0.0
          %653 = vmatpush1.msra.mxu0 0.0
          %654 = vmatprep.subr.mxu0 0.0
          %v655 = vand.u32 %v291, 4294901760
          %v656 = vsub.f32 %v291, %v655
          %v657 = vand.u32 %v656, 4294901760
          %658 = vmatpush1.msra.mxu0 %v657
          %659 = vmatprep.subr.mxu0 0.0
          %v660 = vand.u32 %v290, 4294901760
          %v661 = vsub.f32 %v290, %v660
          %v662 = vand.u32 %v661, 4294901760
          %663 = vmatpush1.msra.mxu0 %v662
          %664 = vmatprep.subr.mxu0 0.0
          %v665 = vand.u32 %v289, 4294901760
          %v666 = vsub.f32 %v289, %v665
          %v667 = vand.u32 %v666, 4294901760
          %668 = vmatpush1.msra.mxu0 %v667
          %669 = vmatprep.subr.mxu0 0.0
          %v670 = vand.u32 %v288, 4294901760
          %v671 = vsub.f32 %v288, %v670
          %v672 = vand.u32 %v671, 4294901760
          %673 = vmatpush1.msra.mxu0 %v672
          %674 = vmatprep.subr.mxu0 0.0
          %675 = vmatpush2.msra.mxu0 0.0
          %676 = vmatprep.subr.mxu0 0.0
          %677 = vmatpush2.msra.mxu0 0.0
          %678 = vmatprep.subr.mxu0 0.0
          %679 = vmatpush2.msra.mxu0 0.0
          %680 = vmatprep.subr.mxu0 0.0
          %681 = vmatpush2.msra.mxu0 0.0
          %682 = vmatprep.subr.mxu0 0.0
          %683 = vmatpush2.msra.mxu0 0.0
          %684 = vmatprep.subr.mxu0 0.0
          %685 = vmatpush2.msra.mxu0 0.0
          %686 = vmatprep.subr.mxu0 0.0
          %687 = vmatpush2.msra.mxu0 0.0
          %688 = vmatprep.subr.mxu0 0.0
          %689 = vmatpush2.msra.mxu0 0.0
          %690 = vmatprep.subr.mxu0 0.0
          %691 = vmatpush2.msra.mxu0 0.0
          %692 = vmatprep.subr.mxu0 0.0
          %693 = vmatpush2.msra.mxu0 0.0
          %694 = vmatprep.subr.mxu0 0.0
          %695 = vmatpush2.msra.mxu0 0.0
          %696 = vmatprep.subr.mxu0 0.0
          %697 = vmatpush2.msra.mxu0 0.0
          %698 = vmatprep.subr.mxu0 0.0
          %699 = vmatpush2.msra.mxu0 0.0
          %700 = vmatprep.subr.mxu0 0.0
          %701 = vmatpush2.msra.mxu0 0.0
          %702 = vmatprep.subr.mxu0 0.0
          %703 = vmatpush2.msra.mxu0 0.0
          %704 = vmatprep.subr.mxu0 0.0
          %705 = vmatpush2.msra.mxu0 0.0
          %706 = vmatprep.mubr.f32.mxu0 0.0
          %v707 = vand.u32 %v301, 4294901760
          %708 = vmatmul.mubr.f32.gmra.mxu0 %v707
          %v709 = vpop.f32.mrf.mxu0
          %v710 = vadd.f32 %v627, %v709
          %v711 = vpop.f32.mrf.mxu0
          %712 = vdwg.mxu0
          %713 = vmatprep.subr.mxu0 0.0
          %714 = vmatpush1.msra.mxu0 0.0
          %715 = vmatprep.subr.mxu0 0.0
          %716 = vmatpush1.msra.mxu0 0.0
          %717 = vmatprep.subr.mxu0 0.0
          %718 = vmatpush1.msra.mxu0 0.0
          %719 = vmatprep.subr.mxu0 0.0
          %720 = vmatpush1.msra.mxu0 0.0
          %721 = vmatprep.subr.mxu0 0.0
          %722 = vmatpush1.msra.mxu0 0.0
          %723 = vmatprep.subr.mxu0 0.0
          %724 = vmatpush1.msra.mxu0 0.0
          %725 = vmatprep.subr.mxu0 0.0
          %726 = vmatpush1.msra.mxu0 0.0
          %727 = vmatprep.subr.mxu0 0.0
          %728 = vmatpush1.msra.mxu0 0.0
          %729 = vmatprep.subr.mxu0 0.0
          %730 = vmatpush1.msra.mxu0 0.0
          %731 = vmatprep.subr.mxu0 0.0
          %732 = vmatpush1.msra.mxu0 0.0
          %733 = vmatprep.subr.mxu0 0.0
          %734 = vmatpush1.msra.mxu0 0.0
          %735 = vmatprep.subr.mxu0 0.0
          %736 = vmatpush1.msra.mxu0 0.0
          %737 = vmatprep.subr.mxu0 0.0
          %v738 = vand.u32 %v291, 4294901760
          %739 = vmatpush1.msra.mxu0 %v738
          %740 = vmatprep.subr.mxu0 0.0
          %v741 = vand.u32 %v290, 4294901760
          %742 = vmatpush1.msra.mxu0 %v741
          %743 = vmatprep.subr.mxu0 0.0
          %v744 = vand.u32 %v289, 4294901760
          %745 = vmatpush1.msra.mxu0 %v744
          %746 = vmatprep.subr.mxu0 0.0
          %v747 = vand.u32 %v288, 4294901760
          %748 = vmatpush1.msra.mxu0 %v747
          %749 = vmatprep.subr.mxu0 0.0
          %750 = vmatpush2.msra.mxu0 0.0
          %751 = vmatprep.subr.mxu0 0.0
          %752 = vmatpush2.msra.mxu0 0.0
          %753 = vmatprep.subr.mxu0 0.0
          %754 = vmatpush2.msra.mxu0 0.0
          %755 = vmatprep.subr.mxu0 0.0
          %756 = vmatpush2.msra.mxu0 0.0
          %757 = vmatprep.subr.mxu0 0.0
          %758 = vmatpush2.msra.mxu0 0.0
          %759 = vmatprep.subr.mxu0 0.0
          %760 = vmatpush2.msra.mxu0 0.0
          %761 = vmatprep.subr.mxu0 0.0
          %762 = vmatpush2.msra.mxu0 0.0
          %763 = vmatprep.subr.mxu0 0.0
          %764 = vmatpush2.msra.mxu0 0.0
          %765 = vmatprep.subr.mxu0 0.0
          %766 = vmatpush2.msra.mxu0 0.0
          %767 = vmatprep.subr.mxu0 0.0
          %768 = vmatpush2.msra.mxu0 0.0
          %769 = vmatprep.subr.mxu0 0.0
          %770 = vmatpush2.msra.mxu0 0.0
          %771 = vmatprep.subr.mxu0 0.0
          %772 = vmatpush2.msra.mxu0 0.0
          %773 = vmatprep.subr.mxu0 0.0
          %774 = vmatpush2.msra.mxu0 0.0
          %775 = vmatprep.subr.mxu0 0.0
          %776 = vmatpush2.msra.mxu0 0.0
          %777 = vmatprep.subr.mxu0 0.0
          %778 = vmatpush2.msra.mxu0 0.0
          %779 = vmatprep.subr.mxu0 0.0
          %780 = vmatpush2.msra.mxu0 0.0
          %781 = vmatprep.mubr.f32.mxu0 0.0
          %v782 = vand.u32 %v301, 4294901760
          %783 = vmatmul.mubr.f32.gmra.mxu0 %v782
          %v784 = vpop.f32.mrf.mxu0
          %v785 = vadd.f32 %v710, %v784
          %v786 = vpop.f32.mrf.mxu0
          %787 = vdwg.mxu0
          %vm788 = vcmask 785408
          %789 = vst.msk [vmem:[#allocation2] sm:$0xff] %vm788, %v785
        $region56: #{mha_pallas.1} parent=39 // pred_fallthru
          _
        %s790 = smul.u32 %s28, 8
        %v791 = vlaneseq
        %v792 = vshrl.u32 %v791, 7
        %v793 = vstv %s790
        %v794 = vadd.s32 %v793, %v792
        %v795 = vlaneseq
        %v796 = vand.u32 %v795, 127
        %vm797 = vcmp.le.s32.totalorder %v796, %v794
        %s798 = scalar_lea.vmem [#allocation2], %s790
        %v799 = vld [vmem:[%s798] sm:$0xff]
        %v800 = vld [vmem:[#allocation2] sm:$0xff]
        %802 = vrot.lane.b32.xlu0 %v800, 96
        %v803 = vpop.permute.xlu0 %802
        %vm804 = vcmask 64512
        %v806 = vsel %vm804, %v799, 0
        %v808 = vsel %vm804, %v803, 0
        %810 = vmatprep.subr.mxu0 0.0
        %811 = vmatpush1.xpose.msra.mxu0 0.0
        %812 = vmatprep.subr.mxu0 0.0
        %813 = vmatpush1.xpose.msra.mxu0 0.0
        %814 = vmatprep.subr.mxu0 0.0
        %815 = vmatpush1.xpose.msra.mxu0 0.0
        %816 = vmatprep.subr.mxu0 0.0
        %817 = vmatpush1.xpose.msra.mxu0 0.0
        %818 = vmatprep.subr.mxu0 0.0
        %819 = vmatpush1.xpose.msra.mxu0 0.0
        %820 = vmatprep.subr.mxu0 0.0
        %821 = vmatpush1.xpose.msra.mxu0 0.0
        %822 = vmatprep.subr.mxu0 0.0
        %823 = vmatpush1.xpose.msra.mxu0 0.0
        %824 = vmatprep.subr.mxu0 0.0
        %825 = vmatpush1.xpose.msra.mxu0 0.0
        %826 = vmatprep.subr.mxu0 0.0
        %827 = vmatpush1.xpose.msra.mxu0 0.0
        %828 = vmatprep.subr.mxu0 0.0
        %829 = vmatpush1.xpose.msra.mxu0 0.0
        %830 = vmatprep.subr.mxu0 0.0
        %831 = vmatpush1.xpose.msra.mxu0 0.0
        %832 = vmatprep.subr.mxu0 0.0
        %833 = vmatpush1.xpose.msra.mxu0 0.0
        %834 = vmatprep.subr.mxu0 0.0
        %835 = vmatpush1.xpose.msra.mxu0 0.0
        %836 = vmatprep.subr.mxu0 0.0
        %837 = vmatpush1.xpose.msra.mxu0 0.0
        %838 = vmatprep.subr.mxu0 0.0
        %839 = vmatpush1.xpose.msra.mxu0 0.0
        %840 = vmatprep.subr.mxu0 0.0
        %v841 = vand.u32 %v808, 4294901760
        %842 = vmatpush1.xpose.msra.mxu0 %v841
        %843 = vmatprep.subr.mxu0 0.0
        %844 = vmatpush2.xpose.msra.mxu0 0.0
        %845 = vmatprep.subr.mxu0 0.0
        %846 = vmatpush2.xpose.msra.mxu0 0.0
        %847 = vmatprep.subr.mxu0 0.0
        %848 = vmatpush2.xpose.msra.mxu0 0.0
        %849 = vmatprep.subr.mxu0 0.0
        %850 = vmatpush2.xpose.msra.mxu0 0.0
        %851 = vmatprep.subr.mxu0 0.0
        %852 = vmatpush2.xpose.msra.mxu0 0.0
        %853 = vmatprep.subr.mxu0 0.0
        %854 = vmatpush2.xpose.msra.mxu0 0.0
        %855 = vmatprep.subr.mxu0 0.0
        %856 = vmatpush2.xpose.msra.mxu0 0.0
        %857 = vmatprep.subr.mxu0 0.0
        %858 = vmatpush2.xpose.msra.mxu0 0.0
        %859 = vmatprep.subr.mxu0 0.0
        %860 = vmatpush2.xpose.msra.mxu0 0.0
        %861 = vmatprep.subr.mxu0 0.0
        %862 = vmatpush2.xpose.msra.mxu0 0.0
        %863 = vmatprep.subr.mxu0 0.0
        %864 = vmatpush2.xpose.msra.mxu0 0.0
        %865 = vmatprep.subr.mxu0 0.0
        %866 = vmatpush2.xpose.msra.mxu0 0.0
        %867 = vmatprep.subr.mxu0 0.0
        %868 = vmatpush2.xpose.msra.mxu0 0.0
        %869 = vmatprep.subr.mxu0 0.0
        %870 = vmatpush2.xpose.msra.mxu0 0.0
        %871 = vmatprep.subr.mxu0 0.0
        %872 = vmatpush2.xpose.msra.mxu0 0.0
        %873 = vmatprep.subr.mxu0 0.0
        %874 = vmatpush2.xpose.msra.mxu0 0.0
        %875 = vmatprep.mubr.f32.mxu0 0.0
        %v876 = vand.u32 %v806, 4294901760
        %v877 = vsub.f32 %v806, %v876
        %v878 = vand.u32 %v877, 4294901760
        %v879 = vsub.f32 %v877, %v878
        %v880 = vand.u32 %v879, 4294901760
        %881 = vmatmul.mubr.f32.gmra.mxu0 %v880
        %v882 = vpop.f32.mrf.mxu0
        %v883 = vadd.f32 0.0, %v882
        %v884 = vpop.f32.mrf.mxu0
        %885 = vdwg.mxu0
        %886 = vmatprep.subr.mxu0 0.0
        %887 = vmatpush1.xpose.msra.mxu0 0.0
        %888 = vmatprep.subr.mxu0 0.0
        %889 = vmatpush1.xpose.msra.mxu0 0.0
        %890 = vmatprep.subr.mxu0 0.0
        %891 = vmatpush1.xpose.msra.mxu0 0.0
        %892 = vmatprep.subr.mxu0 0.0
        %893 = vmatpush1.xpose.msra.mxu0 0.0
        %894 = vmatprep.subr.mxu0 0.0
        %895 = vmatpush1.xpose.msra.mxu0 0.0
        %896 = vmatprep.subr.mxu0 0.0
        %897 = vmatpush1.xpose.msra.mxu0 0.0
        %898 = vmatprep.subr.mxu0 0.0
        %899 = vmatpush1.xpose.msra.mxu0 0.0
        %900 = vmatprep.subr.mxu0 0.0
        %901 = vmatpush1.xpose.msra.mxu0 0.0
        %902 = vmatprep.subr.mxu0 0.0
        %903 = vmatpush1.xpose.msra.mxu0 0.0
        %904 = vmatprep.subr.mxu0 0.0
        %905 = vmatpush1.xpose.msra.mxu0 0.0
        %906 = vmatprep.subr.mxu0 0.0
        %907 = vmatpush1.xpose.msra.mxu0 0.0
        %908 = vmatprep.subr.mxu0 0.0
        %909 = vmatpush1.xpose.msra.mxu0 0.0
        %910 = vmatprep.subr.mxu0 0.0
        %911 = vmatpush1.xpose.msra.mxu0 0.0
        %912 = vmatprep.subr.mxu0 0.0
        %913 = vmatpush1.xpose.msra.mxu0 0.0
        %914 = vmatprep.subr.mxu0 0.0
        %915 = vmatpush1.xpose.msra.mxu0 0.0
        %916 = vmatprep.subr.mxu0 0.0
        %v917 = vand.u32 %v808, 4294901760
        %v918 = vsub.f32 %v808, %v917
        %v919 = vand.u32 %v918, 4294901760
        %v920 = vsub.f32 %v918, %v919
        %v921 = vand.u32 %v920, 4294901760
        %922 = vmatpush1.xpose.msra.mxu0 %v921
        %923 = vmatprep.subr.mxu0 0.0
        %924 = vmatpush2.xpose.msra.mxu0 0.0
        %925 = vmatprep.subr.mxu0 0.0
        %926 = vmatpush2.xpose.msra.mxu0 0.0
        %927 = vmatprep.subr.mxu0 0.0
        %928 = vmatpush2.xpose.msra.mxu0 0.0
        %929 = vmatprep.subr.mxu0 0.0
        %930 = vmatpush2.xpose.msra.mxu0 0.0
        %931 = vmatprep.subr.mxu0 0.0
        %932 = vmatpush2.xpose.msra.mxu0 0.0
        %933 = vmatprep.subr.mxu0 0.0
        %934 = vmatpush2.xpose.msra.mxu0 0.0
        %935 = vmatprep.subr.mxu0 0.0
        %936 = vmatpush2.xpose.msra.mxu0 0.0
        %937 = vmatprep.subr.mxu0 0.0
        %938 = vmatpush2.xpose.msra.mxu0 0.0
        %939 = vmatprep.subr.mxu0 0.0
        %940 = vmatpush2.xpose.msra.mxu0 0.0
        %941 = vmatprep.subr.mxu0 0.0
        %942 = vmatpush2.xpose.msra.mxu0 0.0
        %943 = vmatprep.subr.mxu0 0.0
        %944 = vmatpush2.xpose.msra.mxu0 0.0
        %945 = vmatprep.subr.mxu0 0.0
        %946 = vmatpush2.xpose.msra.mxu0 0.0
        %947 = vmatprep.subr.mxu0 0.0
        %948 = vmatpush2.xpose.msra.mxu0 0.0
        %949 = vmatprep.subr.mxu0 0.0
        %950 = vmatpush2.xpose.msra.mxu0 0.0
        %951 = vmatprep.subr.mxu0 0.0
        %952 = vmatpush2.xpose.msra.mxu0 0.0
        %953 = vmatprep.subr.mxu0 0.0
        %954 = vmatpush2.xpose.msra.mxu0 0.0
        %955 = vmatprep.mubr.f32.mxu0 0.0
        %v956 = vand.u32 %v806, 4294901760
        %957 = vmatmul.mubr.f32.gmra.mxu0 %v956
        %v958 = vpop.f32.mrf.mxu0
        %v959 = vadd.f32 %v883, %v958
        %v960 = vpop.f32.mrf.mxu0
        %961 = vdwg.mxu0
        %962 = vmatprep.subr.mxu0 0.0
        %963 = vmatpush1.xpose.msra.mxu0 0.0
        %964 = vmatprep.subr.mxu0 0.0
        %965 = vmatpush1.xpose.msra.mxu0 0.0
        %966 = vmatprep.subr.mxu0 0.0
        %967 = vmatpush1.xpose.msra.mxu0 0.0
        %968 = vmatprep.subr.mxu0 0.0
        %969 = vmatpush1.xpose.msra.mxu0 0.0
        %970 = vmatprep.subr.mxu0 0.0
        %971 = vmatpush1.xpose.msra.mxu0 0.0
        %972 = vmatprep.subr.mxu0 0.0
        %973 = vmatpush1.xpose.msra.mxu0 0.0
        %974 = vmatprep.subr.mxu0 0.0
        %975 = vmatpush1.xpose.msra.mxu0 0.0
        %976 = vmatprep.subr.mxu0 0.0
        %977 = vmatpush1.xpose.msra.mxu0 0.0
        %978 = vmatprep.subr.mxu0 0.0
        %979 = vmatpush1.xpose.msra.mxu0 0.0
        %980 = vmatprep.subr.mxu0 0.0
        %981 = vmatpush1.xpose.msra.mxu0 0.0
        %982 = vmatprep.subr.mxu0 0.0
        %983 = vmatpush1.xpose.msra.mxu0 0.0
        %984 = vmatprep.subr.mxu0 0.0
        %985 = vmatpush1.xpose.msra.mxu0 0.0
        %986 = vmatprep.subr.mxu0 0.0
        %987 = vmatpush1.xpose.msra.mxu0 0.0
        %988 = vmatprep.subr.mxu0 0.0
        %989 = vmatpush1.xpose.msra.mxu0 0.0
        %990 = vmatprep.subr.mxu0 0.0
        %991 = vmatpush1.xpose.msra.mxu0 0.0
        %992 = vmatprep.subr.mxu0 0.0
        %v993 = vand.u32 %v808, 4294901760
        %v994 = vsub.f32 %v808, %v993
        %995 = vmatpush1.xpose.msra.mxu0 %v994
        %996 = vmatprep.subr.mxu0 0.0
        %997 = vmatpush2.xpose.msra.mxu0 0.0
        %998 = vmatprep.subr.mxu0 0.0
        %999 = vmatpush2.xpose.msra.mxu0 0.0
        %1000 = vmatprep.subr.mxu0 0.0
        %1001 = vmatpush2.xpose.msra.mxu0 0.0
        %1002 = vmatprep.subr.mxu0 0.0
        %1003 = vmatpush2.xpose.msra.mxu0 0.0
        %1004 = vmatprep.subr.mxu0 0.0
        %1005 = vmatpush2.xpose.msra.mxu0 0.0
        %1006 = vmatprep.subr.mxu0 0.0
        %1007 = vmatpush2.xpose.msra.mxu0 0.0
        %1008 = vmatprep.subr.mxu0 0.0
        %1009 = vmatpush2.xpose.msra.mxu0 0.0
        %1010 = vmatprep.subr.mxu0 0.0
        %1011 = vmatpush2.xpose.msra.mxu0 0.0
        %1012 = vmatprep.subr.mxu0 0.0
        %1013 = vmatpush2.xpose.msra.mxu0 0.0
        %1014 = vmatprep.subr.mxu0 0.0
        %1015 = vmatpush2.xpose.msra.mxu0 0.0
        %1016 = vmatprep.subr.mxu0 0.0
        %1017 = vmatpush2.xpose.msra.mxu0 0.0
        %1018 = vmatprep.subr.mxu0 0.0
        %1019 = vmatpush2.xpose.msra.mxu0 0.0
        %1020 = vmatprep.subr.mxu0 0.0
        %1021 = vmatpush2.xpose.msra.mxu0 0.0
        %1022 = vmatprep.subr.mxu0 0.0
        %1023 = vmatpush2.xpose.msra.mxu0 0.0
        %1024 = vmatprep.subr.mxu0 0.0
        %1025 = vmatpush2.xpose.msra.mxu0 0.0
        %1026 = vmatprep.subr.mxu0 0.0
        %1027 = vmatpush2.xpose.msra.mxu0 0.0
        %1028 = vmatprep.mubr.f32.mxu0 0.0
        %v1029 = vand.u32 %v806, 4294901760
        %v1030 = vsub.f32 %v806, %v1029
        %1031 = vmatmul.mubr.f32.gmra.mxu0 %v1030
        %v1032 = vpop.f32.mrf.mxu0
        %v1033 = vadd.f32 %v959, %v1032
        %v1034 = vpop.f32.mrf.mxu0
        %1035 = vdwg.mxu0
        %1036 = vmatprep.subr.mxu0 0.0
        %1037 = vmatpush1.xpose.msra.mxu0 0.0
        %1038 = vmatprep.subr.mxu0 0.0
        %1039 = vmatpush1.xpose.msra.mxu0 0.0
        %1040 = vmatprep.subr.mxu0 0.0
        %1041 = vmatpush1.xpose.msra.mxu0 0.0
        %1042 = vmatprep.subr.mxu0 0.0
        %1043 = vmatpush1.xpose.msra.mxu0 0.0
        %1044 = vmatprep.subr.mxu0 0.0
        %1045 = vmatpush1.xpose.msra.mxu0 0.0
        %1046 = vmatprep.subr.mxu0 0.0
        %1047 = vmatpush1.xpose.msra.mxu0 0.0
        %1048 = vmatprep.subr.mxu0 0.0
        %1049 = vmatpush1.xpose.msra.mxu0 0.0
        %1050 = vmatprep.subr.mxu0 0.0
        %1051 = vmatpush1.xpose.msra.mxu0 0.0
        %1052 = vmatprep.subr.mxu0 0.0
        %1053 = vmatpush1.xpose.msra.mxu0 0.0
        %1054 = vmatprep.subr.mxu0 0.0
        %1055 = vmatpush1.xpose.msra.mxu0 0.0
        %1056 = vmatprep.subr.mxu0 0.0
        %1057 = vmatpush1.xpose.msra.mxu0 0.0
        %1058 = vmatprep.subr.mxu0 0.0
        %1059 = vmatpush1.xpose.msra.mxu0 0.0
        %1060 = vmatprep.subr.mxu0 0.0
        %1061 = vmatpush1.xpose.msra.mxu0 0.0
        %1062 = vmatprep.subr.mxu0 0.0
        %1063 = vmatpush1.xpose.msra.mxu0 0.0
        %1064 = vmatprep.subr.mxu0 0.0
        %1065 = vmatpush1.xpose.msra.mxu0 0.0
        %1066 = vmatprep.subr.mxu0 0.0
        %v1067 = vand.u32 %v808, 4294901760
        %1068 = vmatpush1.xpose.msra.mxu0 %v1067
        %1069 = vmatprep.subr.mxu0 0.0
        %1070 = vmatpush2.xpose.msra.mxu0 0.0
        %1071 = vmatprep.subr.mxu0 0.0
        %1072 = vmatpush2.xpose.msra.mxu0 0.0
        %1073 = vmatprep.subr.mxu0 0.0
        %1074 = vmatpush2.xpose.msra.mxu0 0.0
        %1075 = vmatprep.subr.mxu0 0.0
        %1076 = vmatpush2.xpose.msra.mxu0 0.0
        %1077 = vmatprep.subr.mxu0 0.0
        %1078 = vmatpush2.xpose.msra.mxu0 0.0
        %1079 = vmatprep.subr.mxu0 0.0
        %1080 = vmatpush2.xpose.msra.mxu0 0.0
        %1081 = vmatprep.subr.mxu0 0.0
        %1082 = vmatpush2.xpose.msra.mxu0 0.0
        %1083 = vmatprep.subr.mxu0 0.0
        %1084 = vmatpush2.xpose.msra.mxu0 0.0
        %1085 = vmatprep.subr.mxu0 0.0
        %1086 = vmatpush2.xpose.msra.mxu0 0.0
        %1087 = vmatprep.subr.mxu0 0.0
        %1088 = vmatpush2.xpose.msra.mxu0 0.0
        %1089 = vmatprep.subr.mxu0 0.0
        %1090 = vmatpush2.xpose.msra.mxu0 0.0
        %1091 = vmatprep.subr.mxu0 0.0
        %1092 = vmatpush2.xpose.msra.mxu0 0.0
        %1093 = vmatprep.subr.mxu0 0.0
        %1094 = vmatpush2.xpose.msra.mxu0 0.0
        %1095 = vmatprep.subr.mxu0 0.0
        %1096 = vmatpush2.xpose.msra.mxu0 0.0
        %1097 = vmatprep.subr.mxu0 0.0
        %1098 = vmatpush2.xpose.msra.mxu0 0.0
        %1099 = vmatprep.subr.mxu0 0.0
        %1100 = vmatpush2.xpose.msra.mxu0 0.0
        %1101 = vmatprep.mubr.f32.mxu0 0.0
        %v1102 = vand.u32 %v806, 4294901760
        %v1103 = vsub.f32 %v806, %v1102
        %v1104 = vand.u32 %v1103, 4294901760
        %1105 = vmatmul.mubr.f32.gmra.mxu0 %v1104
        %v1106 = vpop.f32.mrf.mxu0
        %v1107 = vadd.f32 %v1033, %v1106
        %v1108 = vpop.f32.mrf.mxu0
        %1109 = vdwg.mxu0
        %1110 = vmatprep.subr.mxu0 0.0
        %1111 = vmatpush1.xpose.msra.mxu0 0.0
        %1112 = vmatprep.subr.mxu0 0.0
        %1113 = vmatpush1.xpose.msra.mxu0 0.0
        %1114 = vmatprep.subr.mxu0 0.0
        %1115 = vmatpush1.xpose.msra.mxu0 0.0
        %1116 = vmatprep.subr.mxu0 0.0
        %1117 = vmatpush1.xpose.msra.mxu0 0.0
        %1118 = vmatprep.subr.mxu0 0.0
        %1119 = vmatpush1.xpose.msra.mxu0 0.0
        %1120 = vmatprep.subr.mxu0 0.0
        %1121 = vmatpush1.xpose.msra.mxu0 0.0
        %1122 = vmatprep.subr.mxu0 0.0
        %1123 = vmatpush1.xpose.msra.mxu0 0.0
        %1124 = vmatprep.subr.mxu0 0.0
        %1125 = vmatpush1.xpose.msra.mxu0 0.0
        %1126 = vmatprep.subr.mxu0 0.0
        %1127 = vmatpush1.xpose.msra.mxu0 0.0
        %1128 = vmatprep.subr.mxu0 0.0
        %1129 = vmatpush1.xpose.msra.mxu0 0.0
        %1130 = vmatprep.subr.mxu0 0.0
        %1131 = vmatpush1.xpose.msra.mxu0 0.0
        %1132 = vmatprep.subr.mxu0 0.0
        %1133 = vmatpush1.xpose.msra.mxu0 0.0
        %1134 = vmatprep.subr.mxu0 0.0
        %1135 = vmatpush1.xpose.msra.mxu0 0.0
        %1136 = vmatprep.subr.mxu0 0.0
        %1137 = vmatpush1.xpose.msra.mxu0 0.0
        %1138 = vmatprep.subr.mxu0 0.0
        %1139 = vmatpush1.xpose.msra.mxu0 0.0
        %1140 = vmatprep.subr.mxu0 0.0
        %v1141 = vand.u32 %v808, 4294901760
        %v1142 = vsub.f32 %v808, %v1141
        %v1143 = vand.u32 %v1142, 4294901760
        %1144 = vmatpush1.xpose.msra.mxu0 %v1143
        %1145 = vmatprep.subr.mxu0 0.0
        %1146 = vmatpush2.xpose.msra.mxu0 0.0
        %1147 = vmatprep.subr.mxu0 0.0
        %1148 = vmatpush2.xpose.msra.mxu0 0.0
        %1149 = vmatprep.subr.mxu0 0.0
        %1150 = vmatpush2.xpose.msra.mxu0 0.0
        %1151 = vmatprep.subr.mxu0 0.0
        %1152 = vmatpush2.xpose.msra.mxu0 0.0
        %1153 = vmatprep.subr.mxu0 0.0
        %1154 = vmatpush2.xpose.msra.mxu0 0.0
        %1155 = vmatprep.subr.mxu0 0.0
        %1156 = vmatpush2.xpose.msra.mxu0 0.0
        %1157 = vmatprep.subr.mxu0 0.0
        %1158 = vmatpush2.xpose.msra.mxu0 0.0
        %1159 = vmatprep.subr.mxu0 0.0
        %1160 = vmatpush2.xpose.msra.mxu0 0.0
        %1161 = vmatprep.subr.mxu0 0.0
        %1162 = vmatpush2.xpose.msra.mxu0 0.0
        %1163 = vmatprep.subr.mxu0 0.0
        %1164 = vmatpush2.xpose.msra.mxu0 0.0
        %1165 = vmatprep.subr.mxu0 0.0
        %1166 = vmatpush2.xpose.msra.mxu0 0.0
        %1167 = vmatprep.subr.mxu0 0.0
        %1168 = vmatpush2.xpose.msra.mxu0 0.0
        %1169 = vmatprep.subr.mxu0 0.0
        %1170 = vmatpush2.xpose.msra.mxu0 0.0
        %1171 = vmatprep.subr.mxu0 0.0
        %1172 = vmatpush2.xpose.msra.mxu0 0.0
        %1173 = vmatprep.subr.mxu0 0.0
        %1174 = vmatpush2.xpose.msra.mxu0 0.0
        %1175 = vmatprep.subr.mxu0 0.0
        %1176 = vmatpush2.xpose.msra.mxu0 0.0
        %1177 = vmatprep.mubr.f32.mxu0 0.0
        %v1178 = vand.u32 %v806, 4294901760
        %1179 = vmatmul.mubr.f32.gmra.mxu0 %v1178
        %v1180 = vpop.f32.mrf.mxu0
        %v1181 = vadd.f32 %v1107, %v1180
        %v1182 = vpop.f32.mrf.mxu0
        %1183 = vdwg.mxu0
        %1184 = vmatprep.subr.mxu0 0.0
        %1185 = vmatpush1.xpose.msra.mxu0 0.0
        %1186 = vmatprep.subr.mxu0 0.0
        %1187 = vmatpush1.xpose.msra.mxu0 0.0
        %1188 = vmatprep.subr.mxu0 0.0
        %1189 = vmatpush1.xpose.msra.mxu0 0.0
        %1190 = vmatprep.subr.mxu0 0.0
        %1191 = vmatpush1.xpose.msra.mxu0 0.0
        %1192 = vmatprep.subr.mxu0 0.0
        %1193 = vmatpush1.xpose.msra.mxu0 0.0
        %1194 = vmatprep.subr.mxu0 0.0
        %1195 = vmatpush1.xpose.msra.mxu0 0.0
        %1196 = vmatprep.subr.mxu0 0.0
        %1197 = vmatpush1.xpose.msra.mxu0 0.0
        %1198 = vmatprep.subr.mxu0 0.0
        %1199 = vmatpush1.xpose.msra.mxu0 0.0
        %1200 = vmatprep.subr.mxu0 0.0
        %1201 = vmatpush1.xpose.msra.mxu0 0.0
        %1202 = vmatprep.subr.mxu0 0.0
        %1203 = vmatpush1.xpose.msra.mxu0 0.0
        %1204 = vmatprep.subr.mxu0 0.0
        %1205 = vmatpush1.xpose.msra.mxu0 0.0
        %1206 = vmatprep.subr.mxu0 0.0
        %1207 = vmatpush1.xpose.msra.mxu0 0.0
        %1208 = vmatprep.subr.mxu0 0.0
        %1209 = vmatpush1.xpose.msra.mxu0 0.0
        %1210 = vmatprep.subr.mxu0 0.0
        %1211 = vmatpush1.xpose.msra.mxu0 0.0
        %1212 = vmatprep.subr.mxu0 0.0
        %1213 = vmatpush1.xpose.msra.mxu0 0.0
        %1214 = vmatprep.subr.mxu0 0.0
        %v1215 = vand.u32 %v808, 4294901760
        %1216 = vmatpush1.xpose.msra.mxu0 %v1215
        %1217 = vmatprep.subr.mxu0 0.0
        %1218 = vmatpush2.xpose.msra.mxu0 0.0
        %1219 = vmatprep.subr.mxu0 0.0
        %1220 = vmatpush2.xpose.msra.mxu0 0.0
        %1221 = vmatprep.subr.mxu0 0.0
        %1222 = vmatpush2.xpose.msra.mxu0 0.0
        %1223 = vmatprep.subr.mxu0 0.0
        %1224 = vmatpush2.xpose.msra.mxu0 0.0
        %1225 = vmatprep.subr.mxu0 0.0
        %1226 = vmatpush2.xpose.msra.mxu0 0.0
        %1227 = vmatprep.subr.mxu0 0.0
        %1228 = vmatpush2.xpose.msra.mxu0 0.0
        %1229 = vmatprep.subr.mxu0 0.0
        %1230 = vmatpush2.xpose.msra.mxu0 0.0
        %1231 = vmatprep.subr.mxu0 0.0
        %1232 = vmatpush2.xpose.msra.mxu0 0.0
        %1233 = vmatprep.subr.mxu0 0.0
        %1234 = vmatpush2.xpose.msra.mxu0 0.0
        %1235 = vmatprep.subr.mxu0 0.0
        %1236 = vmatpush2.xpose.msra.mxu0 0.0
        %1237 = vmatprep.subr.mxu0 0.0
        %1238 = vmatpush2.xpose.msra.mxu0 0.0
        %1239 = vmatprep.subr.mxu0 0.0
        %1240 = vmatpush2.xpose.msra.mxu0 0.0
        %1241 = vmatprep.subr.mxu0 0.0
        %1242 = vmatpush2.xpose.msra.mxu0 0.0
        %1243 = vmatprep.subr.mxu0 0.0
        %1244 = vmatpush2.xpose.msra.mxu0 0.0
        %1245 = vmatprep.subr.mxu0 0.0
        %1246 = vmatpush2.xpose.msra.mxu0 0.0
        %1247 = vmatprep.subr.mxu0 0.0
        %1248 = vmatpush2.xpose.msra.mxu0 0.0
        %1249 = vmatprep.mubr.f32.mxu0 0.0
        %v1250 = vand.u32 %v806, 4294901760
        %1251 = vmatmul.mubr.f32.gmra.mxu0 %v1250
        %v1252 = vpop.f32.mrf.mxu0
        %v1253 = vadd.f32 %v1181, %v1252
        %v1254 = vpop.f32.mrf.mxu0
        %1255 = vdwg.mxu0
        %v1256 = vmul.f32 %v1253, 0.35355338
        %v1257 = vsel %vm797, %v1256, -inf
        %v1258 = vsel %vm804, %v1257, -inf
        %1259 = vmax.xlane.f32.xlu0 %v1258
        %v1260 = vpop.xlane.xlu0 %1259
        %v1261 = vsub.f32 %v1257, %v1260
        %v1262 = vmul.f32 %v1261, 1.442695
        %v1263 = vpow.pop %v1262
        %v1264 = vsel %vm804, %v1263, 0.0
        %1265 = vadd.xlane.f32.xlu0 %v1264
        %v1266 = vpop.xlane.xlu0 %1265
        %1267 = vrot.lane.b32.xlu0 %v800, 64
        %v1268 = vpop.permute.xlu0 %1267
        %v1271 = vsel %vm804, %v1263, 0
        %1273 = vmatprep.subr.mxu0 0.0
        %1274 = vmatpush1.msra.mxu0 0.0
        %1275 = vmatprep.subr.mxu0 0.0
        %1276 = vmatpush1.msra.mxu0 0.0
        %1277 = vmatprep.subr.mxu0 0.0
        %1278 = vmatpush1.msra.mxu0 0.0
        %1279 = vmatprep.subr.mxu0 0.0
        %1280 = vmatpush1.msra.mxu0 0.0
        %1281 = vmatprep.subr.mxu0 0.0
        %1282 = vmatpush1.msra.mxu0 0.0
        %1283 = vmatprep.subr.mxu0 0.0
        %1284 = vmatpush1.msra.mxu0 0.0
        %1285 = vmatprep.subr.mxu0 0.0
        %1286 = vmatpush1.msra.mxu0 0.0
        %1287 = vmatprep.subr.mxu0 0.0
        %1288 = vmatpush1.msra.mxu0 0.0
        %1289 = vmatprep.subr.mxu0 0.0
        %1290 = vmatpush1.msra.mxu0 0.0
        %1291 = vmatprep.subr.mxu0 0.0
        %1292 = vmatpush1.msra.mxu0 0.0
        %1293 = vmatprep.subr.mxu0 0.0
        %1294 = vmatpush1.msra.mxu0 0.0
        %1295 = vmatprep.subr.mxu0 0.0
        %1296 = vmatpush1.msra.mxu0 0.0
        %1297 = vmatprep.subr.mxu0 0.0
        %1298 = vmatpush1.msra.mxu0 0.0
        %1299 = vmatprep.subr.mxu0 0.0
        %1300 = vmatpush1.msra.mxu0 0.0
        %1301 = vmatprep.subr.mxu0 0.0
        %1302 = vmatpush1.msra.mxu0 0.0
        %1303 = vmatprep.subr.mxu0 0.0
        %v1304 = vand.u32 %v1268, 4294901760
        %1305 = vmatpush1.msra.mxu0 %v1304
        %1306 = vmatprep.subr.mxu0 0.0
        %1307 = vmatpush2.msra.mxu0 0.0
        %1308 = vmatprep.subr.mxu0 0.0
        %1309 = vmatpush2.msra.mxu0 0.0
        %1310 = vmatprep.subr.mxu0 0.0
        %1311 = vmatpush2.msra.mxu0 0.0
        %1312 = vmatprep.subr.mxu0 0.0
        %1313 = vmatpush2.msra.mxu0 0.0
        %1314 = vmatprep.subr.mxu0 0.0
        %1315 = vmatpush2.msra.mxu0 0.0
        %1316 = vmatprep.subr.mxu0 0.0
        %1317 = vmatpush2.msra.mxu0 0.0
        %1318 = vmatprep.subr.mxu0 0.0
        %1319 = vmatpush2.msra.mxu0 0.0
        %1320 = vmatprep.subr.mxu0 0.0
        %1321 = vmatpush2.msra.mxu0 0.0
        %1322 = vmatprep.subr.mxu0 0.0
        %1323 = vmatpush2.msra.mxu0 0.0
        %1324 = vmatprep.subr.mxu0 0.0
        %1325 = vmatpush2.msra.mxu0 0.0
        %1326 = vmatprep.subr.mxu0 0.0
        %1327 = vmatpush2.msra.mxu0 0.0
        %1328 = vmatprep.subr.mxu0 0.0
        %1329 = vmatpush2.msra.mxu0 0.0
        %1330 = vmatprep.subr.mxu0 0.0
        %1331 = vmatpush2.msra.mxu0 0.0
        %1332 = vmatprep.subr.mxu0 0.0
        %1333 = vmatpush2.msra.mxu0 0.0
        %1334 = vmatprep.subr.mxu0 0.0
        %1335 = vmatpush2.msra.mxu0 0.0
        %1336 = vmatprep.subr.mxu0 0.0
        %1337 = vmatpush2.msra.mxu0 0.0
        %1338 = vmatprep.mubr.f32.mxu0 0.0
        %v1339 = vand.u32 %v1271, 4294901760
        %v1340 = vsub.f32 %v1271, %v1339
        %v1341 = vand.u32 %v1340, 4294901760
        %v1342 = vsub.f32 %v1340, %v1341
        %v1343 = vand.u32 %v1342, 4294901760
        %1344 = vmatmul.mubr.f32.gmra.mxu0 %v1343
        %v1345 = vpop.f32.mrf.mxu0
        %v1346 = vadd.f32 0.0, %v1345
        %v1347 = vpop.f32.mrf.mxu0
        %1348 = vdwg.mxu0
        %1349 = vmatprep.subr.mxu0 0.0
        %1350 = vmatpush1.msra.mxu0 0.0
        %1351 = vmatprep.subr.mxu0 0.0
        %1352 = vmatpush1.msra.mxu0 0.0
        %1353 = vmatprep.subr.mxu0 0.0
        %1354 = vmatpush1.msra.mxu0 0.0
        %1355 = vmatprep.subr.mxu0 0.0
        %1356 = vmatpush1.msra.mxu0 0.0
        %1357 = vmatprep.subr.mxu0 0.0
        %1358 = vmatpush1.msra.mxu0 0.0
        %1359 = vmatprep.subr.mxu0 0.0
        %1360 = vmatpush1.msra.mxu0 0.0
        %1361 = vmatprep.subr.mxu0 0.0
        %1362 = vmatpush1.msra.mxu0 0.0
        %1363 = vmatprep.subr.mxu0 0.0
        %1364 = vmatpush1.msra.mxu0 0.0
        %1365 = vmatprep.subr.mxu0 0.0
        %1366 = vmatpush1.msra.mxu0 0.0
        %1367 = vmatprep.subr.mxu0 0.0
        %1368 = vmatpush1.msra.mxu0 0.0
        %1369 = vmatprep.subr.mxu0 0.0
        %1370 = vmatpush1.msra.mxu0 0.0
        %1371 = vmatprep.subr.mxu0 0.0
        %1372 = vmatpush1.msra.mxu0 0.0
        %1373 = vmatprep.subr.mxu0 0.0
        %1374 = vmatpush1.msra.mxu0 0.0
        %1375 = vmatprep.subr.mxu0 0.0
        %1376 = vmatpush1.msra.mxu0 0.0
        %1377 = vmatprep.subr.mxu0 0.0
        %1378 = vmatpush1.msra.mxu0 0.0
        %1379 = vmatprep.subr.mxu0 0.0
        %v1380 = vand.u32 %v1268, 4294901760
        %v1381 = vsub.f32 %v1268, %v1380
        %v1382 = vand.u32 %v1381, 4294901760
        %v1383 = vsub.f32 %v1381, %v1382
        %v1384 = vand.u32 %v1383, 4294901760
        %1385 = vmatpush1.msra.mxu0 %v1384
        %1386 = vmatprep.subr.mxu0 0.0
        %1387 = vmatpush2.msra.mxu0 0.0
        %1388 = vmatprep.subr.mxu0 0.0
        %1389 = vmatpush2.msra.mxu0 0.0
        %1390 = vmatprep.subr.mxu0 0.0
        %1391 = vmatpush2.msra.mxu0 0.0
        %1392 = vmatprep.subr.mxu0 0.0
        %1393 = vmatpush2.msra.mxu0 0.0
        %1394 = vmatprep.subr.mxu0 0.0
        %1395 = vmatpush2.msra.mxu0 0.0
        %1396 = vmatprep.subr.mxu0 0.0
        %1397 = vmatpush2.msra.mxu0 0.0
        %1398 = vmatprep.subr.mxu0 0.0
        %1399 = vmatpush2.msra.mxu0 0.0
        %1400 = vmatprep.subr.mxu0 0.0
        %1401 = vmatpush2.msra.mxu0 0.0
        %1402 = vmatprep.subr.mxu0 0.0
        %1403 = vmatpush2.msra.mxu0 0.0
        %1404 = vmatprep.subr.mxu0 0.0
        %1405 = vmatpush2.msra.mxu0 0.0
        %1406 = vmatprep.subr.mxu0 0.0
        %1407 = vmatpush2.msra.mxu0 0.0
        %1408 = vmatprep.subr.mxu0 0.0
        %1409 = vmatpush2.msra.mxu0 0.0
        %1410 = vmatprep.subr.mxu0 0.0
        %1411 = vmatpush2.msra.mxu0 0.0
        %1412 = vmatprep.subr.mxu0 0.0
        %1413 = vmatpush2.msra.mxu0 0.0
        %1414 = vmatprep.subr.mxu0 0.0
        %1415 = vmatpush2.msra.mxu0 0.0
        %1416 = vmatprep.subr.mxu0 0.0
        %1417 = vmatpush2.msra.mxu0 0.0
        %1418 = vmatprep.mubr.f32.mxu0 0.0
        %v1419 = vand.u32 %v1271, 4294901760
        %1420 = vmatmul.mubr.f32.gmra.mxu0 %v1419
        %v1421 = vpop.f32.mrf.mxu0
        %v1422 = vadd.f32 %v1346, %v1421
        %v1423 = vpop.f32.mrf.mxu0
        %1424 = vdwg.mxu0
        %1425 = vmatprep.subr.mxu0 0.0
        %1426 = vmatpush1.msra.mxu0 0.0
        %1427 = vmatprep.subr.mxu0 0.0
        %1428 = vmatpush1.msra.mxu0 0.0
        %1429 = vmatprep.subr.mxu0 0.0
        %1430 = vmatpush1.msra.mxu0 0.0
        %1431 = vmatprep.subr.mxu0 0.0
        %1432 = vmatpush1.msra.mxu0 0.0
        %1433 = vmatprep.subr.mxu0 0.0
        %1434 = vmatpush1.msra.mxu0 0.0
        %1435 = vmatprep.subr.mxu0 0.0
        %1436 = vmatpush1.msra.mxu0 0.0
        %1437 = vmatprep.subr.mxu0 0.0
        %1438 = vmatpush1.msra.mxu0 0.0
        %1439 = vmatprep.subr.mxu0 0.0
        %1440 = vmatpush1.msra.mxu0 0.0
        %1441 = vmatprep.subr.mxu0 0.0
        %1442 = vmatpush1.msra.mxu0 0.0
        %1443 = vmatprep.subr.mxu0 0.0
        %1444 = vmatpush1.msra.mxu0 0.0
        %1445 = vmatprep.subr.mxu0 0.0
        %1446 = vmatpush1.msra.mxu0 0.0
        %1447 = vmatprep.subr.mxu0 0.0
        %1448 = vmatpush1.msra.mxu0 0.0
        %1449 = vmatprep.subr.mxu0 0.0
        %1450 = vmatpush1.msra.mxu0 0.0
        %1451 = vmatprep.subr.mxu0 0.0
        %1452 = vmatpush1.msra.mxu0 0.0
        %1453 = vmatprep.subr.mxu0 0.0
        %1454 = vmatpush1.msra.mxu0 0.0
        %1455 = vmatprep.subr.mxu0 0.0
        %v1456 = vand.u32 %v1268, 4294901760
        %v1457 = vsub.f32 %v1268, %v1456
        %1458 = vmatpush1.msra.mxu0 %v1457
        %1459 = vmatprep.subr.mxu0 0.0
        %1460 = vmatpush2.msra.mxu0 0.0
        %1461 = vmatprep.subr.mxu0 0.0
        %1462 = vmatpush2.msra.mxu0 0.0
        %1463 = vmatprep.subr.mxu0 0.0
        %1464 = vmatpush2.msra.mxu0 0.0
        %1465 = vmatprep.subr.mxu0 0.0
        %1466 = vmatpush2.msra.mxu0 0.0
        %1467 = vmatprep.subr.mxu0 0.0
        %1468 = vmatpush2.msra.mxu0 0.0
        %1469 = vmatprep.subr.mxu0 0.0
        %1470 = vmatpush2.msra.mxu0 0.0
        %1471 = vmatprep.subr.mxu0 0.0
        %1472 = vmatpush2.msra.mxu0 0.0
        %1473 = vmatprep.subr.mxu0 0.0
        %1474 = vmatpush2.msra.mxu0 0.0
        %1475 = vmatprep.subr.mxu0 0.0
        %1476 = vmatpush2.msra.mxu0 0.0
        %1477 = vmatprep.subr.mxu0 0.0
        %1478 = vmatpush2.msra.mxu0 0.0
        %1479 = vmatprep.subr.mxu0 0.0
        %1480 = vmatpush2.msra.mxu0 0.0
        %1481 = vmatprep.subr.mxu0 0.0
        %1482 = vmatpush2.msra.mxu0 0.0
        %1483 = vmatprep.subr.mxu0 0.0
        %1484 = vmatpush2.msra.mxu0 0.0
        %1485 = vmatprep.subr.mxu0 0.0
        %1486 = vmatpush2.msra.mxu0 0.0
        %1487 = vmatprep.subr.mxu0 0.0
        %1488 = vmatpush2.msra.mxu0 0.0
        %1489 = vmatprep.subr.mxu0 0.0
        %1490 = vmatpush2.msra.mxu0 0.0
        %1491 = vmatprep.mubr.f32.mxu0 0.0
        %v1492 = vand.u32 %v1271, 4294901760
        %v1493 = vsub.f32 %v1271, %v1492
        %1494 = vmatmul.mubr.f32.gmra.mxu0 %v1493
        %v1495 = vpop.f32.mrf.mxu0
        %v1496 = vadd.f32 %v1422, %v1495
        %v1497 = vpop.f32.mrf.mxu0
        %1498 = vdwg.mxu0
        %1499 = vmatprep.subr.mxu0 0.0
        %1500 = vmatpush1.msra.mxu0 0.0
        %1501 = vmatprep.subr.mxu0 0.0
        %1502 = vmatpush1.msra.mxu0 0.0
        %1503 = vmatprep.subr.mxu0 0.0
        %1504 = vmatpush1.msra.mxu0 0.0
        %1505 = vmatprep.subr.mxu0 0.0
        %1506 = vmatpush1.msra.mxu0 0.0
        %1507 = vmatprep.subr.mxu0 0.0
        %1508 = vmatpush1.msra.mxu0 0.0
        %1509 = vmatprep.subr.mxu0 0.0
        %1510 = vmatpush1.msra.mxu0 0.0
        %1511 = vmatprep.subr.mxu0 0.0
        %1512 = vmatpush1.msra.mxu0 0.0
        %1513 = vmatprep.subr.mxu0 0.0
        %1514 = vmatpush1.msra.mxu0 0.0
        %1515 = vmatprep.subr.mxu0 0.0
        %1516 = vmatpush1.msra.mxu0 0.0
        %1517 = vmatprep.subr.mxu0 0.0
        %1518 = vmatpush1.msra.mxu0 0.0
        %1519 = vmatprep.subr.mxu0 0.0
        %1520 = vmatpush1.msra.mxu0 0.0
        %1521 = vmatprep.subr.mxu0 0.0
        %1522 = vmatpush1.msra.mxu0 0.0
        %1523 = vmatprep.subr.mxu0 0.0
        %1524 = vmatpush1.msra.mxu0 0.0
        %1525 = vmatprep.subr.mxu0 0.0
        %1526 = vmatpush1.msra.mxu0 0.0
        %1527 = vmatprep.subr.mxu0 0.0
        %1528 = vmatpush1.msra.mxu0 0.0
        %1529 = vmatprep.subr.mxu0 0.0
        %v1530 = vand.u32 %v1268, 4294901760
        %1531 = vmatpush1.msra.mxu0 %v1530
        %1532 = vmatprep.subr.mxu0 0.0
        %1533 = vmatpush2.msra.mxu0 0.0
        %1534 = vmatprep.subr.mxu0 0.0
        %1535 = vmatpush2.msra.mxu0 0.0
        %1536 = vmatprep.subr.mxu0 0.0
        %1537 = vmatpush2.msra.mxu0 0.0
        %1538 = vmatprep.subr.mxu0 0.0
        %1539 = vmatpush2.msra.mxu0 0.0
        %1540 = vmatprep.subr.mxu0 0.0
        %1541 = vmatpush2.msra.mxu0 0.0
        %1542 = vmatprep.subr.mxu0 0.0
        %1543 = vmatpush2.msra.mxu0 0.0
        %1544 = vmatprep.subr.mxu0 0.0
        %1545 = vmatpush2.msra.mxu0 0.0
        %1546 = vmatprep.subr.mxu0 0.0
        %1547 = vmatpush2.msra.mxu0 0.0
        %1548 = vmatprep.subr.mxu0 0.0
        %1549 = vmatpush2.msra.mxu0 0.0
        %1550 = vmatprep.subr.mxu0 0.0
        %1551 = vmatpush2.msra.mxu0 0.0
        %1552 = vmatprep.subr.mxu0 0.0
        %1553 = vmatpush2.msra.mxu0 0.0
        %1554 = vmatprep.subr.mxu0 0.0
        %1555 = vmatpush2.msra.mxu0 0.0
        %1556 = vmatprep.subr.mxu0 0.0
        %1557 = vmatpush2.msra.mxu0 0.0
        %1558 = vmatprep.subr.mxu0 0.0
        %1559 = vmatpush2.msra.mxu0 0.0
        %1560 = vmatprep.subr.mxu0 0.0
        %1561 = vmatpush2.msra.mxu0 0.0
        %1562 = vmatprep.subr.mxu0 0.0
        %1563 = vmatpush2.msra.mxu0 0.0
        %1564 = vmatprep.mubr.f32.mxu0 0.0
        %v1565 = vand.u32 %v1271, 4294901760
        %v1566 = vsub.f32 %v1271, %v1565
        %v1567 = vand.u32 %v1566, 4294901760
        %1568 = vmatmul.mubr.f32.gmra.mxu0 %v1567
        %v1569 = vpop.f32.mrf.mxu0
        %v1570 = vadd.f32 %v1496, %v1569
        %v1571 = vpop.f32.mrf.mxu0
        %1572 = vdwg.mxu0
        %1573 = vmatprep.subr.mxu0 0.0
        %1574 = vmatpush1.msra.mxu0 0.0
        %1575 = vmatprep.subr.mxu0 0.0
        %1576 = vmatpush1.msra.mxu0 0.0
        %1577 = vmatprep.subr.mxu0 0.0
        %1578 = vmatpush1.msra.mxu0 0.0
        %1579 = vmatprep.subr.mxu0 0.0
        %1580 = vmatpush1.msra.mxu0 0.0
        %1581 = vmatprep.subr.mxu0 0.0
        %1582 = vmatpush1.msra.mxu0 0.0
        %1583 = vmatprep.subr.mxu0 0.0
        %1584 = vmatpush1.msra.mxu0 0.0
        %1585 = vmatprep.subr.mxu0 0.0
        %1586 = vmatpush1.msra.mxu0 0.0
        %1587 = vmatprep.subr.mxu0 0.0
        %1588 = vmatpush1.msra.mxu0 0.0
        %1589 = vmatprep.subr.mxu0 0.0
        %1590 = vmatpush1.msra.mxu0 0.0
        %1591 = vmatprep.subr.mxu0 0.0
        %1592 = vmatpush1.msra.mxu0 0.0
        %1593 = vmatprep.subr.mxu0 0.0
        %1594 = vmatpush1.msra.mxu0 0.0
        %1595 = vmatprep.subr.mxu0 0.0
        %1596 = vmatpush1.msra.mxu0 0.0
        %1597 = vmatprep.subr.mxu0 0.0
        %1598 = vmatpush1.msra.mxu0 0.0
        %1599 = vmatprep.subr.mxu0 0.0
        %1600 = vmatpush1.msra.mxu0 0.0
        %1601 = vmatprep.subr.mxu0 0.0
        %1602 = vmatpush1.msra.mxu0 0.0
        %1603 = vmatprep.subr.mxu0 0.0
        %v1604 = vand.u32 %v1268, 4294901760
        %v1605 = vsub.f32 %v1268, %v1604
        %v1606 = vand.u32 %v1605, 4294901760
        %1607 = vmatpush1.msra.mxu0 %v1606
        %1608 = vmatprep.subr.mxu0 0.0
        %1609 = vmatpush2.msra.mxu0 0.0
        %1610 = vmatprep.subr.mxu0 0.0
        %1611 = vmatpush2.msra.mxu0 0.0
        %1612 = vmatprep.subr.mxu0 0.0
        %1613 = vmatpush2.msra.mxu0 0.0
        %1614 = vmatprep.subr.mxu0 0.0
        %1615 = vmatpush2.msra.mxu0 0.0
        %1616 = vmatprep.subr.mxu0 0.0
        %1617 = vmatpush2.msra.mxu0 0.0
        %1618 = vmatprep.subr.mxu0 0.0
        %1619 = vmatpush2.msra.mxu0 0.0
        %1620 = vmatprep.subr.mxu0 0.0
        %1621 = vmatpush2.msra.mxu0 0.0
        %1622 = vmatprep.subr.mxu0 0.0
        %1623 = vmatpush2.msra.mxu0 0.0
        %1624 = vmatprep.subr.mxu0 0.0
        %1625 = vmatpush2.msra.mxu0 0.0
        %1626 = vmatprep.subr.mxu0 0.0
        %1627 = vmatpush2.msra.mxu0 0.0
        %1628 = vmatprep.subr.mxu0 0.0
        %1629 = vmatpush2.msra.mxu0 0.0
        %1630 = vmatprep.subr.mxu0 0.0
        %1631 = vmatpush2.msra.mxu0 0.0
        %1632 = vmatprep.subr.mxu0 0.0
        %1633 = vmatpush2.msra.mxu0 0.0
        %1634 = vmatprep.subr.mxu0 0.0
        %1635 = vmatpush2.msra.mxu0 0.0
        %1636 = vmatprep.subr.mxu0 0.0
        %1637 = vmatpush2.msra.mxu0 0.0
        %1638 = vmatprep.subr.mxu0 0.0
        %1639 = vmatpush2.msra.mxu0 0.0
        %1640 = vmatprep.mubr.f32.mxu0 0.0
        %v1641 = vand.u32 %v1271, 4294901760
        %1642 = vmatmul.mubr.f32.gmra.mxu0 %v1641
        %v1643 = vpop.f32.mrf.mxu0
        %v1644 = vadd.f32 %v1570, %v1643
        %v1645 = vpop.f32.mrf.mxu0
        %1646 = vdwg.mxu0
        %1647 = vmatprep.subr.mxu0 0.0
        %1648 = vmatpush1.msra.mxu0 0.0
        %1649 = vmatprep.subr.mxu0 0.0
        %1650 = vmatpush1.msra.mxu0 0.0
        %1651 = vmatprep.subr.mxu0 0.0
        %1652 = vmatpush1.msra.mxu0 0.0
        %1653 = vmatprep.subr.mxu0 0.0
        %1654 = vmatpush1.msra.mxu0 0.0
        %1655 = vmatprep.subr.mxu0 0.0
        %1656 = vmatpush1.msra.mxu0 0.0
        %1657 = vmatprep.subr.mxu0 0.0
        %1658 = vmatpush1.msra.mxu0 0.0
        %1659 = vmatprep.subr.mxu0 0.0
        %1660 = vmatpush1.msra.mxu0 0.0
        %1661 = vmatprep.subr.mxu0 0.0
        %1662 = vmatpush1.msra.mxu0 0.0
        %1663 = vmatprep.subr.mxu0 0.0
        %1664 = vmatpush1.msra.mxu0 0.0
        %1665 = vmatprep.subr.mxu0 0.0
        %1666 = vmatpush1.msra.mxu0 0.0
        %1667 = vmatprep.subr.mxu0 0.0
        %1668 = vmatpush1.msra.mxu0 0.0
        %1669 = vmatprep.subr.mxu0 0.0
        %1670 = vmatpush1.msra.mxu0 0.0
        %1671 = vmatprep.subr.mxu0 0.0
        %1672 = vmatpush1.msra.mxu0 0.0
        %1673 = vmatprep.subr.mxu0 0.0
        %1674 = vmatpush1.msra.mxu0 0.0
        %1675 = vmatprep.subr.mxu0 0.0
        %1676 = vmatpush1.msra.mxu0 0.0
        %1677 = vmatprep.subr.mxu0 0.0
        %v1678 = vand.u32 %v1268, 4294901760
        %1679 = vmatpush1.msra.mxu0 %v1678
        %1680 = vmatprep.subr.mxu0 0.0
        %1681 = vmatpush2.msra.mxu0 0.0
        %1682 = vmatprep.subr.mxu0 0.0
        %1683 = vmatpush2.msra.mxu0 0.0
        %1684 = vmatprep.subr.mxu0 0.0
        %1685 = vmatpush2.msra.mxu0 0.0
        %1686 = vmatprep.subr.mxu0 0.0
        %1687 = vmatpush2.msra.mxu0 0.0
        %1688 = vmatprep.subr.mxu0 0.0
        %1689 = vmatpush2.msra.mxu0 0.0
        %1690 = vmatprep.subr.mxu0 0.0
        %1691 = vmatpush2.msra.mxu0 0.0
        %1692 = vmatprep.subr.mxu0 0.0
        %1693 = vmatpush2.msra.mxu0 0.0
        %1694 = vmatprep.subr.mxu0 0.0
        %1695 = vmatpush2.msra.mxu0 0.0
        %1696 = vmatprep.subr.mxu0 0.0
        %1697 = vmatpush2.msra.mxu0 0.0
        %1698 = vmatprep.subr.mxu0 0.0
        %1699 = vmatpush2.msra.mxu0 0.0
        %1700 = vmatprep.subr.mxu0 0.0
        %1701 = vmatpush2.msra.mxu0 0.0
        %1702 = vmatprep.subr.mxu0 0.0
        %1703 = vmatpush2.msra.mxu0 0.0
        %1704 = vmatprep.subr.mxu0 0.0
        %1705 = vmatpush2.msra.mxu0 0.0
        %1706 = vmatprep.subr.mxu0 0.0
        %1707 = vmatpush2.msra.mxu0 0.0
        %1708 = vmatprep.subr.mxu0 0.0
        %1709 = vmatpush2.msra.mxu0 0.0
        %1710 = vmatprep.subr.mxu0 0.0
        %1711 = vmatpush2.msra.mxu0 0.0
        %1712 = vmatprep.mubr.f32.mxu0 0.0
        %v1713 = vand.u32 %v1271, 4294901760
        %1714 = vmatmul.mubr.f32.gmra.mxu0 %v1713
        %v1715 = vpop.f32.mrf.mxu0
        %v1716 = vadd.f32 %v1644, %v1715
        %v1717 = vpop.f32.mrf.mxu0
        %1718 = vdwg.mxu0
        %v1719 = vrcp.pop %v1266
        %v1720 = vmul.f32 %v1716, %v1719
        %1721 = vst.msk [vmem:[#allocation3] sm:$0xff] %vm804, %v1720
        %v1722 = vld [vmem:[%s798] sm:$0xff]
        %v1723 = vld [vmem:[#allocation2] sm:$0xff]
        %1725 = vrot.lane.b32.xlu0 %v1722, 120
        %v1726 = vpop.permute.xlu0 %1725
        %1728 = vrot.lane.b32.xlu0 %v1723, 88
        %v1729 = vpop.permute.xlu0 %1728
        %v1730 = vsel %vm804, %v1726, 0
        %v1732 = vsel %vm804, %v1729, 0
        %1734 = vmatprep.subr.mxu0 0.0
        %1735 = vmatpush1.xpose.msra.mxu0 0.0
        %1736 = vmatprep.subr.mxu0 0.0
        %1737 = vmatpush1.xpose.msra.mxu0 0.0
        %1738 = vmatprep.subr.mxu0 0.0
        %1739 = vmatpush1.xpose.msra.mxu0 0.0
        %1740 = vmatprep.subr.mxu0 0.0
        %1741 = vmatpush1.xpose.msra.mxu0 0.0
        %1742 = vmatprep.subr.mxu0 0.0
        %1743 = vmatpush1.xpose.msra.mxu0 0.0
        %1744 = vmatprep.subr.mxu0 0.0
        %1745 = vmatpush1.xpose.msra.mxu0 0.0
        %1746 = vmatprep.subr.mxu0 0.0
        %1747 = vmatpush1.xpose.msra.mxu0 0.0
        %1748 = vmatprep.subr.mxu0 0.0
        %1749 = vmatpush1.xpose.msra.mxu0 0.0
        %1750 = vmatprep.subr.mxu0 0.0
        %1751 = vmatpush1.xpose.msra.mxu0 0.0
        %1752 = vmatprep.subr.mxu0 0.0
        %1753 = vmatpush1.xpose.msra.mxu0 0.0
        %1754 = vmatprep.subr.mxu0 0.0
        %1755 = vmatpush1.xpose.msra.mxu0 0.0
        %1756 = vmatprep.subr.mxu0 0.0
        %1757 = vmatpush1.xpose.msra.mxu0 0.0
        %1758 = vmatprep.subr.mxu0 0.0
        %1759 = vmatpush1.xpose.msra.mxu0 0.0
        %1760 = vmatprep.subr.mxu0 0.0
        %1761 = vmatpush1.xpose.msra.mxu0 0.0
        %1762 = vmatprep.subr.mxu0 0.0
        %1763 = vmatpush1.xpose.msra.mxu0 0.0
        %1764 = vmatprep.subr.mxu0 0.0
        %v1765 = vand.u32 %v1732, 4294901760
        %1766 = vmatpush1.xpose.msra.mxu0 %v1765
        %1767 = vmatprep.subr.mxu0 0.0
        %1768 = vmatpush2.xpose.msra.mxu0 0.0
        %1769 = vmatprep.subr.mxu0 0.0
        %1770 = vmatpush2.xpose.msra.mxu0 0.0
        %1771 = vmatprep.subr.mxu0 0.0
        %1772 = vmatpush2.xpose.msra.mxu0 0.0
        %1773 = vmatprep.subr.mxu0 0.0
        %1774 = vmatpush2.xpose.msra.mxu0 0.0
        %1775 = vmatprep.subr.mxu0 0.0
        %1776 = vmatpush2.xpose.msra.mxu0 0.0
        %1777 = vmatprep.subr.mxu0 0.0
        %1778 = vmatpush2.xpose.msra.mxu0 0.0
        %1779 = vmatprep.subr.mxu0 0.0
        %1780 = vmatpush2.xpose.msra.mxu0 0.0
        %1781 = vmatprep.subr.mxu0 0.0
        %1782 = vmatpush2.xpose.msra.mxu0 0.0
        %1783 = vmatprep.subr.mxu0 0.0
        %1784 = vmatpush2.xpose.msra.mxu0 0.0
        %1785 = vmatprep.subr.mxu0 0.0
        %1786 = vmatpush2.xpose.msra.mxu0 0.0
        %1787 = vmatprep.subr.mxu0 0.0
        %1788 = vmatpush2.xpose.msra.mxu0 0.0
        %1789 = vmatprep.subr.mxu0 0.0
        %1790 = vmatpush2.xpose.msra.mxu0 0.0
        %1791 = vmatprep.subr.mxu0 0.0
        %1792 = vmatpush2.xpose.msra.mxu0 0.0
        %1793 = vmatprep.subr.mxu0 0.0
        %1794 = vmatpush2.xpose.msra.mxu0 0.0
        %1795 = vmatprep.subr.mxu0 0.0
        %1796 = vmatpush2.xpose.msra.mxu0 0.0
        %1797 = vmatprep.subr.mxu0 0.0
        %1798 = vmatpush2.xpose.msra.mxu0 0.0
        %1799 = vmatprep.mubr.f32.mxu0 0.0
        %v1800 = vand.u32 %v1730, 4294901760
        %v1801 = vsub.f32 %v1730, %v1800
        %v1802 = vand.u32 %v1801, 4294901760
        %v1803 = vsub.f32 %v1801, %v1802
        %v1804 = vand.u32 %v1803, 4294901760
        %1805 = vmatmul.mubr.f32.gmra.mxu0 %v1804
        %v1806 = vpop.f32.mrf.mxu0
        %v1807 = vadd.f32 0.0, %v1806
        %v1808 = vpop.f32.mrf.mxu0
        %1809 = vdwg.mxu0
        %1810 = vmatprep.subr.mxu0 0.0
        %1811 = vmatpush1.xpose.msra.mxu0 0.0
        %1812 = vmatprep.subr.mxu0 0.0
        %1813 = vmatpush1.xpose.msra.mxu0 0.0
        %1814 = vmatprep.subr.mxu0 0.0
        %1815 = vmatpush1.xpose.msra.mxu0 0.0
        %1816 = vmatprep.subr.mxu0 0.0
        %1817 = vmatpush1.xpose.msra.mxu0 0.0
        %1818 = vmatprep.subr.mxu0 0.0
        %1819 = vmatpush1.xpose.msra.mxu0 0.0
        %1820 = vmatprep.subr.mxu0 0.0
        %1821 = vmatpush1.xpose.msra.mxu0 0.0
        %1822 = vmatprep.subr.mxu0 0.0
        %1823 = vmatpush1.xpose.msra.mxu0 0.0
        %1824 = vmatprep.subr.mxu0 0.0
        %1825 = vmatpush1.xpose.msra.mxu0 0.0
        %1826 = vmatprep.subr.mxu0 0.0
        %1827 = vmatpush1.xpose.msra.mxu0 0.0
        %1828 = vmatprep.subr.mxu0 0.0
        %1829 = vmatpush1.xpose.msra.mxu0 0.0
        %1830 = vmatprep.subr.mxu0 0.0
        %1831 = vmatpush1.xpose.msra.mxu0 0.0
        %1832 = vmatprep.subr.mxu0 0.0
        %1833 = vmatpush1.xpose.msra.mxu0 0.0
        %1834 = vmatprep.subr.mxu0 0.0
        %1835 = vmatpush1.xpose.msra.mxu0 0.0
        %1836 = vmatprep.subr.mxu0 0.0
        %1837 = vmatpush1.xpose.msra.mxu0 0.0
        %1838 = vmatprep.subr.mxu0 0.0
        %1839 = vmatpush1.xpose.msra.mxu0 0.0
        %1840 = vmatprep.subr.mxu0 0.0
        %v1841 = vand.u32 %v1732, 4294901760
        %v1842 = vsub.f32 %v1732, %v1841
        %v1843 = vand.u32 %v1842, 4294901760
        %v1844 = vsub.f32 %v1842, %v1843
        %v1845 = vand.u32 %v1844, 4294901760
        %1846 = vmatpush1.xpose.msra.mxu0 %v1845
        %1847 = vmatprep.subr.mxu0 0.0
        %1848 = vmatpush2.xpose.msra.mxu0 0.0
        %1849 = vmatprep.subr.mxu0 0.0
        %1850 = vmatpush2.xpose.msra.mxu0 0.0
        %1851 = vmatprep.subr.mxu0 0.0
        %1852 = vmatpush2.xpose.msra.mxu0 0.0
        %1853 = vmatprep.subr.mxu0 0.0
        %1854 = vmatpush2.xpose.msra.mxu0 0.0
        %1855 = vmatprep.subr.mxu0 0.0
        %1856 = vmatpush2.xpose.msra.mxu0 0.0
        %1857 = vmatprep.subr.mxu0 0.0
        %1858 = vmatpush2.xpose.msra.mxu0 0.0
        %1859 = vmatprep.subr.mxu0 0.0
        %1860 = vmatpush2.xpose.msra.mxu0 0.0
        %1861 = vmatprep.subr.mxu0 0.0
        %1862 = vmatpush2.xpose.msra.mxu0 0.0
        %1863 = vmatprep.subr.mxu0 0.0
        %1864 = vmatpush2.xpose.msra.mxu0 0.0
        %1865 = vmatprep.subr.mxu0 0.0
        %1866 = vmatpush2.xpose.msra.mxu0 0.0
        %1867 = vmatprep.subr.mxu0 0.0
        %1868 = vmatpush2.xpose.msra.mxu0 0.0
        %1869 = vmatprep.subr.mxu0 0.0
        %1870 = vmatpush2.xpose.msra.mxu0 0.0
        %1871 = vmatprep.subr.mxu0 0.0
        %1872 = vmatpush2.xpose.msra.mxu0 0.0
        %1873 = vmatprep.subr.mxu0 0.0
        %1874 = vmatpush2.xpose.msra.mxu0 0.0
        %1875 = vmatprep.subr.mxu0 0.0
        %1876 = vmatpush2.xpose.msra.mxu0 0.0
        %1877 = vmatprep.subr.mxu0 0.0
        %1878 = vmatpush2.xpose.msra.mxu0 0.0
        %1879 = vmatprep.mubr.f32.mxu0 0.0
        %v1880 = vand.u32 %v1730, 4294901760
        %1881 = vmatmul.mubr.f32.gmra.mxu0 %v1880
        %v1882 = vpop.f32.mrf.mxu0
        %v1883 = vadd.f32 %v1807, %v1882
        %v1884 = vpop.f32.mrf.mxu0
        %1885 = vdwg.mxu0
        %1886 = vmatprep.subr.mxu0 0.0
        %1887 = vmatpush1.xpose.msra.mxu0 0.0
        %1888 = vmatprep.subr.mxu0 0.0
        %1889 = vmatpush1.xpose.msra.mxu0 0.0
        %1890 = vmatprep.subr.mxu0 0.0
        %1891 = vmatpush1.xpose.msra.mxu0 0.0
        %1892 = vmatprep.subr.mxu0 0.0
        %1893 = vmatpush1.xpose.msra.mxu0 0.0
        %1894 = vmatprep.subr.mxu0 0.0
        %1895 = vmatpush1.xpose.msra.mxu0 0.0
        %1896 = vmatprep.subr.mxu0 0.0
        %1897 = vmatpush1.xpose.msra.mxu0 0.0
        %1898 = vmatprep.subr.mxu0 0.0
        %1899 = vmatpush1.xpose.msra.mxu0 0.0
        %1900 = vmatprep.subr.mxu0 0.0
        %1901 = vmatpush1.xpose.msra.mxu0 0.0
        %1902 = vmatprep.subr.mxu0 0.0
        %1903 = vmatpush1.xpose.msra.mxu0 0.0
        %1904 = vmatprep.subr.mxu0 0.0
        %1905 = vmatpush1.xpose.msra.mxu0 0.0
        %1906 = vmatprep.subr.mxu0 0.0
        %1907 = vmatpush1.xpose.msra.mxu0 0.0
        %1908 = vmatprep.subr.mxu0 0.0
        %1909 = vmatpush1.xpose.msra.mxu0 0.0
        %1910 = vmatprep.subr.mxu0 0.0
        %1911 = vmatpush1.xpose.msra.mxu0 0.0
        %1912 = vmatprep.subr.mxu0 0.0
        %1913 = vmatpush1.xpose.msra.mxu0 0.0
        %1914 = vmatprep.subr.mxu0 0.0
        %1915 = vmatpush1.xpose.msra.mxu0 0.0
        %1916 = vmatprep.subr.mxu0 0.0
        %v1917 = vand.u32 %v1732, 4294901760
        %v1918 = vsub.f32 %v1732, %v1917
        %1919 = vmatpush1.xpose.msra.mxu0 %v1918
        %1920 = vmatprep.subr.mxu0 0.0
        %1921 = vmatpush2.xpose.msra.mxu0 0.0
        %1922 = vmatprep.subr.mxu0 0.0
        %1923 = vmatpush2.xpose.msra.mxu0 0.0
        %1924 = vmatprep.subr.mxu0 0.0
        %1925 = vmatpush2.xpose.msra.mxu0 0.0
        %1926 = vmatprep.subr.mxu0 0.0
        %1927 = vmatpush2.xpose.msra.mxu0 0.0
        %1928 = vmatprep.subr.mxu0 0.0
        %1929 = vmatpush2.xpose.msra.mxu0 0.0
        %1930 = vmatprep.subr.mxu0 0.0
        %1931 = vmatpush2.xpose.msra.mxu0 0.0
        %1932 = vmatprep.subr.mxu0 0.0
        %1933 = vmatpush2.xpose.msra.mxu0 0.0
        %1934 = vmatprep.subr.mxu0 0.0
        %1935 = vmatpush2.xpose.msra.mxu0 0.0
        %1936 = vmatprep.subr.mxu0 0.0
        %1937 = vmatpush2.xpose.msra.mxu0 0.0
        %1938 = vmatprep.subr.mxu0 0.0
        %1939 = vmatpush2.xpose.msra.mxu0 0.0
        %1940 = vmatprep.subr.mxu0 0.0
        %1941 = vmatpush2.xpose.msra.mxu0 0.0
        %1942 = vmatprep.subr.mxu0 0.0
        %1943 = vmatpush2.xpose.msra.mxu0 0.0
        %1944 = vmatprep.subr.mxu0 0.0
        %1945 = vmatpush2.xpose.msra.mxu0 0.0
        %1946 = vmatprep.subr.mxu0 0.0
        %1947 = vmatpush2.xpose.msra.mxu0 0.0
        %1948 = vmatprep.subr.mxu0 0.0
        %1949 = vmatpush2.xpose.msra.mxu0 0.0
        %1950 = vmatprep.subr.mxu0 0.0
        %1951 = vmatpush2.xpose.msra.mxu0 0.0
        %1952 = vmatprep.mubr.f32.mxu0 0.0
        %v1953 = vand.u32 %v1730, 4294901760
        %v1954 = vsub.f32 %v1730, %v1953
        %1955 = vmatmul.mubr.f32.gmra.mxu0 %v1954
        %v1956 = vpop.f32.mrf.mxu0
        %v1957 = vadd.f32 %v1883, %v1956
        %v1958 = vpop.f32.mrf.mxu0
        %1959 = vdwg.mxu0
        %1960 = vmatprep.subr.mxu0 0.0
        %1961 = vmatpush1.xpose.msra.mxu0 0.0
        %1962 = vmatprep.subr.mxu0 0.0
        %1963 = vmatpush1.xpose.msra.mxu0 0.0
        %1964 = vmatprep.subr.mxu0 0.0
        %1965 = vmatpush1.xpose.msra.mxu0 0.0
        %1966 = vmatprep.subr.mxu0 0.0
        %1967 = vmatpush1.xpose.msra.mxu0 0.0
        %1968 = vmatprep.subr.mxu0 0.0
        %1969 = vmatpush1.xpose.msra.mxu0 0.0
        %1970 = vmatprep.subr.mxu0 0.0
        %1971 = vmatpush1.xpose.msra.mxu0 0.0
        %1972 = vmatprep.subr.mxu0 0.0
        %1973 = vmatpush1.xpose.msra.mxu0 0.0
        %1974 = vmatprep.subr.mxu0 0.0
        %1975 = vmatpush1.xpose.msra.mxu0 0.0
        %1976 = vmatprep.subr.mxu0 0.0
        %1977 = vmatpush1.xpose.msra.mxu0 0.0
        %1978 = vmatprep.subr.mxu0 0.0
        %1979 = vmatpush1.xpose.msra.mxu0 0.0
        %1980 = vmatprep.subr.mxu0 0.0
        %1981 = vmatpush1.xpose.msra.mxu0 0.0
        %1982 = vmatprep.subr.mxu0 0.0
        %1983 = vmatpush1.xpose.msra.mxu0 0.0
        %1984 = vmatprep.subr.mxu0 0.0
        %1985 = vmatpush1.xpose.msra.mxu0 0.0
        %1986 = vmatprep.subr.mxu0 0.0
        %1987 = vmatpush1.xpose.msra.mxu0 0.0
        %1988 = vmatprep.subr.mxu0 0.0
        %1989 = vmatpush1.xpose.msra.mxu0 0.0
        %1990 = vmatprep.subr.mxu0 0.0
        %v1991 = vand.u32 %v1732, 4294901760
        %1992 = vmatpush1.xpose.msra.mxu0 %v1991
        %1993 = vmatprep.subr.mxu0 0.0
        %1994 = vmatpush2.xpose.msra.mxu0 0.0
        %1995 = vmatprep.subr.mxu0 0.0
        %1996 = vmatpush2.xpose.msra.mxu0 0.0
        %1997 = vmatprep.subr.mxu0 0.0
        %1998 = vmatpush2.xpose.msra.mxu0 0.0
        %1999 = vmatprep.subr.mxu0 0.0
        %2000 = vmatpush2.xpose.msra.mxu0 0.0
        %2001 = vmatprep.subr.mxu0 0.0
        %2002 = vmatpush2.xpose.msra.mxu0 0.0
        %2003 = vmatprep.subr.mxu0 0.0
        %2004 = vmatpush2.xpose.msra.mxu0 0.0
        %2005 = vmatprep.subr.mxu0 0.0
        %2006 = vmatpush2.xpose.msra.mxu0 0.0
        %2007 = vmatprep.subr.mxu0 0.0
        %2008 = vmatpush2.xpose.msra.mxu0 0.0
        %2009 = vmatprep.subr.mxu0 0.0
        %2010 = vmatpush2.xpose.msra.mxu0 0.0
        %2011 = vmatprep.subr.mxu0 0.0
        %2012 = vmatpush2.xpose.msra.mxu0 0.0
        %2013 = vmatprep.subr.mxu0 0.0
        %2014 = vmatpush2.xpose.msra.mxu0 0.0
        %2015 = vmatprep.subr.mxu0 0.0
        %2016 = vmatpush2.xpose.msra.mxu0 0.0
        %2017 = vmatprep.subr.mxu0 0.0
        %2018 = vmatpush2.xpose.msra.mxu0 0.0
        %2019 = vmatprep.subr.mxu0 0.0
        %2020 = vmatpush2.xpose.msra.mxu0 0.0
        %2021 = vmatprep.subr.mxu0 0.0
        %2022 = vmatpush2.xpose.msra.mxu0 0.0
        %2023 = vmatprep.subr.mxu0 0.0
        %2024 = vmatpush2.xpose.msra.mxu0 0.0
        %2025 = vmatprep.mubr.f32.mxu0 0.0
        %v2026 = vand.u32 %v1730, 4294901760
        %v2027 = vsub.f32 %v1730, %v2026
        %v2028 = vand.u32 %v2027, 4294901760
        %2029 = vmatmul.mubr.f32.gmra.mxu0 %v2028
        %v2030 = vpop.f32.mrf.mxu0
        %v2031 = vadd.f32 %v1957, %v2030
        %v2032 = vpop.f32.mrf.mxu0
        %2033 = vdwg.mxu0
        %2034 = vmatprep.subr.mxu0 0.0
        %2035 = vmatpush1.xpose.msra.mxu0 0.0
        %2036 = vmatprep.subr.mxu0 0.0
        %2037 = vmatpush1.xpose.msra.mxu0 0.0
        %2038 = vmatprep.subr.mxu0 0.0
        %2039 = vmatpush1.xpose.msra.mxu0 0.0
        %2040 = vmatprep.subr.mxu0 0.0
        %2041 = vmatpush1.xpose.msra.mxu0 0.0
        %2042 = vmatprep.subr.mxu0 0.0
        %2043 = vmatpush1.xpose.msra.mxu0 0.0
        %2044 = vmatprep.subr.mxu0 0.0
        %2045 = vmatpush1.xpose.msra.mxu0 0.0
        %2046 = vmatprep.subr.mxu0 0.0
        %2047 = vmatpush1.xpose.msra.mxu0 0.0
        %2048 = vmatprep.subr.mxu0 0.0
        %2049 = vmatpush1.xpose.msra.mxu0 0.0
        %2050 = vmatprep.subr.mxu0 0.0
        %2051 = vmatpush1.xpose.msra.mxu0 0.0
        %2052 = vmatprep.subr.mxu0 0.0
        %2053 = vmatpush1.xpose.msra.mxu0 0.0
        %2054 = vmatprep.subr.mxu0 0.0
        %2055 = vmatpush1.xpose.msra.mxu0 0.0
        %2056 = vmatprep.subr.mxu0 0.0
        %2057 = vmatpush1.xpose.msra.mxu0 0.0
        %2058 = vmatprep.subr.mxu0 0.0
        %2059 = vmatpush1.xpose.msra.mxu0 0.0
        %2060 = vmatprep.subr.mxu0 0.0
        %2061 = vmatpush1.xpose.msra.mxu0 0.0
        %2062 = vmatprep.subr.mxu0 0.0
        %2063 = vmatpush1.xpose.msra.mxu0 0.0
        %2064 = vmatprep.subr.mxu0 0.0
        %v2065 = vand.u32 %v1732, 4294901760
        %v2066 = vsub.f32 %v1732, %v2065
        %v2067 = vand.u32 %v2066, 4294901760
        %2068 = vmatpush1.xpose.msra.mxu0 %v2067
        %2069 = vmatprep.subr.mxu0 0.0
        %2070 = vmatpush2.xpose.msra.mxu0 0.0
        %2071 = vmatprep.subr.mxu0 0.0
        %2072 = vmatpush2.xpose.msra.mxu0 0.0
        %2073 = vmatprep.subr.mxu0 0.0
        %2074 = vmatpush2.xpose.msra.mxu0 0.0
        %2075 = vmatprep.subr.mxu0 0.0
        %2076 = vmatpush2.xpose.msra.mxu0 0.0
        %2077 = vmatprep.subr.mxu0 0.0
        %2078 = vmatpush2.xpose.msra.mxu0 0.0
        %2079 = vmatprep.subr.mxu0 0.0
        %2080 = vmatpush2.xpose.msra.mxu0 0.0
        %2081 = vmatprep.subr.mxu0 0.0
        %2082 = vmatpush2.xpose.msra.mxu0 0.0
        %2083 = vmatprep.subr.mxu0 0.0
        %2084 = vmatpush2.xpose.msra.mxu0 0.0
        %2085 = vmatprep.subr.mxu0 0.0
        %2086 = vmatpush2.xpose.msra.mxu0 0.0
        %2087 = vmatprep.subr.mxu0 0.0
        %2088 = vmatpush2.xpose.msra.mxu0 0.0
        %2089 = vmatprep.subr.mxu0 0.0
        %2090 = vmatpush2.xpose.msra.mxu0 0.0
        %2091 = vmatprep.subr.mxu0 0.0
        %2092 = vmatpush2.xpose.msra.mxu0 0.0
        %2093 = vmatprep.subr.mxu0 0.0
        %2094 = vmatpush2.xpose.msra.mxu0 0.0
        %2095 = vmatprep.subr.mxu0 0.0
        %2096 = vmatpush2.xpose.msra.mxu0 0.0
        %2097 = vmatprep.subr.mxu0 0.0
        %2098 = vmatpush2.xpose.msra.mxu0 0.0
        %2099 = vmatprep.subr.mxu0 0.0
        %2100 = vmatpush2.xpose.msra.mxu0 0.0
        %2101 = vmatprep.mubr.f32.mxu0 0.0
        %v2102 = vand.u32 %v1730, 4294901760
        %2103 = vmatmul.mubr.f32.gmra.mxu0 %v2102
        %v2104 = vpop.f32.mrf.mxu0
        %v2105 = vadd.f32 %v2031, %v2104
        %v2106 = vpop.f32.mrf.mxu0
        %2107 = vdwg.mxu0
        %2108 = vmatprep.subr.mxu0 0.0
        %2109 = vmatpush1.xpose.msra.mxu0 0.0
        %2110 = vmatprep.subr.mxu0 0.0
        %2111 = vmatpush1.xpose.msra.mxu0 0.0
        %2112 = vmatprep.subr.mxu0 0.0
        %2113 = vmatpush1.xpose.msra.mxu0 0.0
        %2114 = vmatprep.subr.mxu0 0.0
        %2115 = vmatpush1.xpose.msra.mxu0 0.0
        %2116 = vmatprep.subr.mxu0 0.0
        %2117 = vmatpush1.xpose.msra.mxu0 0.0
        %2118 = vmatprep.subr.mxu0 0.0
        %2119 = vmatpush1.xpose.msra.mxu0 0.0
        %2120 = vmatprep.subr.mxu0 0.0
        %2121 = vmatpush1.xpose.msra.mxu0 0.0
        %2122 = vmatprep.subr.mxu0 0.0
        %2123 = vmatpush1.xpose.msra.mxu0 0.0
        %2124 = vmatprep.subr.mxu0 0.0
        %2125 = vmatpush1.xpose.msra.mxu0 0.0
        %2126 = vmatprep.subr.mxu0 0.0
        %2127 = vmatpush1.xpose.msra.mxu0 0.0
        %2128 = vmatprep.subr.mxu0 0.0
        %2129 = vmatpush1.xpose.msra.mxu0 0.0
        %2130 = vmatprep.subr.mxu0 0.0
        %2131 = vmatpush1.xpose.msra.mxu0 0.0
        %2132 = vmatprep.subr.mxu0 0.0
        %2133 = vmatpush1.xpose.msra.mxu0 0.0
        %2134 = vmatprep.subr.mxu0 0.0
        %2135 = vmatpush1.xpose.msra.mxu0 0.0
        %2136 = vmatprep.subr.mxu0 0.0
        %2137 = vmatpush1.xpose.msra.mxu0 0.0
        %2138 = vmatprep.subr.mxu0 0.0
        %v2139 = vand.u32 %v1732, 4294901760
        %2140 = vmatpush1.xpose.msra.mxu0 %v2139
        %2141 = vmatprep.subr.mxu0 0.0
        %2142 = vmatpush2.xpose.msra.mxu0 0.0
        %2143 = vmatprep.subr.mxu0 0.0
        %2144 = vmatpush2.xpose.msra.mxu0 0.0
        %2145 = vmatprep.subr.mxu0 0.0
        %2146 = vmatpush2.xpose.msra.mxu0 0.0
        %2147 = vmatprep.subr.mxu0 0.0
        %2148 = vmatpush2.xpose.msra.mxu0 0.0
        %2149 = vmatprep.subr.mxu0 0.0
        %2150 = vmatpush2.xpose.msra.mxu0 0.0
        %2151 = vmatprep.subr.mxu0 0.0
        %2152 = vmatpush2.xpose.msra.mxu0 0.0
        %2153 = vmatprep.subr.mxu0 0.0
        %2154 = vmatpush2.xpose.msra.mxu0 0.0
        %2155 = vmatprep.subr.mxu0 0.0
        %2156 = vmatpush2.xpose.msra.mxu0 0.0
        %2157 = vmatprep.subr.mxu0 0.0
        %2158 = vmatpush2.xpose.msra.mxu0 0.0
        %2159 = vmatprep.subr.mxu0 0.0
        %2160 = vmatpush2.xpose.msra.mxu0 0.0
        %2161 = vmatprep.subr.mxu0 0.0
        %2162 = vmatpush2.xpose.msra.mxu0 0.0
        %2163 = vmatprep.subr.mxu0 0.0
        %2164 = vmatpush2.xpose.msra.mxu0 0.0
        %2165 = vmatprep.subr.mxu0 0.0
        %2166 = vmatpush2.xpose.msra.mxu0 0.0
        %2167 = vmatprep.subr.mxu0 0.0
        %2168 = vmatpush2.xpose.msra.mxu0 0.0
        %2169 = vmatprep.subr.mxu0 0.0
        %2170 = vmatpush2.xpose.msra.mxu0 0.0
        %2171 = vmatprep.subr.mxu0 0.0
        %2172 = vmatpush2.xpose.msra.mxu0 0.0
        %2173 = vmatprep.mubr.f32.mxu0 0.0
        %v2174 = vand.u32 %v1730, 4294901760
        %2175 = vmatmul.mubr.f32.gmra.mxu0 %v2174
        %v2176 = vpop.f32.mrf.mxu0
        %v2177 = vadd.f32 %v2105, %v2176
        %v2178 = vpop.f32.mrf.mxu0
        %2179 = vdwg.mxu0
        %v2180 = vmul.f32 %v2177, 0.35355338
        %v2181 = vsel %vm797, %v2180, -inf
        %v2182 = vsel %vm804, %v2181, -inf
        %2183 = vmax.xlane.f32.xlu0 %v2182
        %v2184 = vpop.xlane.xlu0 %2183
        %v2185 = vsub.f32 %v2181, %v2184
        %v2186 = vmul.f32 %v2185, 1.442695
        %v2187 = vpow.pop %v2186
        %v2188 = vsel %vm804, %v2187, 0.0
        %2189 = vadd.xlane.f32.xlu0 %v2188
        %v2190 = vpop.xlane.xlu0 %2189
        %2191 = vrot.lane.b32.xlu0 %v1723, 56
        %v2192 = vpop.permute.xlu0 %2191
        %v2195 = vsel %vm804, %v2187, 0
        %2197 = vmatprep.subr.mxu0 0.0
        %2198 = vmatpush1.msra.mxu0 0.0
        %2199 = vmatprep.subr.mxu0 0.0
        %2200 = vmatpush1.msra.mxu0 0.0
        %2201 = vmatprep.subr.mxu0 0.0
        %2202 = vmatpush1.msra.mxu0 0.0
        %2203 = vmatprep.subr.mxu0 0.0
        %2204 = vmatpush1.msra.mxu0 0.0
        %2205 = vmatprep.subr.mxu0 0.0
        %2206 = vmatpush1.msra.mxu0 0.0
        %2207 = vmatprep.subr.mxu0 0.0
        %2208 = vmatpush1.msra.mxu0 0.0
        %2209 = vmatprep.subr.mxu0 0.0
        %2210 = vmatpush1.msra.mxu0 0.0
        %2211 = vmatprep.subr.mxu0 0.0
        %2212 = vmatpush1.msra.mxu0 0.0
        %2213 = vmatprep.subr.mxu0 0.0
        %2214 = vmatpush1.msra.mxu0 0.0
        %2215 = vmatprep.subr.mxu0 0.0
        %2216 = vmatpush1.msra.mxu0 0.0
        %2217 = vmatprep.subr.mxu0 0.0
        %2218 = vmatpush1.msra.mxu0 0.0
        %2219 = vmatprep.subr.mxu0 0.0
        %2220 = vmatpush1.msra.mxu0 0.0
        %2221 = vmatprep.subr.mxu0 0.0
        %2222 = vmatpush1.msra.mxu0 0.0
        %2223 = vmatprep.subr.mxu0 0.0
        %2224 = vmatpush1.msra.mxu0 0.0
        %2225 = vmatprep.subr.mxu0 0.0
        %2226 = vmatpush1.msra.mxu0 0.0
        %2227 = vmatprep.subr.mxu0 0.0
        %v2228 = vand.u32 %v2192, 4294901760
        %2229 = vmatpush1.msra.mxu0 %v2228
        %2230 = vmatprep.subr.mxu0 0.0
        %2231 = vmatpush2.msra.mxu0 0.0
        %2232 = vmatprep.subr.mxu0 0.0
        %2233 = vmatpush2.msra.mxu0 0.0
        %2234 = vmatprep.subr.mxu0 0.0
        %2235 = vmatpush2.msra.mxu0 0.0
        %2236 = vmatprep.subr.mxu0 0.0
        %2237 = vmatpush2.msra.mxu0 0.0
        %2238 = vmatprep.subr.mxu0 0.0
        %2239 = vmatpush2.msra.mxu0 0.0
        %2240 = vmatprep.subr.mxu0 0.0
        %2241 = vmatpush2.msra.mxu0 0.0
        %2242 = vmatprep.subr.mxu0 0.0
        %2243 = vmatpush2.msra.mxu0 0.0
        %2244 = vmatprep.subr.mxu0 0.0
        %2245 = vmatpush2.msra.mxu0 0.0
        %2246 = vmatprep.subr.mxu0 0.0
        %2247 = vmatpush2.msra.mxu0 0.0
        %2248 = vmatprep.subr.mxu0 0.0
        %2249 = vmatpush2.msra.mxu0 0.0
        %2250 = vmatprep.subr.mxu0 0.0
        %2251 = vmatpush2.msra.mxu0 0.0
        %2252 = vmatprep.subr.mxu0 0.0
        %2253 = vmatpush2.msra.mxu0 0.0
        %2254 = vmatprep.subr.mxu0 0.0
        %2255 = vmatpush2.msra.mxu0 0.0
        %2256 = vmatprep.subr.mxu0 0.0
        %2257 = vmatpush2.msra.mxu0 0.0
        %2258 = vmatprep.subr.mxu0 0.0
        %2259 = vmatpush2.msra.mxu0 0.0
        %2260 = vmatprep.subr.mxu0 0.0
        %2261 = vmatpush2.msra.mxu0 0.0
        %2262 = vmatprep.mubr.f32.mxu0 0.0
        %v2263 = vand.u32 %v2195, 4294901760
        %v2264 = vsub.f32 %v2195, %v2263
        %v2265 = vand.u32 %v2264, 4294901760
        %v2266 = vsub.f32 %v2264, %v2265
        %v2267 = vand.u32 %v2266, 4294901760
        %2268 = vmatmul.mubr.f32.gmra.mxu0 %v2267
        %v2269 = vpop.f32.mrf.mxu0
        %v2270 = vadd.f32 0.0, %v2269
        %v2271 = vpop.f32.mrf.mxu0
        %2272 = vdwg.mxu0
        %2273 = vmatprep.subr.mxu0 0.0
        %2274 = vmatpush1.msra.mxu0 0.0
        %2275 = vmatprep.subr.mxu0 0.0
        %2276 = vmatpush1.msra.mxu0 0.0
        %2277 = vmatprep.subr.mxu0 0.0
        %2278 = vmatpush1.msra.mxu0 0.0
        %2279 = vmatprep.subr.mxu0 0.0
        %2280 = vmatpush1.msra.mxu0 0.0
        %2281 = vmatprep.subr.mxu0 0.0
        %2282 = vmatpush1.msra.mxu0 0.0
        %2283 = vmatprep.subr.mxu0 0.0
        %2284 = vmatpush1.msra.mxu0 0.0
        %2285 = vmatprep.subr.mxu0 0.0
        %2286 = vmatpush1.msra.mxu0 0.0
        %2287 = vmatprep.subr.mxu0 0.0
        %2288 = vmatpush1.msra.mxu0 0.0
        %2289 = vmatprep.subr.mxu0 0.0
        %2290 = vmatpush1.msra.mxu0 0.0
        %2291 = vmatprep.subr.mxu0 0.0
        %2292 = vmatpush1.msra.mxu0 0.0
        %2293 = vmatprep.subr.mxu0 0.0
        %2294 = vmatpush1.msra.mxu0 0.0
        %2295 = vmatprep.subr.mxu0 0.0
        %2296 = vmatpush1.msra.mxu0 0.0
        %2297 = vmatprep.subr.mxu0 0.0
        %2298 = vmatpush1.msra.mxu0 0.0
        %2299 = vmatprep.subr.mxu0 0.0
        %2300 = vmatpush1.msra.mxu0 0.0
        %2301 = vmatprep.subr.mxu0 0.0
        %2302 = vmatpush1.msra.mxu0 0.0
        %2303 = vmatprep.subr.mxu0 0.0
        %v2304 = vand.u32 %v2192, 4294901760
        %v2305 = vsub.f32 %v2192, %v2304
        %v2306 = vand.u32 %v2305, 4294901760
        %v2307 = vsub.f32 %v2305, %v2306
        %v2308 = vand.u32 %v2307, 4294901760
        %2309 = vmatpush1.msra.mxu0 %v2308
        %2310 = vmatprep.subr.mxu0 0.0
        %2311 = vmatpush2.msra.mxu0 0.0
        %2312 = vmatprep.subr.mxu0 0.0
        %2313 = vmatpush2.msra.mxu0 0.0
        %2314 = vmatprep.subr.mxu0 0.0
        %2315 = vmatpush2.msra.mxu0 0.0
        %2316 = vmatprep.subr.mxu0 0.0
        %2317 = vmatpush2.msra.mxu0 0.0
        %2318 = vmatprep.subr.mxu0 0.0
        %2319 = vmatpush2.msra.mxu0 0.0
        %2320 = vmatprep.subr.mxu0 0.0
        %2321 = vmatpush2.msra.mxu0 0.0
        %2322 = vmatprep.subr.mxu0 0.0
        %2323 = vmatpush2.msra.mxu0 0.0
        %2324 = vmatprep.subr.mxu0 0.0
        %2325 = vmatpush2.msra.mxu0 0.0
        %2326 = vmatprep.subr.mxu0 0.0
        %2327 = vmatpush2.msra.mxu0 0.0
        %2328 = vmatprep.subr.mxu0 0.0
        %2329 = vmatpush2.msra.mxu0 0.0
        %2330 = vmatprep.subr.mxu0 0.0
        %2331 = vmatpush2.msra.mxu0 0.0
        %2332 = vmatprep.subr.mxu0 0.0
        %2333 = vmatpush2.msra.mxu0 0.0
        %2334 = vmatprep.subr.mxu0 0.0
        %2335 = vmatpush2.msra.mxu0 0.0
        %2336 = vmatprep.subr.mxu0 0.0
        %2337 = vmatpush2.msra.mxu0 0.0
        %2338 = vmatprep.subr.mxu0 0.0
        %2339 = vmatpush2.msra.mxu0 0.0
        %2340 = vmatprep.subr.mxu0 0.0
        %2341 = vmatpush2.msra.mxu0 0.0
        %2342 = vmatprep.mubr.f32.mxu0 0.0
        %v2343 = vand.u32 %v2195, 4294901760
        %2344 = vmatmul.mubr.f32.gmra.mxu0 %v2343
        %v2345 = vpop.f32.mrf.mxu0
        %v2346 = vadd.f32 %v2270, %v2345
        %v2347 = vpop.f32.mrf.mxu0
        %2348 = vdwg.mxu0
        %2349 = vmatprep.subr.mxu0 0.0
        %2350 = vmatpush1.msra.mxu0 0.0
        %2351 = vmatprep.subr.mxu0 0.0
        %2352 = vmatpush1.msra.mxu0 0.0
        %2353 = vmatprep.subr.mxu0 0.0
        %2354 = vmatpush1.msra.mxu0 0.0
        %2355 = vmatprep.subr.mxu0 0.0
        %2356 = vmatpush1.msra.mxu0 0.0
        %2357 = vmatprep.subr.mxu0 0.0
        %2358 = vmatpush1.msra.mxu0 0.0
        %2359 = vmatprep.subr.mxu0 0.0
        %2360 = vmatpush1.msra.mxu0 0.0
        %2361 = vmatprep.subr.mxu0 0.0
        %2362 = vmatpush1.msra.mxu0 0.0
        %2363 = vmatprep.subr.mxu0 0.0
        %2364 = vmatpush1.msra.mxu0 0.0
        %2365 = vmatprep.subr.mxu0 0.0
        %2366 = vmatpush1.msra.mxu0 0.0
        %2367 = vmatprep.subr.mxu0 0.0
        %2368 = vmatpush1.msra.mxu0 0.0
        %2369 = vmatprep.subr.mxu0 0.0
        %2370 = vmatpush1.msra.mxu0 0.0
        %2371 = vmatprep.subr.mxu0 0.0
        %2372 = vmatpush1.msra.mxu0 0.0
        %2373 = vmatprep.subr.mxu0 0.0
        %2374 = vmatpush1.msra.mxu0 0.0
        %2375 = vmatprep.subr.mxu0 0.0
        %2376 = vmatpush1.msra.mxu0 0.0
        %2377 = vmatprep.subr.mxu0 0.0
        %2378 = vmatpush1.msra.mxu0 0.0
        %2379 = vmatprep.subr.mxu0 0.0
        %v2380 = vand.u32 %v2192, 4294901760
        %v2381 = vsub.f32 %v2192, %v2380
        %2382 = vmatpush1.msra.mxu0 %v2381
        %2383 = vmatprep.subr.mxu0 0.0
        %2384 = vmatpush2.msra.mxu0 0.0
        %2385 = vmatprep.subr.mxu0 0.0
        %2386 = vmatpush2.msra.mxu0 0.0
        %2387 = vmatprep.subr.mxu0 0.0
        %2388 = vmatpush2.msra.mxu0 0.0
        %2389 = vmatprep.subr.mxu0 0.0
        %2390 = vmatpush2.msra.mxu0 0.0
        %2391 = vmatprep.subr.mxu0 0.0
        %2392 = vmatpush2.msra.mxu0 0.0
        %2393 = vmatprep.subr.mxu0 0.0
        %2394 = vmatpush2.msra.mxu0 0.0
        %2395 = vmatprep.subr.mxu0 0.0
        %2396 = vmatpush2.msra.mxu0 0.0
        %2397 = vmatprep.subr.mxu0 0.0
        %2398 = vmatpush2.msra.mxu0 0.0
        %2399 = vmatprep.subr.mxu0 0.0
        %2400 = vmatpush2.msra.mxu0 0.0
        %2401 = vmatprep.subr.mxu0 0.0
        %2402 = vmatpush2.msra.mxu0 0.0
        %2403 = vmatprep.subr.mxu0 0.0
        %2404 = vmatpush2.msra.mxu0 0.0
        %2405 = vmatprep.subr.mxu0 0.0
        %2406 = vmatpush2.msra.mxu0 0.0
        %2407 = vmatprep.subr.mxu0 0.0
        %2408 = vmatpush2.msra.mxu0 0.0
        %2409 = vmatprep.subr.mxu0 0.0
        %2410 = vmatpush2.msra.mxu0 0.0
        %2411 = vmatprep.subr.mxu0 0.0
        %2412 = vmatpush2.msra.mxu0 0.0
        %2413 = vmatprep.subr.mxu0 0.0
        %2414 = vmatpush2.msra.mxu0 0.0
        %2415 = vmatprep.mubr.f32.mxu0 0.0
        %v2416 = vand.u32 %v2195, 4294901760
        %v2417 = vsub.f32 %v2195, %v2416
        %2418 = vmatmul.mubr.f32.gmra.mxu0 %v2417
        %v2419 = vpop.f32.mrf.mxu0
        %v2420 = vadd.f32 %v2346, %v2419
        %v2421 = vpop.f32.mrf.mxu0
        %2422 = vdwg.mxu0
        %2423 = vmatprep.subr.mxu0 0.0
        %2424 = vmatpush1.msra.mxu0 0.0
        %2425 = vmatprep.subr.mxu0 0.0
        %2426 = vmatpush1.msra.mxu0 0.0
        %2427 = vmatprep.subr.mxu0 0.0
        %2428 = vmatpush1.msra.mxu0 0.0
        %2429 = vmatprep.subr.mxu0 0.0
        %2430 = vmatpush1.msra.mxu0 0.0
        %2431 = vmatprep.subr.mxu0 0.0
        %2432 = vmatpush1.msra.mxu0 0.0
        %2433 = vmatprep.subr.mxu0 0.0
        %2434 = vmatpush1.msra.mxu0 0.0
        %2435 = vmatprep.subr.mxu0 0.0
        %2436 = vmatpush1.msra.mxu0 0.0
        %2437 = vmatprep.subr.mxu0 0.0
        %2438 = vmatpush1.msra.mxu0 0.0
        %2439 = vmatprep.subr.mxu0 0.0
        %2440 = vmatpush1.msra.mxu0 0.0
        %2441 = vmatprep.subr.mxu0 0.0
        %2442 = vmatpush1.msra.mxu0 0.0
        %2443 = vmatprep.subr.mxu0 0.0
        %2444 = vmatpush1.msra.mxu0 0.0
        %2445 = vmatprep.subr.mxu0 0.0
        %2446 = vmatpush1.msra.mxu0 0.0
        %2447 = vmatprep.subr.mxu0 0.0
        %2448 = vmatpush1.msra.mxu0 0.0
        %2449 = vmatprep.subr.mxu0 0.0
        %2450 = vmatpush1.msra.mxu0 0.0
        %2451 = vmatprep.subr.mxu0 0.0
        %2452 = vmatpush1.msra.mxu0 0.0
        %2453 = vmatprep.subr.mxu0 0.0
        %v2454 = vand.u32 %v2192, 4294901760
        %2455 = vmatpush1.msra.mxu0 %v2454
        %2456 = vmatprep.subr.mxu0 0.0
        %2457 = vmatpush2.msra.mxu0 0.0
        %2458 = vmatprep.subr.mxu0 0.0
        %2459 = vmatpush2.msra.mxu0 0.0
        %2460 = vmatprep.subr.mxu0 0.0
        %2461 = vmatpush2.msra.mxu0 0.0
        %2462 = vmatprep.subr.mxu0 0.0
        %2463 = vmatpush2.msra.mxu0 0.0
        %2464 = vmatprep.subr.mxu0 0.0
        %2465 = vmatpush2.msra.mxu0 0.0
        %2466 = vmatprep.subr.mxu0 0.0
        %2467 = vmatpush2.msra.mxu0 0.0
        %2468 = vmatprep.subr.mxu0 0.0
        %2469 = vmatpush2.msra.mxu0 0.0
        %2470 = vmatprep.subr.mxu0 0.0
        %2471 = vmatpush2.msra.mxu0 0.0
        %2472 = vmatprep.subr.mxu0 0.0
        %2473 = vmatpush2.msra.mxu0 0.0
        %2474 = vmatprep.subr.mxu0 0.0
        %2475 = vmatpush2.msra.mxu0 0.0
        %2476 = vmatprep.subr.mxu0 0.0
        %2477 = vmatpush2.msra.mxu0 0.0
        %2478 = vmatprep.subr.mxu0 0.0
        %2479 = vmatpush2.msra.mxu0 0.0
        %2480 = vmatprep.subr.mxu0 0.0
        %2481 = vmatpush2.msra.mxu0 0.0
        %2482 = vmatprep.subr.mxu0 0.0
        %2483 = vmatpush2.msra.mxu0 0.0
        %2484 = vmatprep.subr.mxu0 0.0
        %2485 = vmatpush2.msra.mxu0 0.0
        %2486 = vmatprep.subr.mxu0 0.0
        %2487 = vmatpush2.msra.mxu0 0.0
        %2488 = vmatprep.mubr.f32.mxu0 0.0
        %v2489 = vand.u32 %v2195, 4294901760
        %v2490 = vsub.f32 %v2195, %v2489
        %v2491 = vand.u32 %v2490, 4294901760
        %2492 = vmatmul.mubr.f32.gmra.mxu0 %v2491
        %v2493 = vpop.f32.mrf.mxu0
        %v2494 = vadd.f32 %v2420, %v2493
        %v2495 = vpop.f32.mrf.mxu0
        %2496 = vdwg.mxu0
        %2497 = vmatprep.subr.mxu0 0.0
        %2498 = vmatpush1.msra.mxu0 0.0
        %2499 = vmatprep.subr.mxu0 0.0
        %2500 = vmatpush1.msra.mxu0 0.0
        %2501 = vmatprep.subr.mxu0 0.0
        %2502 = vmatpush1.msra.mxu0 0.0
        %2503 = vmatprep.subr.mxu0 0.0
        %2504 = vmatpush1.msra.mxu0 0.0
        %2505 = vmatprep.subr.mxu0 0.0
        %2506 = vmatpush1.msra.mxu0 0.0
        %2507 = vmatprep.subr.mxu0 0.0
        %2508 = vmatpush1.msra.mxu0 0.0
        %2509 = vmatprep.subr.mxu0 0.0
        %2510 = vmatpush1.msra.mxu0 0.0
        %2511 = vmatprep.subr.mxu0 0.0
        %2512 = vmatpush1.msra.mxu0 0.0
        %2513 = vmatprep.subr.mxu0 0.0
        %2514 = vmatpush1.msra.mxu0 0.0
        %2515 = vmatprep.subr.mxu0 0.0
        %2516 = vmatpush1.msra.mxu0 0.0
        %2517 = vmatprep.subr.mxu0 0.0
        %2518 = vmatpush1.msra.mxu0 0.0
        %2519 = vmatprep.subr.mxu0 0.0
        %2520 = vmatpush1.msra.mxu0 0.0
        %2521 = vmatprep.subr.mxu0 0.0
        %2522 = vmatpush1.msra.mxu0 0.0
        %2523 = vmatprep.subr.mxu0 0.0
        %2524 = vmatpush1.msra.mxu0 0.0
        %2525 = vmatprep.subr.mxu0 0.0
        %2526 = vmatpush1.msra.mxu0 0.0
        %2527 = vmatprep.subr.mxu0 0.0
        %v2528 = vand.u32 %v2192, 4294901760
        %v2529 = vsub.f32 %v2192, %v2528
        %v2530 = vand.u32 %v2529, 4294901760
        %2531 = vmatpush1.msra.mxu0 %v2530
        %2532 = vmatprep.subr.mxu0 0.0
        %2533 = vmatpush2.msra.mxu0 0.0
        %2534 = vmatprep.subr.mxu0 0.0
        %2535 = vmatpush2.msra.mxu0 0.0
        %2536 = vmatprep.subr.mxu0 0.0
        %2537 = vmatpush2.msra.mxu0 0.0
        %2538 = vmatprep.subr.mxu0 0.0
        %2539 = vmatpush2.msra.mxu0 0.0
        %2540 = vmatprep.subr.mxu0 0.0
        %2541 = vmatpush2.msra.mxu0 0.0
        %2542 = vmatprep.subr.mxu0 0.0
        %2543 = vmatpush2.msra.mxu0 0.0
        %2544 = vmatprep.subr.mxu0 0.0
        %2545 = vmatpush2.msra.mxu0 0.0
        %2546 = vmatprep.subr.mxu0 0.0
        %2547 = vmatpush2.msra.mxu0 0.0
        %2548 = vmatprep.subr.mxu0 0.0
        %2549 = vmatpush2.msra.mxu0 0.0
        %2550 = vmatprep.subr.mxu0 0.0
        %2551 = vmatpush2.msra.mxu0 0.0
        %2552 = vmatprep.subr.mxu0 0.0
        %2553 = vmatpush2.msra.mxu0 0.0
        %2554 = vmatprep.subr.mxu0 0.0
        %2555 = vmatpush2.msra.mxu0 0.0
        %2556 = vmatprep.subr.mxu0 0.0
        %2557 = vmatpush2.msra.mxu0 0.0
        %2558 = vmatprep.subr.mxu0 0.0
        %2559 = vmatpush2.msra.mxu0 0.0
        %2560 = vmatprep.subr.mxu0 0.0
        %2561 = vmatpush2.msra.mxu0 0.0
        %2562 = vmatprep.subr.mxu0 0.0
        %2563 = vmatpush2.msra.mxu0 0.0
        %2564 = vmatprep.mubr.f32.mxu0 0.0
        %v2565 = vand.u32 %v2195, 4294901760
        %2566 = vmatmul.mubr.f32.gmra.mxu0 %v2565
        %v2567 = vpop.f32.mrf.mxu0
        %v2568 = vadd.f32 %v2494, %v2567
        %v2569 = vpop.f32.mrf.mxu0
        %2570 = vdwg.mxu0
        %2571 = vmatprep.subr.mxu0 0.0
        %2572 = vmatpush1.msra.mxu0 0.0
        %2573 = vmatprep.subr.mxu0 0.0
        %2574 = vmatpush1.msra.mxu0 0.0
        %2575 = vmatprep.subr.mxu0 0.0
        %2576 = vmatpush1.msra.mxu0 0.0
        %2577 = vmatprep.subr.mxu0 0.0
        %2578 = vmatpush1.msra.mxu0 0.0
        %2579 = vmatprep.subr.mxu0 0.0
        %2580 = vmatpush1.msra.mxu0 0.0
        %2581 = vmatprep.subr.mxu0 0.0
        %2582 = vmatpush1.msra.mxu0 0.0
        %2583 = vmatprep.subr.mxu0 0.0
        %2584 = vmatpush1.msra.mxu0 0.0
        %2585 = vmatprep.subr.mxu0 0.0
        %2586 = vmatpush1.msra.mxu0 0.0
        %2587 = vmatprep.subr.mxu0 0.0
        %2588 = vmatpush1.msra.mxu0 0.0
        %2589 = vmatprep.subr.mxu0 0.0
        %2590 = vmatpush1.msra.mxu0 0.0
        %2591 = vmatprep.subr.mxu0 0.0
        %2592 = vmatpush1.msra.mxu0 0.0
        %2593 = vmatprep.subr.mxu0 0.0
        %2594 = vmatpush1.msra.mxu0 0.0
        %2595 = vmatprep.subr.mxu0 0.0
        %2596 = vmatpush1.msra.mxu0 0.0
        %2597 = vmatprep.subr.mxu0 0.0
        %2598 = vmatpush1.msra.mxu0 0.0
        %2599 = vmatprep.subr.mxu0 0.0
        %2600 = vmatpush1.msra.mxu0 0.0
        %2601 = vmatprep.subr.mxu0 0.0
        %v2602 = vand.u32 %v2192, 4294901760
        %2603 = vmatpush1.msra.mxu0 %v2602
        %2604 = vmatprep.subr.mxu0 0.0
        %2605 = vmatpush2.msra.mxu0 0.0
        %2606 = vmatprep.subr.mxu0 0.0
        %2607 = vmatpush2.msra.mxu0 0.0
        %2608 = vmatprep.subr.mxu0 0.0
        %2609 = vmatpush2.msra.mxu0 0.0
        %2610 = vmatprep.subr.mxu0 0.0
        %2611 = vmatpush2.msra.mxu0 0.0
        %2612 = vmatprep.subr.mxu0 0.0
        %2613 = vmatpush2.msra.mxu0 0.0
        %2614 = vmatprep.subr.mxu0 0.0
        %2615 = vmatpush2.msra.mxu0 0.0
        %2616 = vmatprep.subr.mxu0 0.0
        %2617 = vmatpush2.msra.mxu0 0.0
        %2618 = vmatprep.subr.mxu0 0.0
        %2619 = vmatpush2.msra.mxu0 0.0
        %2620 = vmatprep.subr.mxu0 0.0
        %2621 = vmatpush2.msra.mxu0 0.0
        %2622 = vmatprep.subr.mxu0 0.0
        %2623 = vmatpush2.msra.mxu0 0.0
        %2624 = vmatprep.subr.mxu0 0.0
        %2625 = vmatpush2.msra.mxu0 0.0
        %2626 = vmatprep.subr.mxu0 0.0
        %2627 = vmatpush2.msra.mxu0 0.0
        %2628 = vmatprep.subr.mxu0 0.0
        %2629 = vmatpush2.msra.mxu0 0.0
        %2630 = vmatprep.subr.mxu0 0.0
        %2631 = vmatpush2.msra.mxu0 0.0
        %2632 = vmatprep.subr.mxu0 0.0
        %2633 = vmatpush2.msra.mxu0 0.0
        %2634 = vmatprep.subr.mxu0 0.0
        %2635 = vmatpush2.msra.mxu0 0.0
        %2636 = vmatprep.mubr.f32.mxu0 0.0
        %v2637 = vand.u32 %v2195, 4294901760
        %2638 = vmatmul.mubr.f32.gmra.mxu0 %v2637
        %v2639 = vpop.f32.mrf.mxu0
        %v2640 = vadd.f32 %v2568, %v2639
        %v2641 = vpop.f32.mrf.mxu0
        %2642 = vdwg.mxu0
        %v2643 = vrcp.pop %v2190
        %v2644 = vmul.f32 %v2640, %v2643
        %2646 = vrot.lane.b32.xlu0 %v2644, 8
        %v2647 = vpop.permute.xlu0 %2646
        %vm2649 = vcmask 130112
        %2650 = vst.msk [vmem:[#allocation3] sm:$0xff] %vm2649, %v2647
        %v2651 = vld [vmem:[%s798] sm:$0xff]
        %v2652 = vld [vmem:[#allocation2] sm:$0xff]
        %2654 = vrot.lane.b32.xlu0 %v2651, 112
        %v2655 = vpop.permute.xlu0 %2654
        %2657 = vrot.lane.b32.xlu0 %v2652, 80
        %v2658 = vpop.permute.xlu0 %2657
        %v2659 = vsel %vm804, %v2655, 0
        %v2661 = vsel %vm804, %v2658, 0
        %2663 = vmatprep.subr.mxu0 0.0
        %2664 = vmatpush1.xpose.msra.mxu0 0.0
        %2665 = vmatprep.subr.mxu0 0.0
        %2666 = vmatpush1.xpose.msra.mxu0 0.0
        %2667 = vmatprep.subr.mxu0 0.0
        %2668 = vmatpush1.xpose.msra.mxu0 0.0
        %2669 = vmatprep.subr.mxu0 0.0
        %2670 = vmatpush1.xpose.msra.mxu0 0.0
        %2671 = vmatprep.subr.mxu0 0.0
        %2672 = vmatpush1.xpose.msra.mxu0 0.0
        %2673 = vmatprep.subr.mxu0 0.0
        %2674 = vmatpush1.xpose.msra.mxu0 0.0
        %2675 = vmatprep.subr.mxu0 0.0
        %2676 = vmatpush1.xpose.msra.mxu0 0.0
        %2677 = vmatprep.subr.mxu0 0.0
        %2678 = vmatpush1.xpose.msra.mxu0 0.0
        %2679 = vmatprep.subr.mxu0 0.0
        %2680 = vmatpush1.xpose.msra.mxu0 0.0
        %2681 = vmatprep.subr.mxu0 0.0
        %2682 = vmatpush1.xpose.msra.mxu0 0.0
        %2683 = vmatprep.subr.mxu0 0.0
        %2684 = vmatpush1.xpose.msra.mxu0 0.0
        %2685 = vmatprep.subr.mxu0 0.0
        %2686 = vmatpush1.xpose.msra.mxu0 0.0
        %2687 = vmatprep.subr.mxu0 0.0
        %2688 = vmatpush1.xpose.msra.mxu0 0.0
        %2689 = vmatprep.subr.mxu0 0.0
        %2690 = vmatpush1.xpose.msra.mxu0 0.0
        %2691 = vmatprep.subr.mxu0 0.0
        %2692 = vmatpush1.xpose.msra.mxu0 0.0
        %2693 = vmatprep.subr.mxu0 0.0
        %v2694 = vand.u32 %v2661, 4294901760
        %2695 = vmatpush1.xpose.msra.mxu0 %v2694
        %2696 = vmatprep.subr.mxu0 0.0
        %2697 = vmatpush2.xpose.msra.mxu0 0.0
        %2698 = vmatprep.subr.mxu0 0.0
        %2699 = vmatpush2.xpose.msra.mxu0 0.0
        %2700 = vmatprep.subr.mxu0 0.0
        %2701 = vmatpush2.xpose.msra.mxu0 0.0
        %2702 = vmatprep.subr.mxu0 0.0
        %2703 = vmatpush2.xpose.msra.mxu0 0.0
        %2704 = vmatprep.subr.mxu0 0.0
        %2705 = vmatpush2.xpose.msra.mxu0 0.0
        %2706 = vmatprep.subr.mxu0 0.0
        %2707 = vmatpush2.xpose.msra.mxu0 0.0
        %2708 = vmatprep.subr.mxu0 0.0
        %2709 = vmatpush2.xpose.msra.mxu0 0.0
        %2710 = vmatprep.subr.mxu0 0.0
        %2711 = vmatpush2.xpose.msra.mxu0 0.0
        %2712 = vmatprep.subr.mxu0 0.0
        %2713 = vmatpush2.xpose.msra.mxu0 0.0
        %2714 = vmatprep.subr.mxu0 0.0
        %2715 = vmatpush2.xpose.msra.mxu0 0.0
        %2716 = vmatprep.subr.mxu0 0.0
        %2717 = vmatpush2.xpose.msra.mxu0 0.0
        %2718 = vmatprep.subr.mxu0 0.0
        %2719 = vmatpush2.xpose.msra.mxu0 0.0
        %2720 = vmatprep.subr.mxu0 0.0
        %2721 = vmatpush2.xpose.msra.mxu0 0.0
        %2722 = vmatprep.subr.mxu0 0.0
        %2723 = vmatpush2.xpose.msra.mxu0 0.0
        %2724 = vmatprep.subr.mxu0 0.0
        %2725 = vmatpush2.xpose.msra.mxu0 0.0
        %2726 = vmatprep.subr.mxu0 0.0
        %2727 = vmatpush2.xpose.msra.mxu0 0.0
        %2728 = vmatprep.mubr.f32.mxu0 0.0
        %v2729 = vand.u32 %v2659, 4294901760
        %v2730 = vsub.f32 %v2659, %v2729
        %v2731 = vand.u32 %v2730, 4294901760
        %v2732 = vsub.f32 %v2730, %v2731
        %v2733 = vand.u32 %v2732, 4294901760
        %2734 = vmatmul.mubr.f32.gmra.mxu0 %v2733
        %v2735 = vpop.f32.mrf.mxu0
        %v2736 = vadd.f32 0.0, %v2735
        %v2737 = vpop.f32.mrf.mxu0
        %2738 = vdwg.mxu0
        %2739 = vmatprep.subr.mxu0 0.0
        %2740 = vmatpush1.xpose.msra.mxu0 0.0
        %2741 = vmatprep.subr.mxu0 0.0
        %2742 = vmatpush1.xpose.msra.mxu0 0.0
        %2743 = vmatprep.subr.mxu0 0.0
        %2744 = vmatpush1.xpose.msra.mxu0 0.0
        %2745 = vmatprep.subr.mxu0 0.0
        %2746 = vmatpush1.xpose.msra.mxu0 0.0
        %2747 = vmatprep.subr.mxu0 0.0
        %2748 = vmatpush1.xpose.msra.mxu0 0.0
        %2749 = vmatprep.subr.mxu0 0.0
        %2750 = vmatpush1.xpose.msra.mxu0 0.0
        %2751 = vmatprep.subr.mxu0 0.0
        %2752 = vmatpush1.xpose.msra.mxu0 0.0
        %2753 = vmatprep.subr.mxu0 0.0
        %2754 = vmatpush1.xpose.msra.mxu0 0.0
        %2755 = vmatprep.subr.mxu0 0.0
        %2756 = vmatpush1.xpose.msra.mxu0 0.0
        %2757 = vmatprep.subr.mxu0 0.0
        %2758 = vmatpush1.xpose.msra.mxu0 0.0
        %2759 = vmatprep.subr.mxu0 0.0
        %2760 = vmatpush1.xpose.msra.mxu0 0.0
        %2761 = vmatprep.subr.mxu0 0.0
        %2762 = vmatpush1.xpose.msra.mxu0 0.0
        %2763 = vmatprep.subr.mxu0 0.0
        %2764 = vmatpush1.xpose.msra.mxu0 0.0
        %2765 = vmatprep.subr.mxu0 0.0
        %2766 = vmatpush1.xpose.msra.mxu0 0.0
        %2767 = vmatprep.subr.mxu0 0.0
        %2768 = vmatpush1.xpose.msra.mxu0 0.0
        %2769 = vmatprep.subr.mxu0 0.0
        %v2770 = vand.u32 %v2661, 4294901760
        %v2771 = vsub.f32 %v2661, %v2770
        %v2772 = vand.u32 %v2771, 4294901760
        %v2773 = vsub.f32 %v2771, %v2772
        %v2774 = vand.u32 %v2773, 4294901760
        %2775 = vmatpush1.xpose.msra.mxu0 %v2774
        %2776 = vmatprep.subr.mxu0 0.0
        %2777 = vmatpush2.xpose.msra.mxu0 0.0
        %2778 = vmatprep.subr.mxu0 0.0
        %2779 = vmatpush2.xpose.msra.mxu0 0.0
        %2780 = vmatprep.subr.mxu0 0.0
        %2781 = vmatpush2.xpose.msra.mxu0 0.0
        %2782 = vmatprep.subr.mxu0 0.0
        %2783 = vmatpush2.xpose.msra.mxu0 0.0
        %2784 = vmatprep.subr.mxu0 0.0
        %2785 = vmatpush2.xpose.msra.mxu0 0.0
        %2786 = vmatprep.subr.mxu0 0.0
        %2787 = vmatpush2.xpose.msra.mxu0 0.0
        %2788 = vmatprep.subr.mxu0 0.0
        %2789 = vmatpush2.xpose.msra.mxu0 0.0
        %2790 = vmatprep.subr.mxu0 0.0
        %2791 = vmatpush2.xpose.msra.mxu0 0.0
        %2792 = vmatprep.subr.mxu0 0.0
        %2793 = vmatpush2.xpose.msra.mxu0 0.0
        %2794 = vmatprep.subr.mxu0 0.0
        %2795 = vmatpush2.xpose.msra.mxu0 0.0
        %2796 = vmatprep.subr.mxu0 0.0
        %2797 = vmatpush2.xpose.msra.mxu0 0.0
        %2798 = vmatprep.subr.mxu0 0.0
        %2799 = vmatpush2.xpose.msra.mxu0 0.0
        %2800 = vmatprep.subr.mxu0 0.0
        %2801 = vmatpush2.xpose.msra.mxu0 0.0
        %2802 = vmatprep.subr.mxu0 0.0
        %2803 = vmatpush2.xpose.msra.mxu0 0.0
        %2804 = vmatprep.subr.mxu0 0.0
        %2805 = vmatpush2.xpose.msra.mxu0 0.0
        %2806 = vmatprep.subr.mxu0 0.0
        %2807 = vmatpush2.xpose.msra.mxu0 0.0
        %2808 = vmatprep.mubr.f32.mxu0 0.0
        %v2809 = vand.u32 %v2659, 4294901760
        %2810 = vmatmul.mubr.f32.gmra.mxu0 %v2809
        %v2811 = vpop.f32.mrf.mxu0
        %v2812 = vadd.f32 %v2736, %v2811
        %v2813 = vpop.f32.mrf.mxu0
        %2814 = vdwg.mxu0
        %2815 = vmatprep.subr.mxu0 0.0
        %2816 = vmatpush1.xpose.msra.mxu0 0.0
        %2817 = vmatprep.subr.mxu0 0.0
        %2818 = vmatpush1.xpose.msra.mxu0 0.0
        %2819 = vmatprep.subr.mxu0 0.0
        %2820 = vmatpush1.xpose.msra.mxu0 0.0
        %2821 = vmatprep.subr.mxu0 0.0
        %2822 = vmatpush1.xpose.msra.mxu0 0.0
        %2823 = vmatprep.subr.mxu0 0.0
        %2824 = vmatpush1.xpose.msra.mxu0 0.0
        %2825 = vmatprep.subr.mxu0 0.0
        %2826 = vmatpush1.xpose.msra.mxu0 0.0
        %2827 = vmatprep.subr.mxu0 0.0
        %2828 = vmatpush1.xpose.msra.mxu0 0.0
        %2829 = vmatprep.subr.mxu0 0.0
        %2830 = vmatpush1.xpose.msra.mxu0 0.0
        %2831 = vmatprep.subr.mxu0 0.0
        %2832 = vmatpush1.xpose.msra.mxu0 0.0
        %2833 = vmatprep.subr.mxu0 0.0
        %2834 = vmatpush1.xpose.msra.mxu0 0.0
        %2835 = vmatprep.subr.mxu0 0.0
        %2836 = vmatpush1.xpose.msra.mxu0 0.0
        %2837 = vmatprep.subr.mxu0 0.0
        %2838 = vmatpush1.xpose.msra.mxu0 0.0
        %2839 = vmatprep.subr.mxu0 0.0
        %2840 = vmatpush1.xpose.msra.mxu0 0.0
        %2841 = vmatprep.subr.mxu0 0.0
        %2842 = vmatpush1.xpose.msra.mxu0 0.0
        %2843 = vmatprep.subr.mxu0 0.0
        %2844 = vmatpush1.xpose.msra.mxu0 0.0
        %2845 = vmatprep.subr.mxu0 0.0
        %v2846 = vand.u32 %v2661, 4294901760
        %v2847 = vsub.f32 %v2661, %v2846
        %2848 = vmatpush1.xpose.msra.mxu0 %v2847
        %2849 = vmatprep.subr.mxu0 0.0
        %2850 = vmatpush2.xpose.msra.mxu0 0.0
        %2851 = vmatprep.subr.mxu0 0.0
        %2852 = vmatpush2.xpose.msra.mxu0 0.0
        %2853 = vmatprep.subr.mxu0 0.0
        %2854 = vmatpush2.xpose.msra.mxu0 0.0
        %2855 = vmatprep.subr.mxu0 0.0
        %2856 = vmatpush2.xpose.msra.mxu0 0.0
        %2857 = vmatprep.subr.mxu0 0.0
        %2858 = vmatpush2.xpose.msra.mxu0 0.0
        %2859 = vmatprep.subr.mxu0 0.0
        %2860 = vmatpush2.xpose.msra.mxu0 0.0
        %2861 = vmatprep.subr.mxu0 0.0
        %2862 = vmatpush2.xpose.msra.mxu0 0.0
        %2863 = vmatprep.subr.mxu0 0.0
        %2864 = vmatpush2.xpose.msra.mxu0 0.0
        %2865 = vmatprep.subr.mxu0 0.0
        %2866 = vmatpush2.xpose.msra.mxu0 0.0
        %2867 = vmatprep.subr.mxu0 0.0
        %2868 = vmatpush2.xpose.msra.mxu0 0.0
        %2869 = vmatprep.subr.mxu0 0.0
        %2870 = vmatpush2.xpose.msra.mxu0 0.0
        %2871 = vmatprep.subr.mxu0 0.0
        %2872 = vmatpush2.xpose.msra.mxu0 0.0
        %2873 = vmatprep.subr.mxu0 0.0
        %2874 = vmatpush2.xpose.msra.mxu0 0.0
        %2875 = vmatprep.subr.mxu0 0.0
        %2876 = vmatpush2.xpose.msra.mxu0 0.0
        %2877 = vmatprep.subr.mxu0 0.0
        %2878 = vmatpush2.xpose.msra.mxu0 0.0
        %2879 = vmatprep.subr.mxu0 0.0
        %2880 = vmatpush2.xpose.msra.mxu0 0.0
        %2881 = vmatprep.mubr.f32.mxu0 0.0
        %v2882 = vand.u32 %v2659, 4294901760
        %v2883 = vsub.f32 %v2659, %v2882
        %2884 = vmatmul.mubr.f32.gmra.mxu0 %v2883
        %v2885 = vpop.f32.mrf.mxu0
        %v2886 = vadd.f32 %v2812, %v2885
        %v2887 = vpop.f32.mrf.mxu0
        %2888 = vdwg.mxu0
        %2889 = vmatprep.subr.mxu0 0.0
        %2890 = vmatpush1.xpose.msra.mxu0 0.0
        %2891 = vmatprep.subr.mxu0 0.0
        %2892 = vmatpush1.xpose.msra.mxu0 0.0
        %2893 = vmatprep.subr.mxu0 0.0
        %2894 = vmatpush1.xpose.msra.mxu0 0.0
        %2895 = vmatprep.subr.mxu0 0.0
        %2896 = vmatpush1.xpose.msra.mxu0 0.0
        %2897 = vmatprep.subr.mxu0 0.0
        %2898 = vmatpush1.xpose.msra.mxu0 0.0
        %2899 = vmatprep.subr.mxu0 0.0
        %2900 = vmatpush1.xpose.msra.mxu0 0.0
        %2901 = vmatprep.subr.mxu0 0.0
        %2902 = vmatpush1.xpose.msra.mxu0 0.0
        %2903 = vmatprep.subr.mxu0 0.0
        %2904 = vmatpush1.xpose.msra.mxu0 0.0
        %2905 = vmatprep.subr.mxu0 0.0
        %2906 = vmatpush1.xpose.msra.mxu0 0.0
        %2907 = vmatprep.subr.mxu0 0.0
        %2908 = vmatpush1.xpose.msra.mxu0 0.0
        %2909 = vmatprep.subr.mxu0 0.0
        %2910 = vmatpush1.xpose.msra.mxu0 0.0
        %2911 = vmatprep.subr.mxu0 0.0
        %2912 = vmatpush1.xpose.msra.mxu0 0.0
        %2913 = vmatprep.subr.mxu0 0.0
        %2914 = vmatpush1.xpose.msra.mxu0 0.0
        %2915 = vmatprep.subr.mxu0 0.0
        %2916 = vmatpush1.xpose.msra.mxu0 0.0
        %2917 = vmatprep.subr.mxu0 0.0
        %2918 = vmatpush1.xpose.msra.mxu0 0.0
        %2919 = vmatprep.subr.mxu0 0.0
        %v2920 = vand.u32 %v2661, 4294901760
        %2921 = vmatpush1.xpose.msra.mxu0 %v2920
        %2922 = vmatprep.subr.mxu0 0.0
        %2923 = vmatpush2.xpose.msra.mxu0 0.0
        %2924 = vmatprep.subr.mxu0 0.0
        %2925 = vmatpush2.xpose.msra.mxu0 0.0
        %2926 = vmatprep.subr.mxu0 0.0
        %2927 = vmatpush2.xpose.msra.mxu0 0.0
        %2928 = vmatprep.subr.mxu0 0.0
        %2929 = vmatpush2.xpose.msra.mxu0 0.0
        %2930 = vmatprep.subr.mxu0 0.0
        %2931 = vmatpush2.xpose.msra.mxu0 0.0
        %2932 = vmatprep.subr.mxu0 0.0
        %2933 = vmatpush2.xpose.msra.mxu0 0.0
        %2934 = vmatprep.subr.mxu0 0.0
        %2935 = vmatpush2.xpose.msra.mxu0 0.0
        %2936 = vmatprep.subr.mxu0 0.0
        %2937 = vmatpush2.xpose.msra.mxu0 0.0
        %2938 = vmatprep.subr.mxu0 0.0
        %2939 = vmatpush2.xpose.msra.mxu0 0.0
        %2940 = vmatprep.subr.mxu0 0.0
        %2941 = vmatpush2.xpose.msra.mxu0 0.0
        %2942 = vmatprep.subr.mxu0 0.0
        %2943 = vmatpush2.xpose.msra.mxu0 0.0
        %2944 = vmatprep.subr.mxu0 0.0
        %2945 = vmatpush2.xpose.msra.mxu0 0.0
        %2946 = vmatprep.subr.mxu0 0.0
        %2947 = vmatpush2.xpose.msra.mxu0 0.0
        %2948 = vmatprep.subr.mxu0 0.0
        %2949 = vmatpush2.xpose.msra.mxu0 0.0
        %2950 = vmatprep.subr.mxu0 0.0
        %2951 = vmatpush2.xpose.msra.mxu0 0.0
        %2952 = vmatprep.subr.mxu0 0.0
        %2953 = vmatpush2.xpose.msra.mxu0 0.0
        %2954 = vmatprep.mubr.f32.mxu0 0.0
        %v2955 = vand.u32 %v2659, 4294901760
        %v2956 = vsub.f32 %v2659, %v2955
        %v2957 = vand.u32 %v2956, 4294901760
        %2958 = vmatmul.mubr.f32.gmra.mxu0 %v2957
        %v2959 = vpop.f32.mrf.mxu0
        %v2960 = vadd.f32 %v2886, %v2959
        %v2961 = vpop.f32.mrf.mxu0
        %2962 = vdwg.mxu0
        %2963 = vmatprep.subr.mxu0 0.0
        %2964 = vmatpush1.xpose.msra.mxu0 0.0
        %2965 = vmatprep.subr.mxu0 0.0
        %2966 = vmatpush1.xpose.msra.mxu0 0.0
        %2967 = vmatprep.subr.mxu0 0.0
        %2968 = vmatpush1.xpose.msra.mxu0 0.0
        %2969 = vmatprep.subr.mxu0 0.0
        %2970 = vmatpush1.xpose.msra.mxu0 0.0
        %2971 = vmatprep.subr.mxu0 0.0
        %2972 = vmatpush1.xpose.msra.mxu0 0.0
        %2973 = vmatprep.subr.mxu0 0.0
        %2974 = vmatpush1.xpose.msra.mxu0 0.0
        %2975 = vmatprep.subr.mxu0 0.0
        %2976 = vmatpush1.xpose.msra.mxu0 0.0
        %2977 = vmatprep.subr.mxu0 0.0
        %2978 = vmatpush1.xpose.msra.mxu0 0.0
        %2979 = vmatprep.subr.mxu0 0.0
        %2980 = vmatpush1.xpose.msra.mxu0 0.0
        %2981 = vmatprep.subr.mxu0 0.0
        %2982 = vmatpush1.xpose.msra.mxu0 0.0
        %2983 = vmatprep.subr.mxu0 0.0
        %2984 = vmatpush1.xpose.msra.mxu0 0.0
        %2985 = vmatprep.subr.mxu0 0.0
        %2986 = vmatpush1.xpose.msra.mxu0 0.0
        %2987 = vmatprep.subr.mxu0 0.0
        %2988 = vmatpush1.xpose.msra.mxu0 0.0
        %2989 = vmatprep.subr.mxu0 0.0
        %2990 = vmatpush1.xpose.msra.mxu0 0.0
        %2991 = vmatprep.subr.mxu0 0.0
        %2992 = vmatpush1.xpose.msra.mxu0 0.0
        %2993 = vmatprep.subr.mxu0 0.0
        %v2994 = vand.u32 %v2661, 4294901760
        %v2995 = vsub.f32 %v2661, %v2994
        %v2996 = vand.u32 %v2995, 4294901760
        %2997 = vmatpush1.xpose.msra.mxu0 %v2996
        %2998 = vmatprep.subr.mxu0 0.0
        %2999 = vmatpush2.xpose.msra.mxu0 0.0
        %3000 = vmatprep.subr.mxu0 0.0
        %3001 = vmatpush2.xpose.msra.mxu0 0.0
        %3002 = vmatprep.subr.mxu0 0.0
        %3003 = vmatpush2.xpose.msra.mxu0 0.0
        %3004 = vmatprep.subr.mxu0 0.0
        %3005 = vmatpush2.xpose.msra.mxu0 0.0
        %3006 = vmatprep.subr.mxu0 0.0
        %3007 = vmatpush2.xpose.msra.mxu0 0.0
        %3008 = vmatprep.subr.mxu0 0.0
        %3009 = vmatpush2.xpose.msra.mxu0 0.0
        %3010 = vmatprep.subr.mxu0 0.0
        %3011 = vmatpush2.xpose.msra.mxu0 0.0
        %3012 = vmatprep.subr.mxu0 0.0
        %3013 = vmatpush2.xpose.msra.mxu0 0.0
        %3014 = vmatprep.subr.mxu0 0.0
        %3015 = vmatpush2.xpose.msra.mxu0 0.0
        %3016 = vmatprep.subr.mxu0 0.0
        %3017 = vmatpush2.xpose.msra.mxu0 0.0
        %3018 = vmatprep.subr.mxu0 0.0
        %3019 = vmatpush2.xpose.msra.mxu0 0.0
        %3020 = vmatprep.subr.mxu0 0.0
        %3021 = vmatpush2.xpose.msra.mxu0 0.0
        %3022 = vmatprep.subr.mxu0 0.0
        %3023 = vmatpush2.xpose.msra.mxu0 0.0
        %3024 = vmatprep.subr.mxu0 0.0
        %3025 = vmatpush2.xpose.msra.mxu0 0.0
        %3026 = vmatprep.subr.mxu0 0.0
        %3027 = vmatpush2.xpose.msra.mxu0 0.0
        %3028 = vmatprep.subr.mxu0 0.0
        %3029 = vmatpush2.xpose.msra.mxu0 0.0
        %3030 = vmatprep.mubr.f32.mxu0 0.0
        %v3031 = vand.u32 %v2659, 4294901760
        %3032 = vmatmul.mubr.f32.gmra.mxu0 %v3031
        %v3033 = vpop.f32.mrf.mxu0
        %v3034 = vadd.f32 %v2960, %v3033
        %v3035 = vpop.f32.mrf.mxu0
        %3036 = vdwg.mxu0
        %3037 = vmatprep.subr.mxu0 0.0
        %3038 = vmatpush1.xpose.msra.mxu0 0.0
        %3039 = vmatprep.subr.mxu0 0.0
        %3040 = vmatpush1.xpose.msra.mxu0 0.0
        %3041 = vmatprep.subr.mxu0 0.0
        %3042 = vmatpush1.xpose.msra.mxu0 0.0
        %3043 = vmatprep.subr.mxu0 0.0
        %3044 = vmatpush1.xpose.msra.mxu0 0.0
        %3045 = vmatprep.subr.mxu0 0.0
        %3046 = vmatpush1.xpose.msra.mxu0 0.0
        %3047 = vmatprep.subr.mxu0 0.0
        %3048 = vmatpush1.xpose.msra.mxu0 0.0
        %3049 = vmatprep.subr.mxu0 0.0
        %3050 = vmatpush1.xpose.msra.mxu0 0.0
        %3051 = vmatprep.subr.mxu0 0.0
        %3052 = vmatpush1.xpose.msra.mxu0 0.0
        %3053 = vmatprep.subr.mxu0 0.0
        %3054 = vmatpush1.xpose.msra.mxu0 0.0
        %3055 = vmatprep.subr.mxu0 0.0
        %3056 = vmatpush1.xpose.msra.mxu0 0.0
        %3057 = vmatprep.subr.mxu0 0.0
        %3058 = vmatpush1.xpose.msra.mxu0 0.0
        %3059 = vmatprep.subr.mxu0 0.0
        %3060 = vmatpush1.xpose.msra.mxu0 0.0
        %3061 = vmatprep.subr.mxu0 0.0
        %3062 = vmatpush1.xpose.msra.mxu0 0.0
        %3063 = vmatprep.subr.mxu0 0.0
        %3064 = vmatpush1.xpose.msra.mxu0 0.0
        %3065 = vmatprep.subr.mxu0 0.0
        %3066 = vmatpush1.xpose.msra.mxu0 0.0
        %3067 = vmatprep.subr.mxu0 0.0
        %v3068 = vand.u32 %v2661, 4294901760
        %3069 = vmatpush1.xpose.msra.mxu0 %v3068
        %3070 = vmatprep.subr.mxu0 0.0
        %3071 = vmatpush2.xpose.msra.mxu0 0.0
        %3072 = vmatprep.subr.mxu0 0.0
        %3073 = vmatpush2.xpose.msra.mxu0 0.0
        %3074 = vmatprep.subr.mxu0 0.0
        %3075 = vmatpush2.xpose.msra.mxu0 0.0
        %3076 = vmatprep.subr.mxu0 0.0
        %3077 = vmatpush2.xpose.msra.mxu0 0.0
        %3078 = vmatprep.subr.mxu0 0.0
        %3079 = vmatpush2.xpose.msra.mxu0 0.0
        %3080 = vmatprep.subr.mxu0 0.0
        %3081 = vmatpush2.xpose.msra.mxu0 0.0
        %3082 = vmatprep.subr.mxu0 0.0
        %3083 = vmatpush2.xpose.msra.mxu0 0.0
        %3084 = vmatprep.subr.mxu0 0.0
        %3085 = vmatpush2.xpose.msra.mxu0 0.0
        %3086 = vmatprep.subr.mxu0 0.0
        %3087 = vmatpush2.xpose.msra.mxu0 0.0
        %3088 = vmatprep.subr.mxu0 0.0
        %3089 = vmatpush2.xpose.msra.mxu0 0.0
        %3090 = vmatprep.subr.mxu0 0.0
        %3091 = vmatpush2.xpose.msra.mxu0 0.0
        %3092 = vmatprep.subr.mxu0 0.0
        %3093 = vmatpush2.xpose.msra.mxu0 0.0
        %3094 = vmatprep.subr.mxu0 0.0
        %3095 = vmatpush2.xpose.msra.mxu0 0.0
        %3096 = vmatprep.subr.mxu0 0.0
        %3097 = vmatpush2.xpose.msra.mxu0 0.0
        %3098 = vmatprep.subr.mxu0 0.0
        %3099 = vmatpush2.xpose.msra.mxu0 0.0
        %3100 = vmatprep.subr.mxu0 0.0
        %3101 = vmatpush2.xpose.msra.mxu0 0.0
        %3102 = vmatprep.mubr.f32.mxu0 0.0
        %v3103 = vand.u32 %v2659, 4294901760
        %3104 = vmatmul.mubr.f32.gmra.mxu0 %v3103
        %v3105 = vpop.f32.mrf.mxu0
        %v3106 = vadd.f32 %v3034, %v3105
        %v3107 = vpop.f32.mrf.mxu0
        %3108 = vdwg.mxu0
        %v3109 = vmul.f32 %v3106, 0.35355338
        %v3110 = vsel %vm797, %v3109, -inf
        %v3111 = vsel %vm804, %v3110, -inf
        %3112 = vmax.xlane.f32.xlu0 %v3111
        %v3113 = vpop.xlane.xlu0 %3112
        %v3114 = vsub.f32 %v3110, %v3113
        %v3115 = vmul.f32 %v3114, 1.442695
        %v3116 = vpow.pop %v3115
        %v3117 = vsel %vm804, %v3116, 0.0
        %3118 = vadd.xlane.f32.xlu0 %v3117
        %v3119 = vpop.xlane.xlu0 %3118
        %3120 = vrot.lane.b32.xlu0 %v2652, 48
        %v3121 = vpop.permute.xlu0 %3120
        %v3124 = vsel %vm804, %v3116, 0
        %3126 = vmatprep.subr.mxu0 0.0
        %3127 = vmatpush1.msra.mxu0 0.0
        %3128 = vmatprep.subr.mxu0 0.0
        %3129 = vmatpush1.msra.mxu0 0.0
        %3130 = vmatprep.subr.mxu0 0.0
        %3131 = vmatpush1.msra.mxu0 0.0
        %3132 = vmatprep.subr.mxu0 0.0
        %3133 = vmatpush1.msra.mxu0 0.0
        %3134 = vmatprep.subr.mxu0 0.0
        %3135 = vmatpush1.msra.mxu0 0.0
        %3136 = vmatprep.subr.mxu0 0.0
        %3137 = vmatpush1.msra.mxu0 0.0
        %3138 = vmatprep.subr.mxu0 0.0
        %3139 = vmatpush1.msra.mxu0 0.0
        %3140 = vmatprep.subr.mxu0 0.0
        %3141 = vmatpush1.msra.mxu0 0.0
        %3142 = vmatprep.subr.mxu0 0.0
        %3143 = vmatpush1.msra.mxu0 0.0
        %3144 = vmatprep.subr.mxu0 0.0
        %3145 = vmatpush1.msra.mxu0 0.0
        %3146 = vmatprep.subr.mxu0 0.0
        %3147 = vmatpush1.msra.mxu0 0.0
        %3148 = vmatprep.subr.mxu0 0.0
        %3149 = vmatpush1.msra.mxu0 0.0
        %3150 = vmatprep.subr.mxu0 0.0
        %3151 = vmatpush1.msra.mxu0 0.0
        %3152 = vmatprep.subr.mxu0 0.0
        %3153 = vmatpush1.msra.mxu0 0.0
        %3154 = vmatprep.subr.mxu0 0.0
        %3155 = vmatpush1.msra.mxu0 0.0
        %3156 = vmatprep.subr.mxu0 0.0
        %v3157 = vand.u32 %v3121, 4294901760
        %3158 = vmatpush1.msra.mxu0 %v3157
        %3159 = vmatprep.subr.mxu0 0.0
        %3160 = vmatpush2.msra.mxu0 0.0
        %3161 = vmatprep.subr.mxu0 0.0
        %3162 = vmatpush2.msra.mxu0 0.0
        %3163 = vmatprep.subr.mxu0 0.0
        %3164 = vmatpush2.msra.mxu0 0.0
        %3165 = vmatprep.subr.mxu0 0.0
        %3166 = vmatpush2.msra.mxu0 0.0
        %3167 = vmatprep.subr.mxu0 0.0
        %3168 = vmatpush2.msra.mxu0 0.0
        %3169 = vmatprep.subr.mxu0 0.0
        %3170 = vmatpush2.msra.mxu0 0.0
        %3171 = vmatprep.subr.mxu0 0.0
        %3172 = vmatpush2.msra.mxu0 0.0
        %3173 = vmatprep.subr.mxu0 0.0
        %3174 = vmatpush2.msra.mxu0 0.0
        %3175 = vmatprep.subr.mxu0 0.0
        %3176 = vmatpush2.msra.mxu0 0.0
        %3177 = vmatprep.subr.mxu0 0.0
        %3178 = vmatpush2.msra.mxu0 0.0
        %3179 = vmatprep.subr.mxu0 0.0
        %3180 = vmatpush2.msra.mxu0 0.0
        %3181 = vmatprep.subr.mxu0 0.0
        %3182 = vmatpush2.msra.mxu0 0.0
        %3183 = vmatprep.subr.mxu0 0.0
        %3184 = vmatpush2.msra.mxu0 0.0
        %3185 = vmatprep.subr.mxu0 0.0
        %3186 = vmatpush2.msra.mxu0 0.0
        %3187 = vmatprep.subr.mxu0 0.0
        %3188 = vmatpush2.msra.mxu0 0.0
        %3189 = vmatprep.subr.mxu0 0.0
        %3190 = vmatpush2.msra.mxu0 0.0
        %3191 = vmatprep.mubr.f32.mxu0 0.0
        %v3192 = vand.u32 %v3124, 4294901760
        %v3193 = vsub.f32 %v3124, %v3192
        %v3194 = vand.u32 %v3193, 4294901760
        %v3195 = vsub.f32 %v3193, %v3194
        %v3196 = vand.u32 %v3195, 4294901760
        %3197 = vmatmul.mubr.f32.gmra.mxu0 %v3196
        %v3198 = vpop.f32.mrf.mxu0
        %v3199 = vadd.f32 0.0, %v3198
        %v3200 = vpop.f32.mrf.mxu0
        %3201 = vdwg.mxu0
        %3202 = vmatprep.subr.mxu0 0.0
        %3203 = vmatpush1.msra.mxu0 0.0
        %3204 = vmatprep.subr.mxu0 0.0
        %3205 = vmatpush1.msra.mxu0 0.0
        %3206 = vmatprep.subr.mxu0 0.0
        %3207 = vmatpush1.msra.mxu0 0.0
        %3208 = vmatprep.subr.mxu0 0.0
        %3209 = vmatpush1.msra.mxu0 0.0
        %3210 = vmatprep.subr.mxu0 0.0
        %3211 = vmatpush1.msra.mxu0 0.0
        %3212 = vmatprep.subr.mxu0 0.0
        %3213 = vmatpush1.msra.mxu0 0.0
        %3214 = vmatprep.subr.mxu0 0.0
        %3215 = vmatpush1.msra.mxu0 0.0
        %3216 = vmatprep.subr.mxu0 0.0
        %3217 = vmatpush1.msra.mxu0 0.0
        %3218 = vmatprep.subr.mxu0 0.0
        %3219 = vmatpush1.msra.mxu0 0.0
        %3220 = vmatprep.subr.mxu0 0.0
        %3221 = vmatpush1.msra.mxu0 0.0
        %3222 = vmatprep.subr.mxu0 0.0
        %3223 = vmatpush1.msra.mxu0 0.0
        %3224 = vmatprep.subr.mxu0 0.0
        %3225 = vmatpush1.msra.mxu0 0.0
        %3226 = vmatprep.subr.mxu0 0.0
        %3227 = vmatpush1.msra.mxu0 0.0
        %3228 = vmatprep.subr.mxu0 0.0
        %3229 = vmatpush1.msra.mxu0 0.0
        %3230 = vmatprep.subr.mxu0 0.0
        %3231 = vmatpush1.msra.mxu0 0.0
        %3232 = vmatprep.subr.mxu0 0.0
        %v3233 = vand.u32 %v3121, 4294901760
        %v3234 = vsub.f32 %v3121, %v3233
        %v3235 = vand.u32 %v3234, 4294901760
        %v3236 = vsub.f32 %v3234, %v3235
        %v3237 = vand.u32 %v3236, 4294901760
        %3238 = vmatpush1.msra.mxu0 %v3237
        %3239 = vmatprep.subr.mxu0 0.0
        %3240 = vmatpush2.msra.mxu0 0.0
        %3241 = vmatprep.subr.mxu0 0.0
        %3242 = vmatpush2.msra.mxu0 0.0
        %3243 = vmatprep.subr.mxu0 0.0
        %3244 = vmatpush2.msra.mxu0 0.0
        %3245 = vmatprep.subr.mxu0 0.0
        %3246 = vmatpush2.msra.mxu0 0.0
        %3247 = vmatprep.subr.mxu0 0.0
        %3248 = vmatpush2.msra.mxu0 0.0
        %3249 = vmatprep.subr.mxu0 0.0
        %3250 = vmatpush2.msra.mxu0 0.0
        %3251 = vmatprep.subr.mxu0 0.0
        %3252 = vmatpush2.msra.mxu0 0.0
        %3253 = vmatprep.subr.mxu0 0.0
        %3254 = vmatpush2.msra.mxu0 0.0
        %3255 = vmatprep.subr.mxu0 0.0
        %3256 = vmatpush2.msra.mxu0 0.0
        %3257 = vmatprep.subr.mxu0 0.0
        %3258 = vmatpush2.msra.mxu0 0.0
        %3259 = vmatprep.subr.mxu0 0.0
        %3260 = vmatpush2.msra.mxu0 0.0
        %3261 = vmatprep.subr.mxu0 0.0
        %3262 = vmatpush2.msra.mxu0 0.0
        %3263 = vmatprep.subr.mxu0 0.0
        %3264 = vmatpush2.msra.mxu0 0.0
        %3265 = vmatprep.subr.mxu0 0.0
        %3266 = vmatpush2.msra.mxu0 0.0
        %3267 = vmatprep.subr.mxu0 0.0
        %3268 = vmatpush2.msra.mxu0 0.0
        %3269 = vmatprep.subr.mxu0 0.0
        %3270 = vmatpush2.msra.mxu0 0.0
        %3271 = vmatprep.mubr.f32.mxu0 0.0
        %v3272 = vand.u32 %v3124, 4294901760
        %3273 = vmatmul.mubr.f32.gmra.mxu0 %v3272
        %v3274 = vpop.f32.mrf.mxu0
        %v3275 = vadd.f32 %v3199, %v3274
        %v3276 = vpop.f32.mrf.mxu0
        %3277 = vdwg.mxu0
        %3278 = vmatprep.subr.mxu0 0.0
        %3279 = vmatpush1.msra.mxu0 0.0
        %3280 = vmatprep.subr.mxu0 0.0
        %3281 = vmatpush1.msra.mxu0 0.0
        %3282 = vmatprep.subr.mxu0 0.0
        %3283 = vmatpush1.msra.mxu0 0.0
        %3284 = vmatprep.subr.mxu0 0.0
        %3285 = vmatpush1.msra.mxu0 0.0
        %3286 = vmatprep.subr.mxu0 0.0
        %3287 = vmatpush1.msra.mxu0 0.0
        %3288 = vmatprep.subr.mxu0 0.0
        %3289 = vmatpush1.msra.mxu0 0.0
        %3290 = vmatprep.subr.mxu0 0.0
        %3291 = vmatpush1.msra.mxu0 0.0
        %3292 = vmatprep.subr.mxu0 0.0
        %3293 = vmatpush1.msra.mxu0 0.0
        %3294 = vmatprep.subr.mxu0 0.0
        %3295 = vmatpush1.msra.mxu0 0.0
        %3296 = vmatprep.subr.mxu0 0.0
        %3297 = vmatpush1.msra.mxu0 0.0
        %3298 = vmatprep.subr.mxu0 0.0
        %3299 = vmatpush1.msra.mxu0 0.0
        %3300 = vmatprep.subr.mxu0 0.0
        %3301 = vmatpush1.msra.mxu0 0.0
        %3302 = vmatprep.subr.mxu0 0.0
        %3303 = vmatpush1.msra.mxu0 0.0
        %3304 = vmatprep.subr.mxu0 0.0
        %3305 = vmatpush1.msra.mxu0 0.0
        %3306 = vmatprep.subr.mxu0 0.0
        %3307 = vmatpush1.msra.mxu0 0.0
        %3308 = vmatprep.subr.mxu0 0.0
        %v3309 = vand.u32 %v3121, 4294901760
        %v3310 = vsub.f32 %v3121, %v3309
        %3311 = vmatpush1.msra.mxu0 %v3310
        %3312 = vmatprep.subr.mxu0 0.0
        %3313 = vmatpush2.msra.mxu0 0.0
        %3314 = vmatprep.subr.mxu0 0.0
        %3315 = vmatpush2.msra.mxu0 0.0
        %3316 = vmatprep.subr.mxu0 0.0
        %3317 = vmatpush2.msra.mxu0 0.0
        %3318 = vmatprep.subr.mxu0 0.0
        %3319 = vmatpush2.msra.mxu0 0.0
        %3320 = vmatprep.subr.mxu0 0.0
        %3321 = vmatpush2.msra.mxu0 0.0
        %3322 = vmatprep.subr.mxu0 0.0
        %3323 = vmatpush2.msra.mxu0 0.0
        %3324 = vmatprep.subr.mxu0 0.0
        %3325 = vmatpush2.msra.mxu0 0.0
        %3326 = vmatprep.subr.mxu0 0.0
        %3327 = vmatpush2.msra.mxu0 0.0
        %3328 = vmatprep.subr.mxu0 0.0
        %3329 = vmatpush2.msra.mxu0 0.0
        %3330 = vmatprep.subr.mxu0 0.0
        %3331 = vmatpush2.msra.mxu0 0.0
        %3332 = vmatprep.subr.mxu0 0.0
        %3333 = vmatpush2.msra.mxu0 0.0
        %3334 = vmatprep.subr.mxu0 0.0
        %3335 = vmatpush2.msra.mxu0 0.0
        %3336 = vmatprep.subr.mxu0 0.0
        %3337 = vmatpush2.msra.mxu0 0.0
        %3338 = vmatprep.subr.mxu0 0.0
        %3339 = vmatpush2.msra.mxu0 0.0
        %3340 = vmatprep.subr.mxu0 0.0
        %3341 = vmatpush2.msra.mxu0 0.0
        %3342 = vmatprep.subr.mxu0 0.0
        %3343 = vmatpush2.msra.mxu0 0.0
        %3344 = vmatprep.mubr.f32.mxu0 0.0
        %v3345 = vand.u32 %v3124, 4294901760
        %v3346 = vsub.f32 %v3124, %v3345
        %3347 = vmatmul.mubr.f32.gmra.mxu0 %v3346
        %v3348 = vpop.f32.mrf.mxu0
        %v3349 = vadd.f32 %v3275, %v3348
        %v3350 = vpop.f32.mrf.mxu0
        %3351 = vdwg.mxu0
        %3352 = vmatprep.subr.mxu0 0.0
        %3353 = vmatpush1.msra.mxu0 0.0
        %3354 = vmatprep.subr.mxu0 0.0
        %3355 = vmatpush1.msra.mxu0 0.0
        %3356 = vmatprep.subr.mxu0 0.0
        %3357 = vmatpush1.msra.mxu0 0.0
        %3358 = vmatprep.subr.mxu0 0.0
        %3359 = vmatpush1.msra.mxu0 0.0
        %3360 = vmatprep.subr.mxu0 0.0
        %3361 = vmatpush1.msra.mxu0 0.0
        %3362 = vmatprep.subr.mxu0 0.0
        %3363 = vmatpush1.msra.mxu0 0.0
        %3364 = vmatprep.subr.mxu0 0.0
        %3365 = vmatpush1.msra.mxu0 0.0
        %3366 = vmatprep.subr.mxu0 0.0
        %3367 = vmatpush1.msra.mxu0 0.0
        %3368 = vmatprep.subr.mxu0 0.0
        %3369 = vmatpush1.msra.mxu0 0.0
        %3370 = vmatprep.subr.mxu0 0.0
        %3371 = vmatpush1.msra.mxu0 0.0
        %3372 = vmatprep.subr.mxu0 0.0
        %3373 = vmatpush1.msra.mxu0 0.0
        %3374 = vmatprep.subr.mxu0 0.0
        %3375 = vmatpush1.msra.mxu0 0.0
        %3376 = vmatprep.subr.mxu0 0.0
        %3377 = vmatpush1.msra.mxu0 0.0
        %3378 = vmatprep.subr.mxu0 0.0
        %3379 = vmatpush1.msra.mxu0 0.0
        %3380 = vmatprep.subr.mxu0 0.0
        %3381 = vmatpush1.msra.mxu0 0.0
        %3382 = vmatprep.subr.mxu0 0.0
        %v3383 = vand.u32 %v3121, 4294901760
        %3384 = vmatpush1.msra.mxu0 %v3383
        %3385 = vmatprep.subr.mxu0 0.0
        %3386 = vmatpush2.msra.mxu0 0.0
        %3387 = vmatprep.subr.mxu0 0.0
        %3388 = vmatpush2.msra.mxu0 0.0
        %3389 = vmatprep.subr.mxu0 0.0
        %3390 = vmatpush2.msra.mxu0 0.0
        %3391 = vmatprep.subr.mxu0 0.0
        %3392 = vmatpush2.msra.mxu0 0.0
        %3393 = vmatprep.subr.mxu0 0.0
        %3394 = vmatpush2.msra.mxu0 0.0
        %3395 = vmatprep.subr.mxu0 0.0
        %3396 = vmatpush2.msra.mxu0 0.0
        %3397 = vmatprep.subr.mxu0 0.0
        %3398 = vmatpush2.msra.mxu0 0.0
        %3399 = vmatprep.subr.mxu0 0.0
        %3400 = vmatpush2.msra.mxu0 0.0
        %3401 = vmatprep.subr.mxu0 0.0
        %3402 = vmatpush2.msra.mxu0 0.0
        %3403 = vmatprep.subr.mxu0 0.0
        %3404 = vmatpush2.msra.mxu0 0.0
        %3405 = vmatprep.subr.mxu0 0.0
        %3406 = vmatpush2.msra.mxu0 0.0
        %3407 = vmatprep.subr.mxu0 0.0
        %3408 = vmatpush2.msra.mxu0 0.0
        %3409 = vmatprep.subr.mxu0 0.0
        %3410 = vmatpush2.msra.mxu0 0.0
        %3411 = vmatprep.subr.mxu0 0.0
        %3412 = vmatpush2.msra.mxu0 0.0
        %3413 = vmatprep.subr.mxu0 0.0
        %3414 = vmatpush2.msra.mxu0 0.0
        %3415 = vmatprep.subr.mxu0 0.0
        %3416 = vmatpush2.msra.mxu0 0.0
        %3417 = vmatprep.mubr.f32.mxu0 0.0
        %v3418 = vand.u32 %v3124, 4294901760
        %v3419 = vsub.f32 %v3124, %v3418
        %v3420 = vand.u32 %v3419, 4294901760
        %3421 = vmatmul.mubr.f32.gmra.mxu0 %v3420
        %v3422 = vpop.f32.mrf.mxu0
        %v3423 = vadd.f32 %v3349, %v3422
        %v3424 = vpop.f32.mrf.mxu0
        %3425 = vdwg.mxu0
        %3426 = vmatprep.subr.mxu0 0.0
        %3427 = vmatpush1.msra.mxu0 0.0
        %3428 = vmatprep.subr.mxu0 0.0
        %3429 = vmatpush1.msra.mxu0 0.0
        %3430 = vmatprep.subr.mxu0 0.0
        %3431 = vmatpush1.msra.mxu0 0.0
        %3432 = vmatprep.subr.mxu0 0.0
        %3433 = vmatpush1.msra.mxu0 0.0
        %3434 = vmatprep.subr.mxu0 0.0
        %3435 = vmatpush1.msra.mxu0 0.0
        %3436 = vmatprep.subr.mxu0 0.0
        %3437 = vmatpush1.msra.mxu0 0.0
        %3438 = vmatprep.subr.mxu0 0.0
        %3439 = vmatpush1.msra.mxu0 0.0
        %3440 = vmatprep.subr.mxu0 0.0
        %3441 = vmatpush1.msra.mxu0 0.0
        %3442 = vmatprep.subr.mxu0 0.0
        %3443 = vmatpush1.msra.mxu0 0.0
        %3444 = vmatprep.subr.mxu0 0.0
        %3445 = vmatpush1.msra.mxu0 0.0
        %3446 = vmatprep.subr.mxu0 0.0
        %3447 = vmatpush1.msra.mxu0 0.0
        %3448 = vmatprep.subr.mxu0 0.0
        %3449 = vmatpush1.msra.mxu0 0.0
        %3450 = vmatprep.subr.mxu0 0.0
        %3451 = vmatpush1.msra.mxu0 0.0
        %3452 = vmatprep.subr.mxu0 0.0
        %3453 = vmatpush1.msra.mxu0 0.0
        %3454 = vmatprep.subr.mxu0 0.0
        %3455 = vmatpush1.msra.mxu0 0.0
        %3456 = vmatprep.subr.mxu0 0.0
        %v3457 = vand.u32 %v3121, 4294901760
        %v3458 = vsub.f32 %v3121, %v3457
        %v3459 = vand.u32 %v3458, 4294901760
        %3460 = vmatpush1.msra.mxu0 %v3459
        %3461 = vmatprep.subr.mxu0 0.0
        %3462 = vmatpush2.msra.mxu0 0.0
        %3463 = vmatprep.subr.mxu0 0.0
        %3464 = vmatpush2.msra.mxu0 0.0
        %3465 = vmatprep.subr.mxu0 0.0
        %3466 = vmatpush2.msra.mxu0 0.0
        %3467 = vmatprep.subr.mxu0 0.0
        %3468 = vmatpush2.msra.mxu0 0.0
        %3469 = vmatprep.subr.mxu0 0.0
        %3470 = vmatpush2.msra.mxu0 0.0
        %3471 = vmatprep.subr.mxu0 0.0
        %3472 = vmatpush2.msra.mxu0 0.0
        %3473 = vmatprep.subr.mxu0 0.0
        %3474 = vmatpush2.msra.mxu0 0.0
        %3475 = vmatprep.subr.mxu0 0.0
        %3476 = vmatpush2.msra.mxu0 0.0
        %3477 = vmatprep.subr.mxu0 0.0
        %3478 = vmatpush2.msra.mxu0 0.0
        %3479 = vmatprep.subr.mxu0 0.0
        %3480 = vmatpush2.msra.mxu0 0.0
        %3481 = vmatprep.subr.mxu0 0.0
        %3482 = vmatpush2.msra.mxu0 0.0
        %3483 = vmatprep.subr.mxu0 0.0
        %3484 = vmatpush2.msra.mxu0 0.0
        %3485 = vmatprep.subr.mxu0 0.0
        %3486 = vmatpush2.msra.mxu0 0.0
        %3487 = vmatprep.subr.mxu0 0.0
        %3488 = vmatpush2.msra.mxu0 0.0
        %3489 = vmatprep.subr.mxu0 0.0
        %3490 = vmatpush2.msra.mxu0 0.0
        %3491 = vmatprep.subr.mxu0 0.0
        %3492 = vmatpush2.msra.mxu0 0.0
        %3493 = vmatprep.mubr.f32.mxu0 0.0
        %v3494 = vand.u32 %v3124, 4294901760
        %3495 = vmatmul.mubr.f32.gmra.mxu0 %v3494
        %v3496 = vpop.f32.mrf.mxu0
        %v3497 = vadd.f32 %v3423, %v3496
        %v3498 = vpop.f32.mrf.mxu0
        %3499 = vdwg.mxu0
        %3500 = vmatprep.subr.mxu0 0.0
        %3501 = vmatpush1.msra.mxu0 0.0
        %3502 = vmatprep.subr.mxu0 0.0
        %3503 = vmatpush1.msra.mxu0 0.0
        %3504 = vmatprep.subr.mxu0 0.0
        %3505 = vmatpush1.msra.mxu0 0.0
        %3506 = vmatprep.subr.mxu0 0.0
        %3507 = vmatpush1.msra.mxu0 0.0
        %3508 = vmatprep.subr.mxu0 0.0
        %3509 = vmatpush1.msra.mxu0 0.0
        %3510 = vmatprep.subr.mxu0 0.0
        %3511 = vmatpush1.msra.mxu0 0.0
        %3512 = vmatprep.subr.mxu0 0.0
        %3513 = vmatpush1.msra.mxu0 0.0
        %3514 = vmatprep.subr.mxu0 0.0
        %3515 = vmatpush1.msra.mxu0 0.0
        %3516 = vmatprep.subr.mxu0 0.0
        %3517 = vmatpush1.msra.mxu0 0.0
        %3518 = vmatprep.subr.mxu0 0.0
        %3519 = vmatpush1.msra.mxu0 0.0
        %3520 = vmatprep.subr.mxu0 0.0
        %3521 = vmatpush1.msra.mxu0 0.0
        %3522 = vmatprep.subr.mxu0 0.0
        %3523 = vmatpush1.msra.mxu0 0.0
        %3524 = vmatprep.subr.mxu0 0.0
        %3525 = vmatpush1.msra.mxu0 0.0
        %3526 = vmatprep.subr.mxu0 0.0
        %3527 = vmatpush1.msra.mxu0 0.0
        %3528 = vmatprep.subr.mxu0 0.0
        %3529 = vmatpush1.msra.mxu0 0.0
        %3530 = vmatprep.subr.mxu0 0.0
        %v3531 = vand.u32 %v3121, 4294901760
        %3532 = vmatpush1.msra.mxu0 %v3531
        %3533 = vmatprep.subr.mxu0 0.0
        %3534 = vmatpush2.msra.mxu0 0.0
        %3535 = vmatprep.subr.mxu0 0.0
        %3536 = vmatpush2.msra.mxu0 0.0
        %3537 = vmatprep.subr.mxu0 0.0
        %3538 = vmatpush2.msra.mxu0 0.0
        %3539 = vmatprep.subr.mxu0 0.0
        %3540 = vmatpush2.msra.mxu0 0.0
        %3541 = vmatprep.subr.mxu0 0.0
        %3542 = vmatpush2.msra.mxu0 0.0
        %3543 = vmatprep.subr.mxu0 0.0
        %3544 = vmatpush2.msra.mxu0 0.0
        %3545 = vmatprep.subr.mxu0 0.0
        %3546 = vmatpush2.msra.mxu0 0.0
        %3547 = vmatprep.subr.mxu0 0.0
        %3548 = vmatpush2.msra.mxu0 0.0
        %3549 = vmatprep.subr.mxu0 0.0
        %3550 = vmatpush2.msra.mxu0 0.0
        %3551 = vmatprep.subr.mxu0 0.0
        %3552 = vmatpush2.msra.mxu0 0.0
        %3553 = vmatprep.subr.mxu0 0.0
        %3554 = vmatpush2.msra.mxu0 0.0
        %3555 = vmatprep.subr.mxu0 0.0
        %3556 = vmatpush2.msra.mxu0 0.0
        %3557 = vmatprep.subr.mxu0 0.0
        %3558 = vmatpush2.msra.mxu0 0.0
        %3559 = vmatprep.subr.mxu0 0.0
        %3560 = vmatpush2.msra.mxu0 0.0
        %3561 = vmatprep.subr.mxu0 0.0
        %3562 = vmatpush2.msra.mxu0 0.0
        %3563 = vmatprep.subr.mxu0 0.0
        %3564 = vmatpush2.msra.mxu0 0.0
        %3565 = vmatprep.mubr.f32.mxu0 0.0
        %v3566 = vand.u32 %v3124, 4294901760
        %3567 = vmatmul.mubr.f32.gmra.mxu0 %v3566
        %v3568 = vpop.f32.mrf.mxu0
        %v3569 = vadd.f32 %v3497, %v3568
        %v3570 = vpop.f32.mrf.mxu0
        %3571 = vdwg.mxu0
        %v3572 = vrcp.pop %v3119
        %v3573 = vmul.f32 %v3569, %v3572
        %3575 = vrot.lane.b32.xlu0 %v3573, 16
        %v3576 = vpop.permute.xlu0 %3575
        %vm3578 = vcmask 195712
        %3579 = vst.msk [vmem:[#allocation3] sm:$0xff] %vm3578, %v3576
        %v3580 = vld [vmem:[%s798] sm:$0xff]
        %v3581 = vld [vmem:[#allocation2] sm:$0xff]
        %3583 = vrot.lane.b32.xlu0 %v3580, 104
        %v3584 = vpop.permute.xlu0 %3583
        %3586 = vrot.lane.b32.xlu0 %v3581, 72
        %v3587 = vpop.permute.xlu0 %3586
        %v3588 = vsel %vm804, %v3584, 0
        %v3590 = vsel %vm804, %v3587, 0
        %3592 = vmatprep.subr.mxu0 0.0
        %3593 = vmatpush1.xpose.msra.mxu0 0.0
        %3594 = vmatprep.subr.mxu0 0.0
        %3595 = vmatpush1.xpose.msra.mxu0 0.0
        %3596 = vmatprep.subr.mxu0 0.0
        %3597 = vmatpush1.xpose.msra.mxu0 0.0
        %3598 = vmatprep.subr.mxu0 0.0
        %3599 = vmatpush1.xpose.msra.mxu0 0.0
        %3600 = vmatprep.subr.mxu0 0.0
        %3601 = vmatpush1.xpose.msra.mxu0 0.0
        %3602 = vmatprep.subr.mxu0 0.0
        %3603 = vmatpush1.xpose.msra.mxu0 0.0
        %3604 = vmatprep.subr.mxu0 0.0
        %3605 = vmatpush1.xpose.msra.mxu0 0.0
        %3606 = vmatprep.subr.mxu0 0.0
        %3607 = vmatpush1.xpose.msra.mxu0 0.0
        %3608 = vmatprep.subr.mxu0 0.0
        %3609 = vmatpush1.xpose.msra.mxu0 0.0
        %3610 = vmatprep.subr.mxu0 0.0
        %3611 = vmatpush1.xpose.msra.mxu0 0.0
        %3612 = vmatprep.subr.mxu0 0.0
        %3613 = vmatpush1.xpose.msra.mxu0 0.0
        %3614 = vmatprep.subr.mxu0 0.0
        %3615 = vmatpush1.xpose.msra.mxu0 0.0
        %3616 = vmatprep.subr.mxu0 0.0
        %3617 = vmatpush1.xpose.msra.mxu0 0.0
        %3618 = vmatprep.subr.mxu0 0.0
        %3619 = vmatpush1.xpose.msra.mxu0 0.0
        %3620 = vmatprep.subr.mxu0 0.0
        %3621 = vmatpush1.xpose.msra.mxu0 0.0
        %3622 = vmatprep.subr.mxu0 0.0
        %v3623 = vand.u32 %v3590, 4294901760
        %3624 = vmatpush1.xpose.msra.mxu0 %v3623
        %3625 = vmatprep.subr.mxu0 0.0
        %3626 = vmatpush2.xpose.msra.mxu0 0.0
        %3627 = vmatprep.subr.mxu0 0.0
        %3628 = vmatpush2.xpose.msra.mxu0 0.0
        %3629 = vmatprep.subr.mxu0 0.0
        %3630 = vmatpush2.xpose.msra.mxu0 0.0
        %3631 = vmatprep.subr.mxu0 0.0
        %3632 = vmatpush2.xpose.msra.mxu0 0.0
        %3633 = vmatprep.subr.mxu0 0.0
        %3634 = vmatpush2.xpose.msra.mxu0 0.0
        %3635 = vmatprep.subr.mxu0 0.0
        %3636 = vmatpush2.xpose.msra.mxu0 0.0
        %3637 = vmatprep.subr.mxu0 0.0
        %3638 = vmatpush2.xpose.msra.mxu0 0.0
        %3639 = vmatprep.subr.mxu0 0.0
        %3640 = vmatpush2.xpose.msra.mxu0 0.0
        %3641 = vmatprep.subr.mxu0 0.0
        %3642 = vmatpush2.xpose.msra.mxu0 0.0
        %3643 = vmatprep.subr.mxu0 0.0
        %3644 = vmatpush2.xpose.msra.mxu0 0.0
        %3645 = vmatprep.subr.mxu0 0.0
        %3646 = vmatpush2.xpose.msra.mxu0 0.0
        %3647 = vmatprep.subr.mxu0 0.0
        %3648 = vmatpush2.xpose.msra.mxu0 0.0
        %3649 = vmatprep.subr.mxu0 0.0
        %3650 = vmatpush2.xpose.msra.mxu0 0.0
        %3651 = vmatprep.subr.mxu0 0.0
        %3652 = vmatpush2.xpose.msra.mxu0 0.0
        %3653 = vmatprep.subr.mxu0 0.0
        %3654 = vmatpush2.xpose.msra.mxu0 0.0
        %3655 = vmatprep.subr.mxu0 0.0
        %3656 = vmatpush2.xpose.msra.mxu0 0.0
        %3657 = vmatprep.mubr.f32.mxu0 0.0
        %v3658 = vand.u32 %v3588, 4294901760
        %v3659 = vsub.f32 %v3588, %v3658
        %v3660 = vand.u32 %v3659, 4294901760
        %v3661 = vsub.f32 %v3659, %v3660
        %v3662 = vand.u32 %v3661, 4294901760
        %3663 = vmatmul.mubr.f32.gmra.mxu0 %v3662
        %v3664 = vpop.f32.mrf.mxu0
        %v3665 = vadd.f32 0.0, %v3664
        %v3666 = vpop.f32.mrf.mxu0
        %3667 = vdwg.mxu0
        %3668 = vmatprep.subr.mxu0 0.0
        %3669 = vmatpush1.xpose.msra.mxu0 0.0
        %3670 = vmatprep.subr.mxu0 0.0
        %3671 = vmatpush1.xpose.msra.mxu0 0.0
        %3672 = vmatprep.subr.mxu0 0.0
        %3673 = vmatpush1.xpose.msra.mxu0 0.0
        %3674 = vmatprep.subr.mxu0 0.0
        %3675 = vmatpush1.xpose.msra.mxu0 0.0
        %3676 = vmatprep.subr.mxu0 0.0
        %3677 = vmatpush1.xpose.msra.mxu0 0.0
        %3678 = vmatprep.subr.mxu0 0.0
        %3679 = vmatpush1.xpose.msra.mxu0 0.0
        %3680 = vmatprep.subr.mxu0 0.0
        %3681 = vmatpush1.xpose.msra.mxu0 0.0
        %3682 = vmatprep.subr.mxu0 0.0
        %3683 = vmatpush1.xpose.msra.mxu0 0.0
        %3684 = vmatprep.subr.mxu0 0.0
        %3685 = vmatpush1.xpose.msra.mxu0 0.0
        %3686 = vmatprep.subr.mxu0 0.0
        %3687 = vmatpush1.xpose.msra.mxu0 0.0
        %3688 = vmatprep.subr.mxu0 0.0
        %3689 = vmatpush1.xpose.msra.mxu0 0.0
        %3690 = vmatprep.subr.mxu0 0.0
        %3691 = vmatpush1.xpose.msra.mxu0 0.0
        %3692 = vmatprep.subr.mxu0 0.0
        %3693 = vmatpush1.xpose.msra.mxu0 0.0
        %3694 = vmatprep.subr.mxu0 0.0
        %3695 = vmatpush1.xpose.msra.mxu0 0.0
        %3696 = vmatprep.subr.mxu0 0.0
        %3697 = vmatpush1.xpose.msra.mxu0 0.0
        %3698 = vmatprep.subr.mxu0 0.0
        %v3699 = vand.u32 %v3590, 4294901760
        %v3700 = vsub.f32 %v3590, %v3699
        %v3701 = vand.u32 %v3700, 4294901760
        %v3702 = vsub.f32 %v3700, %v3701
        %v3703 = vand.u32 %v3702, 4294901760
        %3704 = vmatpush1.xpose.msra.mxu0 %v3703
        %3705 = vmatprep.subr.mxu0 0.0
        %3706 = vmatpush2.xpose.msra.mxu0 0.0
        %3707 = vmatprep.subr.mxu0 0.0
        %3708 = vmatpush2.xpose.msra.mxu0 0.0
        %3709 = vmatprep.subr.mxu0 0.0
        %3710 = vmatpush2.xpose.msra.mxu0 0.0
        %3711 = vmatprep.subr.mxu0 0.0
        %3712 = vmatpush2.xpose.msra.mxu0 0.0
        %3713 = vmatprep.subr.mxu0 0.0
        %3714 = vmatpush2.xpose.msra.mxu0 0.0
        %3715 = vmatprep.subr.mxu0 0.0
        %3716 = vmatpush2.xpose.msra.mxu0 0.0
        %3717 = vmatprep.subr.mxu0 0.0
        %3718 = vmatpush2.xpose.msra.mxu0 0.0
        %3719 = vmatprep.subr.mxu0 0.0
        %3720 = vmatpush2.xpose.msra.mxu0 0.0
        %3721 = vmatprep.subr.mxu0 0.0
        %3722 = vmatpush2.xpose.msra.mxu0 0.0
        %3723 = vmatprep.subr.mxu0 0.0
        %3724 = vmatpush2.xpose.msra.mxu0 0.0
        %3725 = vmatprep.subr.mxu0 0.0
        %3726 = vmatpush2.xpose.msra.mxu0 0.0
        %3727 = vmatprep.subr.mxu0 0.0
        %3728 = vmatpush2.xpose.msra.mxu0 0.0
        %3729 = vmatprep.subr.mxu0 0.0
        %3730 = vmatpush2.xpose.msra.mxu0 0.0
        %3731 = vmatprep.subr.mxu0 0.0
        %3732 = vmatpush2.xpose.msra.mxu0 0.0
        %3733 = vmatprep.subr.mxu0 0.0
        %3734 = vmatpush2.xpose.msra.mxu0 0.0
        %3735 = vmatprep.subr.mxu0 0.0
        %3736 = vmatpush2.xpose.msra.mxu0 0.0
        %3737 = vmatprep.mubr.f32.mxu0 0.0
        %v3738 = vand.u32 %v3588, 4294901760
        %3739 = vmatmul.mubr.f32.gmra.mxu0 %v3738
        %v3740 = vpop.f32.mrf.mxu0
        %v3741 = vadd.f32 %v3665, %v3740
        %v3742 = vpop.f32.mrf.mxu0
        %3743 = vdwg.mxu0
        %3744 = vmatprep.subr.mxu0 0.0
        %3745 = vmatpush1.xpose.msra.mxu0 0.0
        %3746 = vmatprep.subr.mxu0 0.0
        %3747 = vmatpush1.xpose.msra.mxu0 0.0
        %3748 = vmatprep.subr.mxu0 0.0
        %3749 = vmatpush1.xpose.msra.mxu0 0.0
        %3750 = vmatprep.subr.mxu0 0.0
        %3751 = vmatpush1.xpose.msra.mxu0 0.0
        %3752 = vmatprep.subr.mxu0 0.0
        %3753 = vmatpush1.xpose.msra.mxu0 0.0
        %3754 = vmatprep.subr.mxu0 0.0
        %3755 = vmatpush1.xpose.msra.mxu0 0.0
        %3756 = vmatprep.subr.mxu0 0.0
        %3757 = vmatpush1.xpose.msra.mxu0 0.0
        %3758 = vmatprep.subr.mxu0 0.0
        %3759 = vmatpush1.xpose.msra.mxu0 0.0
        %3760 = vmatprep.subr.mxu0 0.0
        %3761 = vmatpush1.xpose.msra.mxu0 0.0
        %3762 = vmatprep.subr.mxu0 0.0
        %3763 = vmatpush1.xpose.msra.mxu0 0.0
        %3764 = vmatprep.subr.mxu0 0.0
        %3765 = vmatpush1.xpose.msra.mxu0 0.0
        %3766 = vmatprep.subr.mxu0 0.0
        %3767 = vmatpush1.xpose.msra.mxu0 0.0
        %3768 = vmatprep.subr.mxu0 0.0
        %3769 = vmatpush1.xpose.msra.mxu0 0.0
        %3770 = vmatprep.subr.mxu0 0.0
        %3771 = vmatpush1.xpose.msra.mxu0 0.0
        %3772 = vmatprep.subr.mxu0 0.0
        %3773 = vmatpush1.xpose.msra.mxu0 0.0
        %3774 = vmatprep.subr.mxu0 0.0
        %v3775 = vand.u32 %v3590, 4294901760
        %v3776 = vsub.f32 %v3590, %v3775
        %3777 = vmatpush1.xpose.msra.mxu0 %v3776
        %3778 = vmatprep.subr.mxu0 0.0
        %3779 = vmatpush2.xpose.msra.mxu0 0.0
        %3780 = vmatprep.subr.mxu0 0.0
        %3781 = vmatpush2.xpose.msra.mxu0 0.0
        %3782 = vmatprep.subr.mxu0 0.0
        %3783 = vmatpush2.xpose.msra.mxu0 0.0
        %3784 = vmatprep.subr.mxu0 0.0
        %3785 = vmatpush2.xpose.msra.mxu0 0.0
        %3786 = vmatprep.subr.mxu0 0.0
        %3787 = vmatpush2.xpose.msra.mxu0 0.0
        %3788 = vmatprep.subr.mxu0 0.0
        %3789 = vmatpush2.xpose.msra.mxu0 0.0
        %3790 = vmatprep.subr.mxu0 0.0
        %3791 = vmatpush2.xpose.msra.mxu0 0.0
        %3792 = vmatprep.subr.mxu0 0.0
        %3793 = vmatpush2.xpose.msra.mxu0 0.0
        %3794 = vmatprep.subr.mxu0 0.0
        %3795 = vmatpush2.xpose.msra.mxu0 0.0
        %3796 = vmatprep.subr.mxu0 0.0
        %3797 = vmatpush2.xpose.msra.mxu0 0.0
        %3798 = vmatprep.subr.mxu0 0.0
        %3799 = vmatpush2.xpose.msra.mxu0 0.0
        %3800 = vmatprep.subr.mxu0 0.0
        %3801 = vmatpush2.xpose.msra.mxu0 0.0
        %3802 = vmatprep.subr.mxu0 0.0
        %3803 = vmatpush2.xpose.msra.mxu0 0.0
        %3804 = vmatprep.subr.mxu0 0.0
        %3805 = vmatpush2.xpose.msra.mxu0 0.0
        %3806 = vmatprep.subr.mxu0 0.0
        %3807 = vmatpush2.xpose.msra.mxu0 0.0
        %3808 = vmatprep.subr.mxu0 0.0
        %3809 = vmatpush2.xpose.msra.mxu0 0.0
        %3810 = vmatprep.mubr.f32.mxu0 0.0
        %v3811 = vand.u32 %v3588, 4294901760
        %v3812 = vsub.f32 %v3588, %v3811
        %3813 = vmatmul.mubr.f32.gmra.mxu0 %v3812
        %v3814 = vpop.f32.mrf.mxu0
        %v3815 = vadd.f32 %v3741, %v3814
        %v3816 = vpop.f32.mrf.mxu0
        %3817 = vdwg.mxu0
        %3818 = vmatprep.subr.mxu0 0.0
        %3819 = vmatpush1.xpose.msra.mxu0 0.0
        %3820 = vmatprep.subr.mxu0 0.0
        %3821 = vmatpush1.xpose.msra.mxu0 0.0
        %3822 = vmatprep.subr.mxu0 0.0
        %3823 = vmatpush1.xpose.msra.mxu0 0.0
        %3824 = vmatprep.subr.mxu0 0.0
        %3825 = vmatpush1.xpose.msra.mxu0 0.0
        %3826 = vmatprep.subr.mxu0 0.0
        %3827 = vmatpush1.xpose.msra.mxu0 0.0
        %3828 = vmatprep.subr.mxu0 0.0
        %3829 = vmatpush1.xpose.msra.mxu0 0.0
        %3830 = vmatprep.subr.mxu0 0.0
        %3831 = vmatpush1.xpose.msra.mxu0 0.0
        %3832 = vmatprep.subr.mxu0 0.0
        %3833 = vmatpush1.xpose.msra.mxu0 0.0
        %3834 = vmatprep.subr.mxu0 0.0
        %3835 = vmatpush1.xpose.msra.mxu0 0.0
        %3836 = vmatprep.subr.mxu0 0.0
        %3837 = vmatpush1.xpose.msra.mxu0 0.0
        %3838 = vmatprep.subr.mxu0 0.0
        %3839 = vmatpush1.xpose.msra.mxu0 0.0
        %3840 = vmatprep.subr.mxu0 0.0
        %3841 = vmatpush1.xpose.msra.mxu0 0.0
        %3842 = vmatprep.subr.mxu0 0.0
        %3843 = vmatpush1.xpose.msra.mxu0 0.0
        %3844 = vmatprep.subr.mxu0 0.0
        %3845 = vmatpush1.xpose.msra.mxu0 0.0
        %3846 = vmatprep.subr.mxu0 0.0
        %3847 = vmatpush1.xpose.msra.mxu0 0.0
        %3848 = vmatprep.subr.mxu0 0.0
        %v3849 = vand.u32 %v3590, 4294901760
        %3850 = vmatpush1.xpose.msra.mxu0 %v3849
        %3851 = vmatprep.subr.mxu0 0.0
        %3852 = vmatpush2.xpose.msra.mxu0 0.0
        %3853 = vmatprep.subr.mxu0 0.0
        %3854 = vmatpush2.xpose.msra.mxu0 0.0
        %3855 = vmatprep.subr.mxu0 0.0
        %3856 = vmatpush2.xpose.msra.mxu0 0.0
        %3857 = vmatprep.subr.mxu0 0.0
        %3858 = vmatpush2.xpose.msra.mxu0 0.0
        %3859 = vmatprep.subr.mxu0 0.0
        %3860 = vmatpush2.xpose.msra.mxu0 0.0
        %3861 = vmatprep.subr.mxu0 0.0
        %3862 = vmatpush2.xpose.msra.mxu0 0.0
        %3863 = vmatprep.subr.mxu0 0.0
        %3864 = vmatpush2.xpose.msra.mxu0 0.0
        %3865 = vmatprep.subr.mxu0 0.0
        %3866 = vmatpush2.xpose.msra.mxu0 0.0
        %3867 = vmatprep.subr.mxu0 0.0
        %3868 = vmatpush2.xpose.msra.mxu0 0.0
        %3869 = vmatprep.subr.mxu0 0.0
        %3870 = vmatpush2.xpose.msra.mxu0 0.0
        %3871 = vmatprep.subr.mxu0 0.0
        %3872 = vmatpush2.xpose.msra.mxu0 0.0
        %3873 = vmatprep.subr.mxu0 0.0
        %3874 = vmatpush2.xpose.msra.mxu0 0.0
        %3875 = vmatprep.subr.mxu0 0.0
        %3876 = vmatpush2.xpose.msra.mxu0 0.0
        %3877 = vmatprep.subr.mxu0 0.0
        %3878 = vmatpush2.xpose.msra.mxu0 0.0
        %3879 = vmatprep.subr.mxu0 0.0
        %3880 = vmatpush2.xpose.msra.mxu0 0.0
        %3881 = vmatprep.subr.mxu0 0.0
        %3882 = vmatpush2.xpose.msra.mxu0 0.0
        %3883 = vmatprep.mubr.f32.mxu0 0.0
        %v3884 = vand.u32 %v3588, 4294901760
        %v3885 = vsub.f32 %v3588, %v3884
        %v3886 = vand.u32 %v3885, 4294901760
        %3887 = vmatmul.mubr.f32.gmra.mxu0 %v3886
        %v3888 = vpop.f32.mrf.mxu0
        %v3889 = vadd.f32 %v3815, %v3888
        %v3890 = vpop.f32.mrf.mxu0
        %3891 = vdwg.mxu0
        %3892 = vmatprep.subr.mxu0 0.0
        %3893 = vmatpush1.xpose.msra.mxu0 0.0
        %3894 = vmatprep.subr.mxu0 0.0
        %3895 = vmatpush1.xpose.msra.mxu0 0.0
        %3896 = vmatprep.subr.mxu0 0.0
        %3897 = vmatpush1.xpose.msra.mxu0 0.0
        %3898 = vmatprep.subr.mxu0 0.0
        %3899 = vmatpush1.xpose.msra.mxu0 0.0
        %3900 = vmatprep.subr.mxu0 0.0
        %3901 = vmatpush1.xpose.msra.mxu0 0.0
        %3902 = vmatprep.subr.mxu0 0.0
        %3903 = vmatpush1.xpose.msra.mxu0 0.0
        %3904 = vmatprep.subr.mxu0 0.0
        %3905 = vmatpush1.xpose.msra.mxu0 0.0
        %3906 = vmatprep.subr.mxu0 0.0
        %3907 = vmatpush1.xpose.msra.mxu0 0.0
        %3908 = vmatprep.subr.mxu0 0.0
        %3909 = vmatpush1.xpose.msra.mxu0 0.0
        %3910 = vmatprep.subr.mxu0 0.0
        %3911 = vmatpush1.xpose.msra.mxu0 0.0
        %3912 = vmatprep.subr.mxu0 0.0
        %3913 = vmatpush1.xpose.msra.mxu0 0.0
        %3914 = vmatprep.subr.mxu0 0.0
        %3915 = vmatpush1.xpose.msra.mxu0 0.0
        %3916 = vmatprep.subr.mxu0 0.0
        %3917 = vmatpush1.xpose.msra.mxu0 0.0
        %3918 = vmatprep.subr.mxu0 0.0
        %3919 = vmatpush1.xpose.msra.mxu0 0.0
        %3920 = vmatprep.subr.mxu0 0.0
        %3921 = vmatpush1.xpose.msra.mxu0 0.0
        %3922 = vmatprep.subr.mxu0 0.0
        %v3923 = vand.u32 %v3590, 4294901760
        %v3924 = vsub.f32 %v3590, %v3923
        %v3925 = vand.u32 %v3924, 4294901760
        %3926 = vmatpush1.xpose.msra.mxu0 %v3925
        %3927 = vmatprep.subr.mxu0 0.0
        %3928 = vmatpush2.xpose.msra.mxu0 0.0
        %3929 = vmatprep.subr.mxu0 0.0
        %3930 = vmatpush2.xpose.msra.mxu0 0.0
        %3931 = vmatprep.subr.mxu0 0.0
        %3932 = vmatpush2.xpose.msra.mxu0 0.0
        %3933 = vmatprep.subr.mxu0 0.0
        %3934 = vmatpush2.xpose.msra.mxu0 0.0
        %3935 = vmatprep.subr.mxu0 0.0
        %3936 = vmatpush2.xpose.msra.mxu0 0.0
        %3937 = vmatprep.subr.mxu0 0.0
        %3938 = vmatpush2.xpose.msra.mxu0 0.0
        %3939 = vmatprep.subr.mxu0 0.0
        %3940 = vmatpush2.xpose.msra.mxu0 0.0
        %3941 = vmatprep.subr.mxu0 0.0
        %3942 = vmatpush2.xpose.msra.mxu0 0.0
        %3943 = vmatprep.subr.mxu0 0.0
        %3944 = vmatpush2.xpose.msra.mxu0 0.0
        %3945 = vmatprep.subr.mxu0 0.0
        %3946 = vmatpush2.xpose.msra.mxu0 0.0
        %3947 = vmatprep.subr.mxu0 0.0
        %3948 = vmatpush2.xpose.msra.mxu0 0.0
        %3949 = vmatprep.subr.mxu0 0.0
        %3950 = vmatpush2.xpose.msra.mxu0 0.0
        %3951 = vmatprep.subr.mxu0 0.0
        %3952 = vmatpush2.xpose.msra.mxu0 0.0
        %3953 = vmatprep.subr.mxu0 0.0
        %3954 = vmatpush2.xpose.msra.mxu0 0.0
        %3955 = vmatprep.subr.mxu0 0.0
        %3956 = vmatpush2.xpose.msra.mxu0 0.0
        %3957 = vmatprep.subr.mxu0 0.0
        %3958 = vmatpush2.xpose.msra.mxu0 0.0
        %3959 = vmatprep.mubr.f32.mxu0 0.0
        %v3960 = vand.u32 %v3588, 4294901760
        %3961 = vmatmul.mubr.f32.gmra.mxu0 %v3960
        %v3962 = vpop.f32.mrf.mxu0
        %v3963 = vadd.f32 %v3889, %v3962
        %v3964 = vpop.f32.mrf.mxu0
        %3965 = vdwg.mxu0
        %3966 = vmatprep.subr.mxu0 0.0
        %3967 = vmatpush1.xpose.msra.mxu0 0.0
        %3968 = vmatprep.subr.mxu0 0.0
        %3969 = vmatpush1.xpose.msra.mxu0 0.0
        %3970 = vmatprep.subr.mxu0 0.0
        %3971 = vmatpush1.xpose.msra.mxu0 0.0
        %3972 = vmatprep.subr.mxu0 0.0
        %3973 = vmatpush1.xpose.msra.mxu0 0.0
        %3974 = vmatprep.subr.mxu0 0.0
        %3975 = vmatpush1.xpose.msra.mxu0 0.0
        %3976 = vmatprep.subr.mxu0 0.0
        %3977 = vmatpush1.xpose.msra.mxu0 0.0
        %3978 = vmatprep.subr.mxu0 0.0
        %3979 = vmatpush1.xpose.msra.mxu0 0.0
        %3980 = vmatprep.subr.mxu0 0.0
        %3981 = vmatpush1.xpose.msra.mxu0 0.0
        %3982 = vmatprep.subr.mxu0 0.0
        %3983 = vmatpush1.xpose.msra.mxu0 0.0
        %3984 = vmatprep.subr.mxu0 0.0
        %3985 = vmatpush1.xpose.msra.mxu0 0.0
        %3986 = vmatprep.subr.mxu0 0.0
        %3987 = vmatpush1.xpose.msra.mxu0 0.0
        %3988 = vmatprep.subr.mxu0 0.0
        %3989 = vmatpush1.xpose.msra.mxu0 0.0
        %3990 = vmatprep.subr.mxu0 0.0
        %3991 = vmatpush1.xpose.msra.mxu0 0.0
        %3992 = vmatprep.subr.mxu0 0.0
        %3993 = vmatpush1.xpose.msra.mxu0 0.0
        %3994 = vmatprep.subr.mxu0 0.0
        %3995 = vmatpush1.xpose.msra.mxu0 0.0
        %3996 = vmatprep.subr.mxu0 0.0
        %v3997 = vand.u32 %v3590, 4294901760
        %3998 = vmatpush1.xpose.msra.mxu0 %v3997
        %3999 = vmatprep.subr.mxu0 0.0
        %4000 = vmatpush2.xpose.msra.mxu0 0.0
        %4001 = vmatprep.subr.mxu0 0.0
        %4002 = vmatpush2.xpose.msra.mxu0 0.0
        %4003 = vmatprep.subr.mxu0 0.0
        %4004 = vmatpush2.xpose.msra.mxu0 0.0
        %4005 = vmatprep.subr.mxu0 0.0
        %4006 = vmatpush2.xpose.msra.mxu0 0.0
        %4007 = vmatprep.subr.mxu0 0.0
        %4008 = vmatpush2.xpose.msra.mxu0 0.0
        %4009 = vmatprep.subr.mxu0 0.0
        %4010 = vmatpush2.xpose.msra.mxu0 0.0
        %4011 = vmatprep.subr.mxu0 0.0
        %4012 = vmatpush2.xpose.msra.mxu0 0.0
        %4013 = vmatprep.subr.mxu0 0.0
        %4014 = vmatpush2.xpose.msra.mxu0 0.0
        %4015 = vmatprep.subr.mxu0 0.0
        %4016 = vmatpush2.xpose.msra.mxu0 0.0
        %4017 = vmatprep.subr.mxu0 0.0
        %4018 = vmatpush2.xpose.msra.mxu0 0.0
        %4019 = vmatprep.subr.mxu0 0.0
        %4020 = vmatpush2.xpose.msra.mxu0 0.0
        %4021 = vmatprep.subr.mxu0 0.0
        %4022 = vmatpush2.xpose.msra.mxu0 0.0
        %4023 = vmatprep.subr.mxu0 0.0
        %4024 = vmatpush2.xpose.msra.mxu0 0.0
        %4025 = vmatprep.subr.mxu0 0.0
        %4026 = vmatpush2.xpose.msra.mxu0 0.0
        %4027 = vmatprep.subr.mxu0 0.0
        %4028 = vmatpush2.xpose.msra.mxu0 0.0
        %4029 = vmatprep.subr.mxu0 0.0
        %4030 = vmatpush2.xpose.msra.mxu0 0.0
        %4031 = vmatprep.mubr.f32.mxu0 0.0
        %v4032 = vand.u32 %v3588, 4294901760
        %4033 = vmatmul.mubr.f32.gmra.mxu0 %v4032
        %v4034 = vpop.f32.mrf.mxu0
        %v4035 = vadd.f32 %v3963, %v4034
        %v4036 = vpop.f32.mrf.mxu0
        %4037 = vdwg.mxu0
        %v4038 = vmul.f32 %v4035, 0.35355338
        %v4039 = vsel %vm797, %v4038, -inf
        %v4040 = vsel %vm804, %v4039, -inf
        %4041 = vmax.xlane.f32.xlu0 %v4040
        %v4042 = vpop.xlane.xlu0 %4041
        %v4043 = vsub.f32 %v4039, %v4042
        %v4044 = vmul.f32 %v4043, 1.442695
        %v4045 = vpow.pop %v4044
        %v4046 = vsel %vm804, %v4045, 0.0
        %4047 = vadd.xlane.f32.xlu0 %v4046
        %v4048 = vpop.xlane.xlu0 %4047
        %4049 = vrot.lane.b32.xlu0 %v3581, 40
        %v4050 = vpop.permute.xlu0 %4049
        %v4053 = vsel %vm804, %v4045, 0
        %4055 = vmatprep.subr.mxu0 0.0
        %4056 = vmatpush1.msra.mxu0 0.0
        %4057 = vmatprep.subr.mxu0 0.0
        %4058 = vmatpush1.msra.mxu0 0.0
        %4059 = vmatprep.subr.mxu0 0.0
        %4060 = vmatpush1.msra.mxu0 0.0
        %4061 = vmatprep.subr.mxu0 0.0
        %4062 = vmatpush1.msra.mxu0 0.0
        %4063 = vmatprep.subr.mxu0 0.0
        %4064 = vmatpush1.msra.mxu0 0.0
        %4065 = vmatprep.subr.mxu0 0.0
        %4066 = vmatpush1.msra.mxu0 0.0
        %4067 = vmatprep.subr.mxu0 0.0
        %4068 = vmatpush1.msra.mxu0 0.0
        %4069 = vmatprep.subr.mxu0 0.0
        %4070 = vmatpush1.msra.mxu0 0.0
        %4071 = vmatprep.subr.mxu0 0.0
        %4072 = vmatpush1.msra.mxu0 0.0
        %4073 = vmatprep.subr.mxu0 0.0
        %4074 = vmatpush1.msra.mxu0 0.0
        %4075 = vmatprep.subr.mxu0 0.0
        %4076 = vmatpush1.msra.mxu0 0.0
        %4077 = vmatprep.subr.mxu0 0.0
        %4078 = vmatpush1.msra.mxu0 0.0
        %4079 = vmatprep.subr.mxu0 0.0
        %4080 = vmatpush1.msra.mxu0 0.0
        %4081 = vmatprep.subr.mxu0 0.0
        %4082 = vmatpush1.msra.mxu0 0.0
        %4083 = vmatprep.subr.mxu0 0.0
        %4084 = vmatpush1.msra.mxu0 0.0
        %4085 = vmatprep.subr.mxu0 0.0
        %v4086 = vand.u32 %v4050, 4294901760
        %4087 = vmatpush1.msra.mxu0 %v4086
        %4088 = vmatprep.subr.mxu0 0.0
        %4089 = vmatpush2.msra.mxu0 0.0
        %4090 = vmatprep.subr.mxu0 0.0
        %4091 = vmatpush2.msra.mxu0 0.0
        %4092 = vmatprep.subr.mxu0 0.0
        %4093 = vmatpush2.msra.mxu0 0.0
        %4094 = vmatprep.subr.mxu0 0.0
        %4095 = vmatpush2.msra.mxu0 0.0
        %4096 = vmatprep.subr.mxu0 0.0
        %4097 = vmatpush2.msra.mxu0 0.0
        %4098 = vmatprep.subr.mxu0 0.0
        %4099 = vmatpush2.msra.mxu0 0.0
        %4100 = vmatprep.subr.mxu0 0.0
        %4101 = vmatpush2.msra.mxu0 0.0
        %4102 = vmatprep.subr.mxu0 0.0
        %4103 = vmatpush2.msra.mxu0 0.0
        %4104 = vmatprep.subr.mxu0 0.0
        %4105 = vmatpush2.msra.mxu0 0.0
        %4106 = vmatprep.subr.mxu0 0.0
        %4107 = vmatpush2.msra.mxu0 0.0
        %4108 = vmatprep.subr.mxu0 0.0
        %4109 = vmatpush2.msra.mxu0 0.0
        %4110 = vmatprep.subr.mxu0 0.0
        %4111 = vmatpush2.msra.mxu0 0.0
        %4112 = vmatprep.subr.mxu0 0.0
        %4113 = vmatpush2.msra.mxu0 0.0
        %4114 = vmatprep.subr.mxu0 0.0
        %4115 = vmatpush2.msra.mxu0 0.0
        %4116 = vmatprep.subr.mxu0 0.0
        %4117 = vmatpush2.msra.mxu0 0.0
        %4118 = vmatprep.subr.mxu0 0.0
        %4119 = vmatpush2.msra.mxu0 0.0
        %4120 = vmatprep.mubr.f32.mxu0 0.0
        %v4121 = vand.u32 %v4053, 4294901760
        %v4122 = vsub.f32 %v4053, %v4121
        %v4123 = vand.u32 %v4122, 4294901760
        %v4124 = vsub.f32 %v4122, %v4123
        %v4125 = vand.u32 %v4124, 4294901760
        %4126 = vmatmul.mubr.f32.gmra.mxu0 %v4125
        %v4127 = vpop.f32.mrf.mxu0
        %v4128 = vadd.f32 0.0, %v4127
        %v4129 = vpop.f32.mrf.mxu0
        %4130 = vdwg.mxu0
        %4131 = vmatprep.subr.mxu0 0.0
        %4132 = vmatpush1.msra.mxu0 0.0
        %4133 = vmatprep.subr.mxu0 0.0
        %4134 = vmatpush1.msra.mxu0 0.0
        %4135 = vmatprep.subr.mxu0 0.0
        %4136 = vmatpush1.msra.mxu0 0.0
        %4137 = vmatprep.subr.mxu0 0.0
        %4138 = vmatpush1.msra.mxu0 0.0
        %4139 = vmatprep.subr.mxu0 0.0
        %4140 = vmatpush1.msra.mxu0 0.0
        %4141 = vmatprep.subr.mxu0 0.0
        %4142 = vmatpush1.msra.mxu0 0.0
        %4143 = vmatprep.subr.mxu0 0.0
        %4144 = vmatpush1.msra.mxu0 0.0
        %4145 = vmatprep.subr.mxu0 0.0
        %4146 = vmatpush1.msra.mxu0 0.0
        %4147 = vmatprep.subr.mxu0 0.0
        %4148 = vmatpush1.msra.mxu0 0.0
        %4149 = vmatprep.subr.mxu0 0.0
        %4150 = vmatpush1.msra.mxu0 0.0
        %4151 = vmatprep.subr.mxu0 0.0
        %4152 = vmatpush1.msra.mxu0 0.0
        %4153 = vmatprep.subr.mxu0 0.0
        %4154 = vmatpush1.msra.mxu0 0.0
        %4155 = vmatprep.subr.mxu0 0.0
        %4156 = vmatpush1.msra.mxu0 0.0
        %4157 = vmatprep.subr.mxu0 0.0
        %4158 = vmatpush1.msra.mxu0 0.0
        %4159 = vmatprep.subr.mxu0 0.0
        %4160 = vmatpush1.msra.mxu0 0.0
        %4161 = vmatprep.subr.mxu0 0.0
        %v4162 = vand.u32 %v4050, 4294901760
        %v4163 = vsub.f32 %v4050, %v4162
        %v4164 = vand.u32 %v4163, 4294901760
        %v4165 = vsub.f32 %v4163, %v4164
        %v4166 = vand.u32 %v4165, 4294901760
        %4167 = vmatpush1.msra.mxu0 %v4166
        %4168 = vmatprep.subr.mxu0 0.0
        %4169 = vmatpush2.msra.mxu0 0.0
        %4170 = vmatprep.subr.mxu0 0.0
        %4171 = vmatpush2.msra.mxu0 0.0
        %4172 = vmatprep.subr.mxu0 0.0
        %4173 = vmatpush2.msra.mxu0 0.0
        %4174 = vmatprep.subr.mxu0 0.0
        %4175 = vmatpush2.msra.mxu0 0.0
        %4176 = vmatprep.subr.mxu0 0.0
        %4177 = vmatpush2.msra.mxu0 0.0
        %4178 = vmatprep.subr.mxu0 0.0
        %4179 = vmatpush2.msra.mxu0 0.0
        %4180 = vmatprep.subr.mxu0 0.0
        %4181 = vmatpush2.msra.mxu0 0.0
        %4182 = vmatprep.subr.mxu0 0.0
        %4183 = vmatpush2.msra.mxu0 0.0
        %4184 = vmatprep.subr.mxu0 0.0
        %4185 = vmatpush2.msra.mxu0 0.0
        %4186 = vmatprep.subr.mxu0 0.0
        %4187 = vmatpush2.msra.mxu0 0.0
        %4188 = vmatprep.subr.mxu0 0.0
        %4189 = vmatpush2.msra.mxu0 0.0
        %4190 = vmatprep.subr.mxu0 0.0
        %4191 = vmatpush2.msra.mxu0 0.0
        %4192 = vmatprep.subr.mxu0 0.0
        %4193 = vmatpush2.msra.mxu0 0.0
        %4194 = vmatprep.subr.mxu0 0.0
        %4195 = vmatpush2.msra.mxu0 0.0
        %4196 = vmatprep.subr.mxu0 0.0
        %4197 = vmatpush2.msra.mxu0 0.0
        %4198 = vmatprep.subr.mxu0 0.0
        %4199 = vmatpush2.msra.mxu0 0.0
        %4200 = vmatprep.mubr.f32.mxu0 0.0
        %v4201 = vand.u32 %v4053, 4294901760
        %4202 = vmatmul.mubr.f32.gmra.mxu0 %v4201
        %v4203 = vpop.f32.mrf.mxu0
        %v4204 = vadd.f32 %v4128, %v4203
        %v4205 = vpop.f32.mrf.mxu0
        %4206 = vdwg.mxu0
        %4207 = vmatprep.subr.mxu0 0.0
        %4208 = vmatpush1.msra.mxu0 0.0
        %4209 = vmatprep.subr.mxu0 0.0
        %4210 = vmatpush1.msra.mxu0 0.0
        %4211 = vmatprep.subr.mxu0 0.0
        %4212 = vmatpush1.msra.mxu0 0.0
        %4213 = vmatprep.subr.mxu0 0.0
        %4214 = vmatpush1.msra.mxu0 0.0
        %4215 = vmatprep.subr.mxu0 0.0
        %4216 = vmatpush1.msra.mxu0 0.0
        %4217 = vmatprep.subr.mxu0 0.0
        %4218 = vmatpush1.msra.mxu0 0.0
        %4219 = vmatprep.subr.mxu0 0.0
        %4220 = vmatpush1.msra.mxu0 0.0
        %4221 = vmatprep.subr.mxu0 0.0
        %4222 = vmatpush1.msra.mxu0 0.0
        %4223 = vmatprep.subr.mxu0 0.0
        %4224 = vmatpush1.msra.mxu0 0.0
        %4225 = vmatprep.subr.mxu0 0.0
        %4226 = vmatpush1.msra.mxu0 0.0
        %4227 = vmatprep.subr.mxu0 0.0
        %4228 = vmatpush1.msra.mxu0 0.0
        %4229 = vmatprep.subr.mxu0 0.0
        %4230 = vmatpush1.msra.mxu0 0.0
        %4231 = vmatprep.subr.mxu0 0.0
        %4232 = vmatpush1.msra.mxu0 0.0
        %4233 = vmatprep.subr.mxu0 0.0
        %4234 = vmatpush1.msra.mxu0 0.0
        %4235 = vmatprep.subr.mxu0 0.0
        %4236 = vmatpush1.msra.mxu0 0.0
        %4237 = vmatprep.subr.mxu0 0.0
        %v4238 = vand.u32 %v4050, 4294901760
        %v4239 = vsub.f32 %v4050, %v4238
        %4240 = vmatpush1.msra.mxu0 %v4239
        %4241 = vmatprep.subr.mxu0 0.0
        %4242 = vmatpush2.msra.mxu0 0.0
        %4243 = vmatprep.subr.mxu0 0.0
        %4244 = vmatpush2.msra.mxu0 0.0
        %4245 = vmatprep.subr.mxu0 0.0
        %4246 = vmatpush2.msra.mxu0 0.0
        %4247 = vmatprep.subr.mxu0 0.0
        %4248 = vmatpush2.msra.mxu0 0.0
        %4249 = vmatprep.subr.mxu0 0.0
        %4250 = vmatpush2.msra.mxu0 0.0
        %4251 = vmatprep.subr.mxu0 0.0
        %4252 = vmatpush2.msra.mxu0 0.0
        %4253 = vmatprep.subr.mxu0 0.0
        %4254 = vmatpush2.msra.mxu0 0.0
        %4255 = vmatprep.subr.mxu0 0.0
        %4256 = vmatpush2.msra.mxu0 0.0
        %4257 = vmatprep.subr.mxu0 0.0
        %4258 = vmatpush2.msra.mxu0 0.0
        %4259 = vmatprep.subr.mxu0 0.0
        %4260 = vmatpush2.msra.mxu0 0.0
        %4261 = vmatprep.subr.mxu0 0.0
        %4262 = vmatpush2.msra.mxu0 0.0
        %4263 = vmatprep.subr.mxu0 0.0
        %4264 = vmatpush2.msra.mxu0 0.0
        %4265 = vmatprep.subr.mxu0 0.0
        %4266 = vmatpush2.msra.mxu0 0.0
        %4267 = vmatprep.subr.mxu0 0.0
        %4268 = vmatpush2.msra.mxu0 0.0
        %4269 = vmatprep.subr.mxu0 0.0
        %4270 = vmatpush2.msra.mxu0 0.0
        %4271 = vmatprep.subr.mxu0 0.0
        %4272 = vmatpush2.msra.mxu0 0.0
        %4273 = vmatprep.mubr.f32.mxu0 0.0
        %v4274 = vand.u32 %v4053, 4294901760
        %v4275 = vsub.f32 %v4053, %v4274
        %4276 = vmatmul.mubr.f32.gmra.mxu0 %v4275
        %v4277 = vpop.f32.mrf.mxu0
        %v4278 = vadd.f32 %v4204, %v4277
        %v4279 = vpop.f32.mrf.mxu0
        %4280 = vdwg.mxu0
        %4281 = vmatprep.subr.mxu0 0.0
        %4282 = vmatpush1.msra.mxu0 0.0
        %4283 = vmatprep.subr.mxu0 0.0
        %4284 = vmatpush1.msra.mxu0 0.0
        %4285 = vmatprep.subr.mxu0 0.0
        %4286 = vmatpush1.msra.mxu0 0.0
        %4287 = vmatprep.subr.mxu0 0.0
        %4288 = vmatpush1.msra.mxu0 0.0
        %4289 = vmatprep.subr.mxu0 0.0
        %4290 = vmatpush1.msra.mxu0 0.0
        %4291 = vmatprep.subr.mxu0 0.0
        %4292 = vmatpush1.msra.mxu0 0.0
        %4293 = vmatprep.subr.mxu0 0.0
        %4294 = vmatpush1.msra.mxu0 0.0
        %4295 = vmatprep.subr.mxu0 0.0
        %4296 = vmatpush1.msra.mxu0 0.0
        %4297 = vmatprep.subr.mxu0 0.0
        %4298 = vmatpush1.msra.mxu0 0.0
        %4299 = vmatprep.subr.mxu0 0.0
        %4300 = vmatpush1.msra.mxu0 0.0
        %4301 = vmatprep.subr.mxu0 0.0
        %4302 = vmatpush1.msra.mxu0 0.0
        %4303 = vmatprep.subr.mxu0 0.0
        %4304 = vmatpush1.msra.mxu0 0.0
        %4305 = vmatprep.subr.mxu0 0.0
        %4306 = vmatpush1.msra.mxu0 0.0
        %4307 = vmatprep.subr.mxu0 0.0
        %4308 = vmatpush1.msra.mxu0 0.0
        %4309 = vmatprep.subr.mxu0 0.0
        %4310 = vmatpush1.msra.mxu0 0.0
        %4311 = vmatprep.subr.mxu0 0.0
        %v4312 = vand.u32 %v4050, 4294901760
        %4313 = vmatpush1.msra.mxu0 %v4312
        %4314 = vmatprep.subr.mxu0 0.0
        %4315 = vmatpush2.msra.mxu0 0.0
        %4316 = vmatprep.subr.mxu0 0.0
        %4317 = vmatpush2.msra.mxu0 0.0
        %4318 = vmatprep.subr.mxu0 0.0
        %4319 = vmatpush2.msra.mxu0 0.0
        %4320 = vmatprep.subr.mxu0 0.0
        %4321 = vmatpush2.msra.mxu0 0.0
        %4322 = vmatprep.subr.mxu0 0.0
        %4323 = vmatpush2.msra.mxu0 0.0
        %4324 = vmatprep.subr.mxu0 0.0
        %4325 = vmatpush2.msra.mxu0 0.0
        %4326 = vmatprep.subr.mxu0 0.0
        %4327 = vmatpush2.msra.mxu0 0.0
        %4328 = vmatprep.subr.mxu0 0.0
        %4329 = vmatpush2.msra.mxu0 0.0
        %4330 = vmatprep.subr.mxu0 0.0
        %4331 = vmatpush2.msra.mxu0 0.0
        %4332 = vmatprep.subr.mxu0 0.0
        %4333 = vmatpush2.msra.mxu0 0.0
        %4334 = vmatprep.subr.mxu0 0.0
        %4335 = vmatpush2.msra.mxu0 0.0
        %4336 = vmatprep.subr.mxu0 0.0
        %4337 = vmatpush2.msra.mxu0 0.0
        %4338 = vmatprep.subr.mxu0 0.0
        %4339 = vmatpush2.msra.mxu0 0.0
        %4340 = vmatprep.subr.mxu0 0.0
        %4341 = vmatpush2.msra.mxu0 0.0
        %4342 = vmatprep.subr.mxu0 0.0
        %4343 = vmatpush2.msra.mxu0 0.0
        %4344 = vmatprep.subr.mxu0 0.0
        %4345 = vmatpush2.msra.mxu0 0.0
        %4346 = vmatprep.mubr.f32.mxu0 0.0
        %v4347 = vand.u32 %v4053, 4294901760
        %v4348 = vsub.f32 %v4053, %v4347
        %v4349 = vand.u32 %v4348, 4294901760
        %4350 = vmatmul.mubr.f32.gmra.mxu0 %v4349
        %v4351 = vpop.f32.mrf.mxu0
        %v4352 = vadd.f32 %v4278, %v4351
        %v4353 = vpop.f32.mrf.mxu0
        %4354 = vdwg.mxu0
        %4355 = vmatprep.subr.mxu0 0.0
        %4356 = vmatpush1.msra.mxu0 0.0
        %4357 = vmatprep.subr.mxu0 0.0
        %4358 = vmatpush1.msra.mxu0 0.0
        %4359 = vmatprep.subr.mxu0 0.0
        %4360 = vmatpush1.msra.mxu0 0.0
        %4361 = vmatprep.subr.mxu0 0.0
        %4362 = vmatpush1.msra.mxu0 0.0
        %4363 = vmatprep.subr.mxu0 0.0
        %4364 = vmatpush1.msra.mxu0 0.0
        %4365 = vmatprep.subr.mxu0 0.0
        %4366 = vmatpush1.msra.mxu0 0.0
        %4367 = vmatprep.subr.mxu0 0.0
        %4368 = vmatpush1.msra.mxu0 0.0
        %4369 = vmatprep.subr.mxu0 0.0
        %4370 = vmatpush1.msra.mxu0 0.0
        %4371 = vmatprep.subr.mxu0 0.0
        %4372 = vmatpush1.msra.mxu0 0.0
        %4373 = vmatprep.subr.mxu0 0.0
        %4374 = vmatpush1.msra.mxu0 0.0
        %4375 = vmatprep.subr.mxu0 0.0
        %4376 = vmatpush1.msra.mxu0 0.0
        %4377 = vmatprep.subr.mxu0 0.0
        %4378 = vmatpush1.msra.mxu0 0.0
        %4379 = vmatprep.subr.mxu0 0.0
        %4380 = vmatpush1.msra.mxu0 0.0
        %4381 = vmatprep.subr.mxu0 0.0
        %4382 = vmatpush1.msra.mxu0 0.0
        %4383 = vmatprep.subr.mxu0 0.0
        %4384 = vmatpush1.msra.mxu0 0.0
        %4385 = vmatprep.subr.mxu0 0.0
        %v4386 = vand.u32 %v4050, 4294901760
        %v4387 = vsub.f32 %v4050, %v4386
        %v4388 = vand.u32 %v4387, 4294901760
        %4389 = vmatpush1.msra.mxu0 %v4388
        %4390 = vmatprep.subr.mxu0 0.0
        %4391 = vmatpush2.msra.mxu0 0.0
        %4392 = vmatprep.subr.mxu0 0.0
        %4393 = vmatpush2.msra.mxu0 0.0
        %4394 = vmatprep.subr.mxu0 0.0
        %4395 = vmatpush2.msra.mxu0 0.0
        %4396 = vmatprep.subr.mxu0 0.0
        %4397 = vmatpush2.msra.mxu0 0.0
        %4398 = vmatprep.subr.mxu0 0.0
        %4399 = vmatpush2.msra.mxu0 0.0
        %4400 = vmatprep.subr.mxu0 0.0
        %4401 = vmatpush2.msra.mxu0 0.0
        %4402 = vmatprep.subr.mxu0 0.0
        %4403 = vmatpush2.msra.mxu0 0.0
        %4404 = vmatprep.subr.mxu0 0.0
        %4405 = vmatpush2.msra.mxu0 0.0
        %4406 = vmatprep.subr.mxu0 0.0
        %4407 = vmatpush2.msra.mxu0 0.0
        %4408 = vmatprep.subr.mxu0 0.0
        %4409 = vmatpush2.msra.mxu0 0.0
        %4410 = vmatprep.subr.mxu0 0.0
        %4411 = vmatpush2.msra.mxu0 0.0
        %4412 = vmatprep.subr.mxu0 0.0
        %4413 = vmatpush2.msra.mxu0 0.0
        %4414 = vmatprep.subr.mxu0 0.0
        %4415 = vmatpush2.msra.mxu0 0.0
        %4416 = vmatprep.subr.mxu0 0.0
        %4417 = vmatpush2.msra.mxu0 0.0
        %4418 = vmatprep.subr.mxu0 0.0
        %4419 = vmatpush2.msra.mxu0 0.0
        %4420 = vmatprep.subr.mxu0 0.0
        %4421 = vmatpush2.msra.mxu0 0.0
        %4422 = vmatprep.mubr.f32.mxu0 0.0
        %v4423 = vand.u32 %v4053, 4294901760
        %4424 = vmatmul.mubr.f32.gmra.mxu0 %v4423
        %v4425 = vpop.f32.mrf.mxu0
        %v4426 = vadd.f32 %v4352, %v4425
        %v4427 = vpop.f32.mrf.mxu0
        %4428 = vdwg.mxu0
        %4429 = vmatprep.subr.mxu0 0.0
        %4430 = vmatpush1.msra.mxu0 0.0
        %4431 = vmatprep.subr.mxu0 0.0
        %4432 = vmatpush1.msra.mxu0 0.0
        %4433 = vmatprep.subr.mxu0 0.0
        %4434 = vmatpush1.msra.mxu0 0.0
        %4435 = vmatprep.subr.mxu0 0.0
        %4436 = vmatpush1.msra.mxu0 0.0
        %4437 = vmatprep.subr.mxu0 0.0
        %4438 = vmatpush1.msra.mxu0 0.0
        %4439 = vmatprep.subr.mxu0 0.0
        %4440 = vmatpush1.msra.mxu0 0.0
        %4441 = vmatprep.subr.mxu0 0.0
        %4442 = vmatpush1.msra.mxu0 0.0
        %4443 = vmatprep.subr.mxu0 0.0
        %4444 = vmatpush1.msra.mxu0 0.0
        %4445 = vmatprep.subr.mxu0 0.0
        %4446 = vmatpush1.msra.mxu0 0.0
        %4447 = vmatprep.subr.mxu0 0.0
        %4448 = vmatpush1.msra.mxu0 0.0
        %4449 = vmatprep.subr.mxu0 0.0
        %4450 = vmatpush1.msra.mxu0 0.0
        %4451 = vmatprep.subr.mxu0 0.0
        %4452 = vmatpush1.msra.mxu0 0.0
        %4453 = vmatprep.subr.mxu0 0.0
        %4454 = vmatpush1.msra.mxu0 0.0
        %4455 = vmatprep.subr.mxu0 0.0
        %4456 = vmatpush1.msra.mxu0 0.0
        %4457 = vmatprep.subr.mxu0 0.0
        %4458 = vmatpush1.msra.mxu0 0.0
        %4459 = vmatprep.subr.mxu0 0.0
        %v4460 = vand.u32 %v4050, 4294901760
        %4461 = vmatpush1.msra.mxu0 %v4460
        %4462 = vmatprep.subr.mxu0 0.0
        %4463 = vmatpush2.msra.mxu0 0.0
        %4464 = vmatprep.subr.mxu0 0.0
        %4465 = vmatpush2.msra.mxu0 0.0
        %4466 = vmatprep.subr.mxu0 0.0
        %4467 = vmatpush2.msra.mxu0 0.0
        %4468 = vmatprep.subr.mxu0 0.0
        %4469 = vmatpush2.msra.mxu0 0.0
        %4470 = vmatprep.subr.mxu0 0.0
        %4471 = vmatpush2.msra.mxu0 0.0
        %4472 = vmatprep.subr.mxu0 0.0
        %4473 = vmatpush2.msra.mxu0 0.0
        %4474 = vmatprep.subr.mxu0 0.0
        %4475 = vmatpush2.msra.mxu0 0.0
        %4476 = vmatprep.subr.mxu0 0.0
        %4477 = vmatpush2.msra.mxu0 0.0
        %4478 = vmatprep.subr.mxu0 0.0
        %4479 = vmatpush2.msra.mxu0 0.0
        %4480 = vmatprep.subr.mxu0 0.0
        %4481 = vmatpush2.msra.mxu0 0.0
        %4482 = vmatprep.subr.mxu0 0.0
        %4483 = vmatpush2.msra.mxu0 0.0
        %4484 = vmatprep.subr.mxu0 0.0
        %4485 = vmatpush2.msra.mxu0 0.0
        %4486 = vmatprep.subr.mxu0 0.0
        %4487 = vmatpush2.msra.mxu0 0.0
        %4488 = vmatprep.subr.mxu0 0.0
        %4489 = vmatpush2.msra.mxu0 0.0
        %4490 = vmatprep.subr.mxu0 0.0
        %4491 = vmatpush2.msra.mxu0 0.0
        %4492 = vmatprep.subr.mxu0 0.0
        %4493 = vmatpush2.msra.mxu0 0.0
        %4494 = vmatprep.mubr.f32.mxu0 0.0
        %v4495 = vand.u32 %v4053, 4294901760
        %4496 = vmatmul.mubr.f32.gmra.mxu0 %v4495
        %v4497 = vpop.f32.mrf.mxu0
        %v4498 = vadd.f32 %v4426, %v4497
        %v4499 = vpop.f32.mrf.mxu0
        %4500 = vdwg.mxu0
        %v4501 = vrcp.pop %v4048
        %v4502 = vmul.f32 %v4498, %v4501
        %4504 = vrot.lane.b32.xlu0 %v4502, 24
        %v4505 = vpop.permute.xlu0 %4504
        %vm4507 = vcmask 261312
        %4508 = vst.msk [vmem:[#allocation3] sm:$0xff] %vm4507, %v4505
        %v4509 = vld [vmem:[#allocation3] sm:$0xff]
        %v4510 = vld [vmem:[#allocation9] sm:$0xff]
        %v4511 = vld [vmem:[#allocation9 + $0x8] sm:$0xff]
        %v4512 = vld [vmem:[#allocation9 + $0x10] sm:$0xff]
        %v4513 = vld [vmem:[#allocation9 + $0x18] sm:$0xff]
        %v4514 = vld [vmem:[%s4] sm:$0x1]
        %v4516 = vlaneseq
        %v4517 = vshrl.u32 %v4516, 7
        %v4518 = vsub.s32 0, %v4517
        %v4519 = vrot.slane %v4514, %v4518
        %vm4521 = vcmask 261120
        %v4523 = vsel %vm4521, %v4509, 0
        %4525 = vmatprep.subr.mxu0 0.0
        %4526 = vmatpush1.msra.mxu0 0.0
        %4527 = vmatprep.subr.mxu0 0.0
        %4528 = vmatpush1.msra.mxu0 0.0
        %4529 = vmatprep.subr.mxu0 0.0
        %4530 = vmatpush1.msra.mxu0 0.0
        %4531 = vmatprep.subr.mxu0 0.0
        %4532 = vmatpush1.msra.mxu0 0.0
        %4533 = vmatprep.subr.mxu0 0.0
        %4534 = vmatpush1.msra.mxu0 0.0
        %4535 = vmatprep.subr.mxu0 0.0
        %4536 = vmatpush1.msra.mxu0 0.0
        %4537 = vmatprep.subr.mxu0 0.0
        %4538 = vmatpush1.msra.mxu0 0.0
        %4539 = vmatprep.subr.mxu0 0.0
        %4540 = vmatpush1.msra.mxu0 0.0
        %4541 = vmatprep.subr.mxu0 0.0
        %4542 = vmatpush1.msra.mxu0 0.0
        %4543 = vmatprep.subr.mxu0 0.0
        %4544 = vmatpush1.msra.mxu0 0.0
        %4545 = vmatprep.subr.mxu0 0.0
        %4546 = vmatpush1.msra.mxu0 0.0
        %4547 = vmatprep.subr.mxu0 0.0
        %4548 = vmatpush1.msra.mxu0 0.0
        %4549 = vmatprep.subr.mxu0 0.0
        %v4550 = vand.u32 %v4513, 4294901760
        %4551 = vmatpush1.msra.mxu0 %v4550
        %4552 = vmatprep.subr.mxu0 0.0
        %v4553 = vand.u32 %v4512, 4294901760
        %4554 = vmatpush1.msra.mxu0 %v4553
        %4555 = vmatprep.subr.mxu0 0.0
        %v4556 = vand.u32 %v4511, 4294901760
        %4557 = vmatpush1.msra.mxu0 %v4556
        %4558 = vmatprep.subr.mxu0 0.0
        %v4559 = vand.u32 %v4510, 4294901760
        %4560 = vmatpush1.msra.mxu0 %v4559
        %4561 = vmatprep.subr.mxu0 0.0
        %4562 = vmatpush2.msra.mxu0 0.0
        %4563 = vmatprep.subr.mxu0 0.0
        %4564 = vmatpush2.msra.mxu0 0.0
        %4565 = vmatprep.subr.mxu0 0.0
        %4566 = vmatpush2.msra.mxu0 0.0
        %4567 = vmatprep.subr.mxu0 0.0
        %4568 = vmatpush2.msra.mxu0 0.0
        %4569 = vmatprep.subr.mxu0 0.0
        %4570 = vmatpush2.msra.mxu0 0.0
        %4571 = vmatprep.subr.mxu0 0.0
        %4572 = vmatpush2.msra.mxu0 0.0
        %4573 = vmatprep.subr.mxu0 0.0
        %4574 = vmatpush2.msra.mxu0 0.0
        %4575 = vmatprep.subr.mxu0 0.0
        %4576 = vmatpush2.msra.mxu0 0.0
        %4577 = vmatprep.subr.mxu0 0.0
        %4578 = vmatpush2.msra.mxu0 0.0
        %4579 = vmatprep.subr.mxu0 0.0
        %4580 = vmatpush2.msra.mxu0 0.0
        %4581 = vmatprep.subr.mxu0 0.0
        %4582 = vmatpush2.msra.mxu0 0.0
        %4583 = vmatprep.subr.mxu0 0.0
        %4584 = vmatpush2.msra.mxu0 0.0
        %4585 = vmatprep.subr.mxu0 0.0
        %4586 = vmatpush2.msra.mxu0 0.0
        %4587 = vmatprep.subr.mxu0 0.0
        %4588 = vmatpush2.msra.mxu0 0.0
        %4589 = vmatprep.subr.mxu0 0.0
        %4590 = vmatpush2.msra.mxu0 0.0
        %4591 = vmatprep.subr.mxu0 0.0
        %4592 = vmatpush2.msra.mxu0 0.0
        %4593 = vmatprep.mubr.f32.mxu0 0.0
        %v4594 = vand.u32 %v4523, 4294901760
        %v4595 = vsub.f32 %v4523, %v4594
        %v4596 = vand.u32 %v4595, 4294901760
        %v4597 = vsub.f32 %v4595, %v4596
        %v4598 = vand.u32 %v4597, 4294901760
        %4599 = vmatmul.mubr.f32.gmra.mxu0 %v4598
        %v4600 = vpop.f32.mrf.mxu0
        %v4601 = vadd.f32 %v4519, %v4600
        %v4602 = vpop.f32.mrf.mxu0
        %4603 = vdwg.mxu0
        %4604 = vmatprep.subr.mxu0 0.0
        %4605 = vmatpush1.msra.mxu0 0.0
        %4606 = vmatprep.subr.mxu0 0.0
        %4607 = vmatpush1.msra.mxu0 0.0
        %4608 = vmatprep.subr.mxu0 0.0
        %4609 = vmatpush1.msra.mxu0 0.0
        %4610 = vmatprep.subr.mxu0 0.0
        %4611 = vmatpush1.msra.mxu0 0.0
        %4612 = vmatprep.subr.mxu0 0.0
        %4613 = vmatpush1.msra.mxu0 0.0
        %4614 = vmatprep.subr.mxu0 0.0
        %4615 = vmatpush1.msra.mxu0 0.0
        %4616 = vmatprep.subr.mxu0 0.0
        %4617 = vmatpush1.msra.mxu0 0.0
        %4618 = vmatprep.subr.mxu0 0.0
        %4619 = vmatpush1.msra.mxu0 0.0
        %4620 = vmatprep.subr.mxu0 0.0
        %4621 = vmatpush1.msra.mxu0 0.0
        %4622 = vmatprep.subr.mxu0 0.0
        %4623 = vmatpush1.msra.mxu0 0.0
        %4624 = vmatprep.subr.mxu0 0.0
        %4625 = vmatpush1.msra.mxu0 0.0
        %4626 = vmatprep.subr.mxu0 0.0
        %4627 = vmatpush1.msra.mxu0 0.0
        %4628 = vmatprep.subr.mxu0 0.0
        %v4629 = vand.u32 %v4513, 4294901760
        %v4630 = vsub.f32 %v4513, %v4629
        %v4631 = vand.u32 %v4630, 4294901760
        %v4632 = vsub.f32 %v4630, %v4631
        %v4633 = vand.u32 %v4632, 4294901760
        %4634 = vmatpush1.msra.mxu0 %v4633
        %4635 = vmatprep.subr.mxu0 0.0
        %v4636 = vand.u32 %v4512, 4294901760
        %v4637 = vsub.f32 %v4512, %v4636
        %v4638 = vand.u32 %v4637, 4294901760
        %v4639 = vsub.f32 %v4637, %v4638
        %v4640 = vand.u32 %v4639, 4294901760
        %4641 = vmatpush1.msra.mxu0 %v4640
        %4642 = vmatprep.subr.mxu0 0.0
        %v4643 = vand.u32 %v4511, 4294901760
        %v4644 = vsub.f32 %v4511, %v4643
        %v4645 = vand.u32 %v4644, 4294901760
        %v4646 = vsub.f32 %v4644, %v4645
        %v4647 = vand.u32 %v4646, 4294901760
        %4648 = vmatpush1.msra.mxu0 %v4647
        %4649 = vmatprep.subr.mxu0 0.0
        %v4650 = vand.u32 %v4510, 4294901760
        %v4651 = vsub.f32 %v4510, %v4650
        %v4652 = vand.u32 %v4651, 4294901760
        %v4653 = vsub.f32 %v4651, %v4652
        %v4654 = vand.u32 %v4653, 4294901760
        %4655 = vmatpush1.msra.mxu0 %v4654
        %4656 = vmatprep.subr.mxu0 0.0
        %4657 = vmatpush2.msra.mxu0 0.0
        %4658 = vmatprep.subr.mxu0 0.0
        %4659 = vmatpush2.msra.mxu0 0.0
        %4660 = vmatprep.subr.mxu0 0.0
        %4661 = vmatpush2.msra.mxu0 0.0
        %4662 = vmatprep.subr.mxu0 0.0
        %4663 = vmatpush2.msra.mxu0 0.0
        %4664 = vmatprep.subr.mxu0 0.0
        %4665 = vmatpush2.msra.mxu0 0.0
        %4666 = vmatprep.subr.mxu0 0.0
        %4667 = vmatpush2.msra.mxu0 0.0
        %4668 = vmatprep.subr.mxu0 0.0
        %4669 = vmatpush2.msra.mxu0 0.0
        %4670 = vmatprep.subr.mxu0 0.0
        %4671 = vmatpush2.msra.mxu0 0.0
        %4672 = vmatprep.subr.mxu0 0.0
        %4673 = vmatpush2.msra.mxu0 0.0
        %4674 = vmatprep.subr.mxu0 0.0
        %4675 = vmatpush2.msra.mxu0 0.0
        %4676 = vmatprep.subr.mxu0 0.0
        %4677 = vmatpush2.msra.mxu0 0.0
        %4678 = vmatprep.subr.mxu0 0.0
        %4679 = vmatpush2.msra.mxu0 0.0
        %4680 = vmatprep.subr.mxu0 0.0
        %4681 = vmatpush2.msra.mxu0 0.0
        %4682 = vmatprep.subr.mxu0 0.0
        %4683 = vmatpush2.msra.mxu0 0.0
        %4684 = vmatprep.subr.mxu0 0.0
        %4685 = vmatpush2.msra.mxu0 0.0
        %4686 = vmatprep.subr.mxu0 0.0
        %4687 = vmatpush2.msra.mxu0 0.0
        %4688 = vmatprep.mubr.f32.mxu0 0.0
        %v4689 = vand.u32 %v4523, 4294901760
        %4690 = vmatmul.mubr.f32.gmra.mxu0 %v4689
        %v4691 = vpop.f32.mrf.mxu0
        %v4692 = vadd.f32 %v4601, %v4691
        %v4693 = vpop.f32.mrf.mxu0
        %4694 = vdwg.mxu0
        %4695 = vmatprep.subr.mxu0 0.0
        %4696 = vmatpush1.msra.mxu0 0.0
        %4697 = vmatprep.subr.mxu0 0.0
        %4698 = vmatpush1.msra.mxu0 0.0
        %4699 = vmatprep.subr.mxu0 0.0
        %4700 = vmatpush1.msra.mxu0 0.0
        %4701 = vmatprep.subr.mxu0 0.0
        %4702 = vmatpush1.msra.mxu0 0.0
        %4703 = vmatprep.subr.mxu0 0.0
        %4704 = vmatpush1.msra.mxu0 0.0
        %4705 = vmatprep.subr.mxu0 0.0
        %4706 = vmatpush1.msra.mxu0 0.0
        %4707 = vmatprep.subr.mxu0 0.0
        %4708 = vmatpush1.msra.mxu0 0.0
        %4709 = vmatprep.subr.mxu0 0.0
        %4710 = vmatpush1.msra.mxu0 0.0
        %4711 = vmatprep.subr.mxu0 0.0
        %4712 = vmatpush1.msra.mxu0 0.0
        %4713 = vmatprep.subr.mxu0 0.0
        %4714 = vmatpush1.msra.mxu0 0.0
        %4715 = vmatprep.subr.mxu0 0.0
        %4716 = vmatpush1.msra.mxu0 0.0
        %4717 = vmatprep.subr.mxu0 0.0
        %4718 = vmatpush1.msra.mxu0 0.0
        %4719 = vmatprep.subr.mxu0 0.0
        %v4720 = vand.u32 %v4513, 4294901760
        %v4721 = vsub.f32 %v4513, %v4720
        %4722 = vmatpush1.msra.mxu0 %v4721
        %4723 = vmatprep.subr.mxu0 0.0
        %v4724 = vand.u32 %v4512, 4294901760
        %v4725 = vsub.f32 %v4512, %v4724
        %4726 = vmatpush1.msra.mxu0 %v4725
        %4727 = vmatprep.subr.mxu0 0.0
        %v4728 = vand.u32 %v4511, 4294901760
        %v4729 = vsub.f32 %v4511, %v4728
        %4730 = vmatpush1.msra.mxu0 %v4729
        %4731 = vmatprep.subr.mxu0 0.0
        %v4732 = vand.u32 %v4510, 4294901760
        %v4733 = vsub.f32 %v4510, %v4732
        %4734 = vmatpush1.msra.mxu0 %v4733
        %4735 = vmatprep.subr.mxu0 0.0
        %4736 = vmatpush2.msra.mxu0 0.0
        %4737 = vmatprep.subr.mxu0 0.0
        %4738 = vmatpush2.msra.mxu0 0.0
        %4739 = vmatprep.subr.mxu0 0.0
        %4740 = vmatpush2.msra.mxu0 0.0
        %4741 = vmatprep.subr.mxu0 0.0
        %4742 = vmatpush2.msra.mxu0 0.0
        %4743 = vmatprep.subr.mxu0 0.0
        %4744 = vmatpush2.msra.mxu0 0.0
        %4745 = vmatprep.subr.mxu0 0.0
        %4746 = vmatpush2.msra.mxu0 0.0
        %4747 = vmatprep.subr.mxu0 0.0
        %4748 = vmatpush2.msra.mxu0 0.0
        %4749 = vmatprep.subr.mxu0 0.0
        %4750 = vmatpush2.msra.mxu0 0.0
        %4751 = vmatprep.subr.mxu0 0.0
        %4752 = vmatpush2.msra.mxu0 0.0
        %4753 = vmatprep.subr.mxu0 0.0
        %4754 = vmatpush2.msra.mxu0 0.0
        %4755 = vmatprep.subr.mxu0 0.0
        %4756 = vmatpush2.msra.mxu0 0.0
        %4757 = vmatprep.subr.mxu0 0.0
        %4758 = vmatpush2.msra.mxu0 0.0
        %4759 = vmatprep.subr.mxu0 0.0
        %4760 = vmatpush2.msra.mxu0 0.0
        %4761 = vmatprep.subr.mxu0 0.0
        %4762 = vmatpush2.msra.mxu0 0.0
        %4763 = vmatprep.subr.mxu0 0.0
        %4764 = vmatpush2.msra.mxu0 0.0
        %4765 = vmatprep.subr.mxu0 0.0
        %4766 = vmatpush2.msra.mxu0 0.0
        %4767 = vmatprep.mubr.f32.mxu0 0.0
        %v4768 = vand.u32 %v4523, 4294901760
        %v4769 = vsub.f32 %v4523, %v4768
        %4770 = vmatmul.mubr.f32.gmra.mxu0 %v4769
        %v4771 = vpop.f32.mrf.mxu0
        %v4772 = vadd.f32 %v4692, %v4771
        %v4773 = vpop.f32.mrf.mxu0
        %4774 = vdwg.mxu0
        %4775 = vmatprep.subr.mxu0 0.0
        %4776 = vmatpush1.msra.mxu0 0.0
        %4777 = vmatprep.subr.mxu0 0.0
        %4778 = vmatpush1.msra.mxu0 0.0
        %4779 = vmatprep.subr.mxu0 0.0
        %4780 = vmatpush1.msra.mxu0 0.0
        %4781 = vmatprep.subr.mxu0 0.0
        %4782 = vmatpush1.msra.mxu0 0.0
        %4783 = vmatprep.subr.mxu0 0.0
        %4784 = vmatpush1.msra.mxu0 0.0
        %4785 = vmatprep.subr.mxu0 0.0
        %4786 = vmatpush1.msra.mxu0 0.0
        %4787 = vmatprep.subr.mxu0 0.0
        %4788 = vmatpush1.msra.mxu0 0.0
        %4789 = vmatprep.subr.mxu0 0.0
        %4790 = vmatpush1.msra.mxu0 0.0
        %4791 = vmatprep.subr.mxu0 0.0
        %4792 = vmatpush1.msra.mxu0 0.0
        %4793 = vmatprep.subr.mxu0 0.0
        %4794 = vmatpush1.msra.mxu0 0.0
        %4795 = vmatprep.subr.mxu0 0.0
        %4796 = vmatpush1.msra.mxu0 0.0
        %4797 = vmatprep.subr.mxu0 0.0
        %4798 = vmatpush1.msra.mxu0 0.0
        %4799 = vmatprep.subr.mxu0 0.0
        %v4800 = vand.u32 %v4513, 4294901760
        %4801 = vmatpush1.msra.mxu0 %v4800
        %4802 = vmatprep.subr.mxu0 0.0
        %v4803 = vand.u32 %v4512, 4294901760
        %4804 = vmatpush1.msra.mxu0 %v4803
        %4805 = vmatprep.subr.mxu0 0.0
        %v4806 = vand.u32 %v4511, 4294901760
        %4807 = vmatpush1.msra.mxu0 %v4806
        %4808 = vmatprep.subr.mxu0 0.0
        %v4809 = vand.u32 %v4510, 4294901760
        %4810 = vmatpush1.msra.mxu0 %v4809
        %4811 = vmatprep.subr.mxu0 0.0
        %4812 = vmatpush2.msra.mxu0 0.0
        %4813 = vmatprep.subr.mxu0 0.0
        %4814 = vmatpush2.msra.mxu0 0.0
        %4815 = vmatprep.subr.mxu0 0.0
        %4816 = vmatpush2.msra.mxu0 0.0
        %4817 = vmatprep.subr.mxu0 0.0
        %4818 = vmatpush2.msra.mxu0 0.0
        %4819 = vmatprep.subr.mxu0 0.0
        %4820 = vmatpush2.msra.mxu0 0.0
        %4821 = vmatprep.subr.mxu0 0.0
        %4822 = vmatpush2.msra.mxu0 0.0
        %4823 = vmatprep.subr.mxu0 0.0
        %4824 = vmatpush2.msra.mxu0 0.0
        %4825 = vmatprep.subr.mxu0 0.0
        %4826 = vmatpush2.msra.mxu0 0.0
        %4827 = vmatprep.subr.mxu0 0.0
        %4828 = vmatpush2.msra.mxu0 0.0
        %4829 = vmatprep.subr.mxu0 0.0
        %4830 = vmatpush2.msra.mxu0 0.0
        %4831 = vmatprep.subr.mxu0 0.0
        %4832 = vmatpush2.msra.mxu0 0.0
        %4833 = vmatprep.subr.mxu0 0.0
        %4834 = vmatpush2.msra.mxu0 0.0
        %4835 = vmatprep.subr.mxu0 0.0
        %4836 = vmatpush2.msra.mxu0 0.0
        %4837 = vmatprep.subr.mxu0 0.0
        %4838 = vmatpush2.msra.mxu0 0.0
        %4839 = vmatprep.subr.mxu0 0.0
        %4840 = vmatpush2.msra.mxu0 0.0
        %4841 = vmatprep.subr.mxu0 0.0
        %4842 = vmatpush2.msra.mxu0 0.0
        %4843 = vmatprep.mubr.f32.mxu0 0.0
        %v4844 = vand.u32 %v4523, 4294901760
        %v4845 = vsub.f32 %v4523, %v4844
        %v4846 = vand.u32 %v4845, 4294901760
        %4847 = vmatmul.mubr.f32.gmra.mxu0 %v4846
        %v4848 = vpop.f32.mrf.mxu0
        %v4849 = vadd.f32 %v4772, %v4848
        %v4850 = vpop.f32.mrf.mxu0
        %4851 = vdwg.mxu0
        %4852 = vmatprep.subr.mxu0 0.0
        %4853 = vmatpush1.msra.mxu0 0.0
        %4854 = vmatprep.subr.mxu0 0.0
        %4855 = vmatpush1.msra.mxu0 0.0
        %4856 = vmatprep.subr.mxu0 0.0
        %4857 = vmatpush1.msra.mxu0 0.0
        %4858 = vmatprep.subr.mxu0 0.0
        %4859 = vmatpush1.msra.mxu0 0.0
        %4860 = vmatprep.subr.mxu0 0.0
        %4861 = vmatpush1.msra.mxu0 0.0
        %4862 = vmatprep.subr.mxu0 0.0
        %4863 = vmatpush1.msra.mxu0 0.0
        %4864 = vmatprep.subr.mxu0 0.0
        %4865 = vmatpush1.msra.mxu0 0.0
        %4866 = vmatprep.subr.mxu0 0.0
        %4867 = vmatpush1.msra.mxu0 0.0
        %4868 = vmatprep.subr.mxu0 0.0
        %4869 = vmatpush1.msra.mxu0 0.0
        %4870 = vmatprep.subr.mxu0 0.0
        %4871 = vmatpush1.msra.mxu0 0.0
        %4872 = vmatprep.subr.mxu0 0.0
        %4873 = vmatpush1.msra.mxu0 0.0
        %4874 = vmatprep.subr.mxu0 0.0
        %4875 = vmatpush1.msra.mxu0 0.0
        %4876 = vmatprep.subr.mxu0 0.0
        %v4877 = vand.u32 %v4513, 4294901760
        %v4878 = vsub.f32 %v4513, %v4877
        %v4879 = vand.u32 %v4878, 4294901760
        %4880 = vmatpush1.msra.mxu0 %v4879
        %4881 = vmatprep.subr.mxu0 0.0
        %v4882 = vand.u32 %v4512, 4294901760
        %v4883 = vsub.f32 %v4512, %v4882
        %v4884 = vand.u32 %v4883, 4294901760
        %4885 = vmatpush1.msra.mxu0 %v4884
        %4886 = vmatprep.subr.mxu0 0.0
        %v4887 = vand.u32 %v4511, 4294901760
        %v4888 = vsub.f32 %v4511, %v4887
        %v4889 = vand.u32 %v4888, 4294901760
        %4890 = vmatpush1.msra.mxu0 %v4889
        %4891 = vmatprep.subr.mxu0 0.0
        %v4892 = vand.u32 %v4510, 4294901760
        %v4893 = vsub.f32 %v4510, %v4892
        %v4894 = vand.u32 %v4893, 4294901760
        %4895 = vmatpush1.msra.mxu0 %v4894
        %4896 = vmatprep.subr.mxu0 0.0
        %4897 = vmatpush2.msra.mxu0 0.0
        %4898 = vmatprep.subr.mxu0 0.0
        %4899 = vmatpush2.msra.mxu0 0.0
        %4900 = vmatprep.subr.mxu0 0.0
        %4901 = vmatpush2.msra.mxu0 0.0
        %4902 = vmatprep.subr.mxu0 0.0
        %4903 = vmatpush2.msra.mxu0 0.0
        %4904 = vmatprep.subr.mxu0 0.0
        %4905 = vmatpush2.msra.mxu0 0.0
        %4906 = vmatprep.subr.mxu0 0.0
        %4907 = vmatpush2.msra.mxu0 0.0
        %4908 = vmatprep.subr.mxu0 0.0
        %4909 = vmatpush2.msra.mxu0 0.0
        %4910 = vmatprep.subr.mxu0 0.0
        %4911 = vmatpush2.msra.mxu0 0.0
        %4912 = vmatprep.subr.mxu0 0.0
        %4913 = vmatpush2.msra.mxu0 0.0
        %4914 = vmatprep.subr.mxu0 0.0
        %4915 = vmatpush2.msra.mxu0 0.0
        %4916 = vmatprep.subr.mxu0 0.0
        %4917 = vmatpush2.msra.mxu0 0.0
        %4918 = vmatprep.subr.mxu0 0.0
        %4919 = vmatpush2.msra.mxu0 0.0
        %4920 = vmatprep.subr.mxu0 0.0
        %4921 = vmatpush2.msra.mxu0 0.0
        %4922 = vmatprep.subr.mxu0 0.0
        %4923 = vmatpush2.msra.mxu0 0.0
        %4924 = vmatprep.subr.mxu0 0.0
        %4925 = vmatpush2.msra.mxu0 0.0
        %4926 = vmatprep.subr.mxu0 0.0
        %4927 = vmatpush2.msra.mxu0 0.0
        %4928 = vmatprep.mubr.f32.mxu0 0.0
        %v4929 = vand.u32 %v4523, 4294901760
        %4930 = vmatmul.mubr.f32.gmra.mxu0 %v4929
        %v4931 = vpop.f32.mrf.mxu0
        %v4932 = vadd.f32 %v4849, %v4931
        %v4933 = vpop.f32.mrf.mxu0
        %4934 = vdwg.mxu0
        %4935 = vmatprep.subr.mxu0 0.0
        %4936 = vmatpush1.msra.mxu0 0.0
        %4937 = vmatprep.subr.mxu0 0.0
        %4938 = vmatpush1.msra.mxu0 0.0
        %4939 = vmatprep.subr.mxu0 0.0
        %4940 = vmatpush1.msra.mxu0 0.0
        %4941 = vmatprep.subr.mxu0 0.0
        %4942 = vmatpush1.msra.mxu0 0.0
        %4943 = vmatprep.subr.mxu0 0.0
        %4944 = vmatpush1.msra.mxu0 0.0
        %4945 = vmatprep.subr.mxu0 0.0
        %4946 = vmatpush1.msra.mxu0 0.0
        %4947 = vmatprep.subr.mxu0 0.0
        %4948 = vmatpush1.msra.mxu0 0.0
        %4949 = vmatprep.subr.mxu0 0.0
        %4950 = vmatpush1.msra.mxu0 0.0
        %4951 = vmatprep.subr.mxu0 0.0
        %4952 = vmatpush1.msra.mxu0 0.0
        %4953 = vmatprep.subr.mxu0 0.0
        %4954 = vmatpush1.msra.mxu0 0.0
        %4955 = vmatprep.subr.mxu0 0.0
        %4956 = vmatpush1.msra.mxu0 0.0
        %4957 = vmatprep.subr.mxu0 0.0
        %4958 = vmatpush1.msra.mxu0 0.0
        %4959 = vmatprep.subr.mxu0 0.0
        %v4960 = vand.u32 %v4513, 4294901760
        %4961 = vmatpush1.msra.mxu0 %v4960
        %4962 = vmatprep.subr.mxu0 0.0
        %v4963 = vand.u32 %v4512, 4294901760
        %4964 = vmatpush1.msra.mxu0 %v4963
        %4965 = vmatprep.subr.mxu0 0.0
        %v4966 = vand.u32 %v4511, 4294901760
        %4967 = vmatpush1.msra.mxu0 %v4966
        %4968 = vmatprep.subr.mxu0 0.0
        %v4969 = vand.u32 %v4510, 4294901760
        %4970 = vmatpush1.msra.mxu0 %v4969
        %4971 = vmatprep.subr.mxu0 0.0
        %4972 = vmatpush2.msra.mxu0 0.0
        %4973 = vmatprep.subr.mxu0 0.0
        %4974 = vmatpush2.msra.mxu0 0.0
        %4975 = vmatprep.subr.mxu0 0.0
        %4976 = vmatpush2.msra.mxu0 0.0
        %4977 = vmatprep.subr.mxu0 0.0
        %4978 = vmatpush2.msra.mxu0 0.0
        %4979 = vmatprep.subr.mxu0 0.0
        %4980 = vmatpush2.msra.mxu0 0.0
        %4981 = vmatprep.subr.mxu0 0.0
        %4982 = vmatpush2.msra.mxu0 0.0
        %4983 = vmatprep.subr.mxu0 0.0
        %4984 = vmatpush2.msra.mxu0 0.0
        %4985 = vmatprep.subr.mxu0 0.0
        %4986 = vmatpush2.msra.mxu0 0.0
        %4987 = vmatprep.subr.mxu0 0.0
        %4988 = vmatpush2.msra.mxu0 0.0
        %4989 = vmatprep.subr.mxu0 0.0
        %4990 = vmatpush2.msra.mxu0 0.0
        %4991 = vmatprep.subr.mxu0 0.0
        %4992 = vmatpush2.msra.mxu0 0.0
        %4993 = vmatprep.subr.mxu0 0.0
        %4994 = vmatpush2.msra.mxu0 0.0
        %4995 = vmatprep.subr.mxu0 0.0
        %4996 = vmatpush2.msra.mxu0 0.0
        %4997 = vmatprep.subr.mxu0 0.0
        %4998 = vmatpush2.msra.mxu0 0.0
        %4999 = vmatprep.subr.mxu0 0.0
        %5000 = vmatpush2.msra.mxu0 0.0
        %5001 = vmatprep.subr.mxu0 0.0
        %5002 = vmatpush2.msra.mxu0 0.0
        %5003 = vmatprep.mubr.f32.mxu0 0.0
        %v5004 = vand.u32 %v4523, 4294901760
        %5005 = vmatmul.mubr.f32.gmra.mxu0 %v5004
        %v5006 = vpop.f32.mrf.mxu0
        %v5007 = vadd.f32 %v4932, %v5006
        %v5008 = vpop.f32.mrf.mxu0
        %5009 = vdwg.mxu0
        %5010 = vst.msk [vmem:[%s282] sm:$0xff] %vm4521, %v5007
        %s5011 = sand.u32 %s155, 1
        %s5012 = scalar_lea.sflag [#allocation6], %s5011
        %s5013 = sand.u32 %s155, 1
        %s5014 = smul.addr %s5013, 8
        %s5015 = scalar_lea.vmem [#allocation10], %s5014
        // Predicated region
        $region57: #{mha_pallas.1} parent=39 // pred_check
          %p5016 = pneg %p165
        $region58: #{mha_pallas.1} parent=39 // pred_check_branch
          %5018 = sbr.rel (%p5016) target = $region60
        $region59: #{mha_pallas.1} parent=39 // pred_region
          %s5020 = ssub.s32 128, 128
          %5021 = vsyncadd %s5012, %s5020
          %s5022 = sadd.s32 %s28, %s27
          %s5023 = smul.addr %s5022, 128
          %s5024 = scalar_lea.hbm %s5, %s5023
          %s5026 = sshll.u32 %s5015, 4
          %s5027 = int_to_ptr.vmem [resolvable:$true] %s5026
          %5029 = dma.vmem_to_hbm [thread:$0]  %s5027, 128, %s5024, %s5012
        $region60: #{mha_pallas.1} parent=39 // pred_fallthru
          _
      $region40: #{mha_pallas.1} parent=5 // pred_fallthru
        _
      %p5030 = scmp.le.s32.totalorder 2, %s18
      // Predicated region
      $region61: #{mha_pallas.1} parent=5 // pred_check
        %p5031 = pneg %p5030
      $region62: #{mha_pallas.1} parent=5 // pred_check_branch
        %5033 = sbr.rel (%p5031) target = $region64
      $region63: #{mha_pallas.1} parent=5 // pred_region
        %s5034 = ssub.s32 %s18, 2
        // Predicated region
        $region65: #{mha_pallas.1} parent=63 // pred_check
          %p5035 = pneg %p171
        $region66: #{mha_pallas.1} parent=63 // pred_check_branch
          %5037 = sbr.rel (%p5035) target = $region68
        $region67: #{mha_pallas.1} parent=63 // pred_region
          %s5038 = sand.u32 %s156, 1
          %s5039 = scalar_lea.sflag [#allocation6], %s5038
          %s5040 = sand.u32 %s156, 1
          %s5041 = smul.addr %s5040, 8
          %s5042 = scalar_lea.vmem [#allocation10], %s5041
          %5043 = dma.done %s5039, 128
        $region68: #{mha_pallas.1} parent=63 // pred_fallthru
          _
      $region64: #{mha_pallas.1} parent=5 // pred_fallthru
        _
    $region6: #{mha_pallas.1} parent=1 // loop_footer
      %s22 = sadd.s32 1, %s18
    $region7: #{mha_pallas.1} parent=1 // loop_footer_branch
      %17 = sbr.rel target = $region3
    $region8: #{mha_pallas.1} parent=1 // loop_exit
      _
    %5044 = vsyncpa [#allocation5], 1
    %s5045 = scalar_lea.sflag [#allocation5], 1
    %5046 = vsyncpa %s5045, 1
    %5047 = vsyncpa [#allocation8], 1
    %5048 = vsyncpa [#allocation6], 1
    %s5049 = scalar_lea.sflag [#allocation6], 1
    %5050 = vsyncpa %s5049, 1

</llo_original>
